<compile_context>
chip_gen: v6e
topology: v6e:2x2x1
jax: 0.10.0
libtpu: 0.0.40
codegen_flags: <defaults>
</compile_context>

<pallas_src>
import jax
import jax.numpy as jnp
from jax.experimental import pallas as pl
from jax.experimental.pallas import tpu as pltpu

HIDDEN = 256  # module default hidden width


def _round_up(x, m):
    return (x + m - 1) // m * m


# ----------------------------------------------------------------------------- kernel

def twin_dueling_kernel(x_ref,
                        wE1_ref, bE1_ref,
                        we2a_ref, be2a_ref, we2b_ref, be2b_ref,
                        wh1a_ref, bh1a_ref, wh1b_ref, bh1b_ref,
                        wa2a_ref, ba2a_ref, wv2a_ref, bv2a_ref,
                        wa2b_ref, ba2b_ref, wv2b_ref, bv2b_ref,
                        wA1_ref, wV1_ref, wA2_ref, wV2_ref, bout_ref,
                        out_ref):
    """One batch tile of both dueling critics. All weights are VMEM-resident bf16."""
    H = HIDDEN
    # f32 state from HBM; cast to bf16 on the VPU here (no wrapper-side HBM cast copy).
    x = x_ref[...].astype(jnp.bfloat16)                               # (TB, S)

    def layer(h, w_ref, b_ref):
        # bf16 matmul on the MXU with f32 accumulation; bias + ReLU on the VPU in f32;
        # cast back to bf16 so the next matmul stays on the bf16-native MXU path.
        y = jnp.dot(h, w_ref[...], preferred_element_type=jnp.float32) + b_ref[...]
        return jnp.maximum(y, 0.0).astype(jnp.bfloat16)

    # Embedding layer 1: both critics fused along the output dim (one (S, 2H) matmul).
    h1 = layer(x, wE1_ref, bE1_ref)                                   # (TB, 2H)
    # Embedding layer 2 (per critic).
    ea = layer(h1[:, :H], we2a_ref, be2a_ref)                         # (TB, H)
    eb = layer(h1[:, H:], we2b_ref, be2b_ref)
    # Head layer 1: advantage|V fused per critic (one (H, 2H) matmul each).
    ua = layer(ea, wh1a_ref, bh1a_ref)                                # (TB, 2H) = [adv1 | v1]
    ub = layer(eb, wh1b_ref, bh1b_ref)
    # Head layer 2 (per critic, per head).
    adv2a = layer(ua[:, :H], wa2a_ref, ba2a_ref)
    v2a = layer(ua[:, H:], wv2a_ref, bv2a_ref)
    adv2b = layer(ub[:, :H], wa2b_ref, ba2b_ref)
    v2b = layer(ub[:, H:], wv2b_ref, bv2b_ref)
    # Output layer: four accumulating column-placed matmuls into one lane-dense padded slab
    # [A1 | V1 | A2 | V2 | zeros] (replaces the concat + zero-block matmul and masked stores).
    acc = jnp.dot(adv2a, wA1_ref[...], preferred_element_type=jnp.float32)
    acc = acc + jnp.dot(v2a, wV1_ref[...], preferred_element_type=jnp.float32)
    acc = acc + jnp.dot(adv2b, wA2_ref[...], preferred_element_type=jnp.float32)
    acc = acc + jnp.dot(v2b, wV2_ref[...], preferred_element_type=jnp.float32)
    out_ref[...] = acc + bout_ref[...]                                # (TB, OUT_PAD) f32


# ----------------------------------------------------------------------------- params

def _linear_init(key, fan_in, fan_out):
    """PyTorch nn.Linear default init: U(-1/sqrt(fan_in), +1/sqrt(fan_in)) for W and b."""
    kw, kb = jax.random.split(key)
    bound = 1.0 / (fan_in ** 0.5)
    w = jax.random.uniform(kw, (fan_in, fan_out), jnp.float32, -bound, bound)
    b = jax.random.uniform(kb, (1, fan_out), jnp.float32, -bound, bound)
    return w, b


def init_dueling_critic_params(key, state_dim, action_dim, hidden=HIDDEN):
    keys = jax.random.split(key, 8)
    p = {}
    p['we1'], p['be1'] = _linear_init(keys[0], state_dim, hidden)     # embedding
    p['we2'], p['be2'] = _linear_init(keys[1], hidden, hidden)
    p['wa1'], p['ba1'] = _linear_init(keys[2], hidden, hidden)        # advantage head
    p['wa2'], p['ba2'] = _linear_init(keys[3], hidden, hidden)
    p['wa3'], p['ba3'] = _linear_init(keys[4], hidden, action_dim)
    p['wv1'], p['bv1'] = _linear_init(keys[5], hidden, hidden)        # V head
    p['wv2'], p['bv2'] = _linear_init(keys[6], hidden, hidden)
    p['wv3'], p['bv3'] = _linear_init(keys[7], hidden, 1)
    return p


def pack_twin_params(p1, p2, action_dim, hidden=HIDDEN):
    """Fuse/pack the two critics into the kernel operand layout (weights bf16, biases f32)."""
    bf = lambda w: w.astype(jnp.bfloat16)
    A, H = action_dim, hidden
    out_w = 2 * (A + 1)
    out_pad = max(128, _round_up(out_w, 128))   # lane-dense output slab width

    wE1 = bf(jnp.concatenate([p1['we1'], p2['we1']], axis=1))         # (S, 2H)
    bE1 = jnp.concatenate([p1['be1'], p2['be1']], axis=1)
    wh1a = bf(jnp.concatenate([p1['wa1'], p1['wv1']], axis=1))        # (H, 2H)
    bh1a = jnp.concatenate([p1['ba1'], p1['bv1']], axis=1)
    wh1b = bf(jnp.concatenate([p2['wa1'], p2['wv1']], axis=1))
    bh1b = jnp.concatenate([p2['ba1'], p2['bv1']], axis=1)

    # Column layout of the padded output slab: [A1 (A) | V1 (1) | A2 (A) | V2 (1) | zeros].
    def col_place(w, col):
        wp = jnp.zeros((H, out_pad), jnp.float32)
        return bf(wp.at[:, col:col + w.shape[1]].set(w))

    wA1 = col_place(p1['wa3'], 0)
    wV1 = col_place(p1['wv3'], A)
    wA2 = col_place(p2['wa3'], A + 1)
    wV2 = col_place(p2['wv3'], 2 * A + 1)
    bout = jnp.zeros((1, out_pad), jnp.float32)
    bout = bout.at[:, 0:A].set(p1['ba3'])
    bout = bout.at[:, A:A + 1].set(p1['bv3'])
    bout = bout.at[:, A + 1:2 * A + 1].set(p2['ba3'])
    bout = bout.at[:, 2 * A + 1:2 * A + 2].set(p2['bv3'])

    return (wE1, bE1,
            bf(p1['we2']), p1['be2'], bf(p2['we2']), p2['be2'],
            wh1a, bh1a, wh1b, bh1b,
            bf(p1['wa2']), p1['ba2'], bf(p1['wv2']), p1['bv2'],
            bf(p2['wa2']), p2['ba2'], bf(p2['wv2']), p2['bv2'],
            wA1, wV1, wA2, wV2, bout)


# ----------------------------------------------------------------------------- forward

def _choose_batch_tile(batch, block_batch):
    """Rows per tile (multiple of 8 for the sublane constraint). Tiny RL batches are not
    over-padded to 128 rows; large batches use up to `block_batch` rows while keeping >= 2
    grid tiles so the 'parallel' batch axis can shard across both v7x TensorCores."""
    b8 = _round_up(max(batch, 1), 8)
    if b8 <= 128:
        return b8
    return max(128, min(block_batch, _round_up(pl.cdiv(b8, 2), 128)))


def _vmem_limit_bytes(tb, state_dim, out_pad, packed):
    """Scoped-VMEM request from actual usage: single-buffered weights/biases, double-buffered
    x/out tiles, plus a generous per-row budget for in-kernel activation temporaries."""
    weight_bytes = sum(int(p.size) * p.dtype.itemsize for p in packed)
    io_bytes = 2 * tb * (state_dim + out_pad) * 4
    act_bytes = tb * 24 * 1024
    return int(min(48 << 20, max(32 << 20, weight_bytes + io_bytes + act_bytes)))


def twin_dueling_q_forward(state, packed, action_dim, *, block_batch=512):
    """get_twin(state) -> (Q1, Q2)."""
    batch, state_dim = state.shape
    A = action_dim
    out_w = 2 * (A + 1)
    out_pad = packed[-1].shape[1]                 # padded output slab width (from bout)

    tb = _choose_batch_tile(batch, block_batch)
    b_pad = _round_up(batch, tb)
    x = state
    if b_pad != batch:
        # Single pad op on the (small) f32 input; the bf16 cast happens inside the kernel.
        x = jnp.pad(x, ((0, b_pad - batch), (0, 0)))
    nb = b_pad // tb

    x_spec = pl.BlockSpec((tb, state_dim), lambda i: (i, 0))
    # Full-array blocks with constant index maps: DMA'd once, VMEM-resident across every grid
    # step. They never change, so single-buffer them (halves weight VMEM; v7x 64 MiB headroom).
    resident = lambda p: pl.BlockSpec(p.shape, lambda i: (0, 0),
                                      pipeline_mode=pl.Buffered(1))

    out = pl.pallas_call(
        twin_dueling_kernel,
        out_shape=jax.ShapeDtypeStruct((b_pad, out_pad), jnp.float32),
        grid=(nb,),
        in_specs=[x_spec] + [resident(p) for p in packed],
        out_specs=pl.BlockSpec((tb, out_pad), lambda i: (i, 0)),
        compiler_params=pltpu.CompilerParams(
            dimension_semantics=("parallel",),        # batch tiles shard across TCs on v7x
            vmem_limit_bytes=_vmem_limit_bytes(tb, state_dim, out_pad, packed),
        ),
    )(x, *packed)

    out = out[:batch, :out_w]                     # drop padded rows and padded lanes
    a1, v1 = out[:, :A], out[:, A:A + 1]
    a2, v2 = out[:, A + 1:2 * A + 1], out[:, 2 * A + 1:]
    # Dueling combine. torch `advantage.mean()` (no dims) is the GLOBAL mean over batch*actions,
    # a cross-tile reduction, so it stays in the wrapper after padded rows are sliced away.
    q1 = v1 + a1 - jnp.mean(a1)
    q2 = v2 + a2 - jnp.mean(a2)
    return q1, q2


def twin_dueling_forward(state, packed, action_dim, **kw):
    """Module `forward(state)` -> (Q1, hc); hc is None for the feedforward approximator."""
    q1, _ = twin_dueling_q_forward(state, packed, action_dim, **kw)
    return q1, None


# ----------------------------------------------------------------------------- reference

def reference_get_twin(state, raw_params):
    """Plain-JAX reference mirroring the kernel numerics (bf16 weights, f32 accumulation).
    NOTE: a pure-f32 torch module differs from this by ~1e-2 relative due to bf16 weights."""
    x = state.astype(jnp.bfloat16)

    def lin(h, w, b, relu=True):
        y = jnp.dot(h, w.astype(jnp.bfloat16), preferred_element_type=jnp.float32) + b
        return jnp.maximum(y, 0.0).astype(jnp.bfloat16) if relu else y

    def critic(p):
        e = lin(lin(x, p['we1'], p['be1']), p['we2'], p['be2'])
        a = lin(lin(e, p['wa1'], p['ba1']), p['wa2'], p['ba2'])
        adv = lin(a, p['wa3'], p['ba3'], relu=False)
        v = lin(lin(e, p['wv1'], p['bv1']), p['wv2'], p['bv2'])
        V = lin(v, p['wv3'], p['bv3'], relu=False)
        return V + adv - jnp.mean(adv)

    return critic(raw_params[0]), critic(raw_params[1])


# ----------------------------------------------------------------------------- demo

if __name__ == "__main__":
    key = jax.random.PRNGKey(0)
    k_c1, k_c2, k_state = jax.random.split(key, 3)

    batch, state_dim, action_dim = 8, 16, 8
    state = jax.random.normal(k_state, (batch, state_dim), jnp.float32)

    p1 = init_dueling_critic_params(k_c1, state_dim, action_dim)
    p2 = init_dueling_critic_params(k_c2, state_dim, action_dim)
    packed = pack_twin_params(p1, p2, action_dim)

    q1, q2 = twin_dueling_q_forward(state, packed, action_dim)          # get_twin
    q1_fwd, hc = twin_dueling_forward(state, packed, action_dim)        # forward
    jax.block_until_ready((q1, q2, q1_fwd))

    q1_ref, q2_ref = reference_get_twin(state, (p1, p2))
    assert q1.shape == (batch, action_dim) and q2.shape == (batch, action_dim)
    assert hc is None
    assert jnp.allclose(q1, q1_ref, atol=2e-2, rtol=2e-2)
    assert jnp.allclose(q2, q2_ref, atol=2e-2, rtol=2e-2)
    assert jnp.allclose(q1_fwd, q1)

    print("KERNEL_OK")
</pallas_src>

<mosaic_0001>
module attributes {stable_mosaic.version = 11 : i64} {
  func.func @twin_dueling_kernel(%arg0: i32, %arg1: memref<8x16xf32, #tpu.memory_space<vmem>>, %arg2: memref<16x512xbf16, #tpu.memory_space<vmem>>, %arg3: memref<1x512xf32, #tpu.memory_space<vmem>>, %arg4: memref<256x256xbf16, #tpu.memory_space<vmem>>, %arg5: memref<1x256xf32, #tpu.memory_space<vmem>>, %arg6: memref<256x256xbf16, #tpu.memory_space<vmem>>, %arg7: memref<1x256xf32, #tpu.memory_space<vmem>>, %arg8: memref<256x512xbf16, #tpu.memory_space<vmem>>, %arg9: memref<1x512xf32, #tpu.memory_space<vmem>>, %arg10: memref<256x512xbf16, #tpu.memory_space<vmem>>, %arg11: memref<1x512xf32, #tpu.memory_space<vmem>>, %arg12: memref<256x256xbf16, #tpu.memory_space<vmem>>, %arg13: memref<1x256xf32, #tpu.memory_space<vmem>>, %arg14: memref<256x256xbf16, #tpu.memory_space<vmem>>, %arg15: memref<1x256xf32, #tpu.memory_space<vmem>>, %arg16: memref<256x256xbf16, #tpu.memory_space<vmem>>, %arg17: memref<1x256xf32, #tpu.memory_space<vmem>>, %arg18: memref<256x256xbf16, #tpu.memory_space<vmem>>, %arg19: memref<1x256xf32, #tpu.memory_space<vmem>>, %arg20: memref<256x128xbf16, #tpu.memory_space<vmem>>, %arg21: memref<256x128xbf16, #tpu.memory_space<vmem>>, %arg22: memref<256x128xbf16, #tpu.memory_space<vmem>>, %arg23: memref<256x128xbf16, #tpu.memory_space<vmem>>, %arg24: memref<1x128xf32, #tpu.memory_space<vmem>>, %arg25: memref<8x128xf32, #tpu.memory_space<vmem>>) attributes {dimension_semantics = [#tpu.dimension_semantics<parallel>], iteration_bounds = array<i64: 1>, scalar_prefetch = 0 : i64, scratch_operands = 0 : i64, tpu.core_type = #tpu.core_type<tc>, window_params = [{transform_indices = @transform_0, window_bounds = array<i64: 8, 16>}, {pipeline_mode = #tpu.pipeline_mode<synchronous>, transform_indices = @transform_1, window_bounds = array<i64: 16, 512>}, {pipeline_mode = #tpu.pipeline_mode<synchronous>, transform_indices = @transform_2, window_bounds = array<i64: 1, 512>}, {pipeline_mode = #tpu.pipeline_mode<synchronous>, transform_indices = @transform_3, window_bounds = array<i64: 256, 256>}, {pipeline_mode = #tpu.pipeline_mode<synchronous>, transform_indices = @transform_4, window_bounds = array<i64: 1, 256>}, {pipeline_mode = #tpu.pipeline_mode<synchronous>, transform_indices = @transform_5, window_bounds = array<i64: 256, 256>}, {pipeline_mode = #tpu.pipeline_mode<synchronous>, transform_indices = @transform_6, window_bounds = array<i64: 1, 256>}, {pipeline_mode = #tpu.pipeline_mode<synchronous>, transform_indices = @transform_7, window_bounds = array<i64: 256, 512>}, {pipeline_mode = #tpu.pipeline_mode<synchronous>, transform_indices = @transform_8, window_bounds = array<i64: 1, 512>}, {pipeline_mode = #tpu.pipeline_mode<synchronous>, transform_indices = @transform_9, window_bounds = array<i64: 256, 512>}, {pipeline_mode = #tpu.pipeline_mode<synchronous>, transform_indices = @transform_10, window_bounds = array<i64: 1, 512>}, {pipeline_mode = #tpu.pipeline_mode<synchronous>, transform_indices = @transform_11, window_bounds = array<i64: 256, 256>}, {pipeline_mode = #tpu.pipeline_mode<synchronous>, transform_indices = @transform_12, window_bounds = array<i64: 1, 256>}, {pipeline_mode = #tpu.pipeline_mode<synchronous>, transform_indices = @transform_13, window_bounds = array<i64: 256, 256>}, {pipeline_mode = #tpu.pipeline_mode<synchronous>, transform_indices = @transform_14, window_bounds = array<i64: 1, 256>}, {pipeline_mode = #tpu.pipeline_mode<synchronous>, transform_indices = @transform_15, window_bounds = array<i64: 256, 256>}, {pipeline_mode = #tpu.pipeline_mode<synchronous>, transform_indices = @transform_16, window_bounds = array<i64: 1, 256>}, {pipeline_mode = #tpu.pipeline_mode<synchronous>, transform_indices = @transform_17, window_bounds = array<i64: 256, 256>}, {pipeline_mode = #tpu.pipeline_mode<synchronous>, transform_indices = @transform_18, window_bounds = array<i64: 1, 256>}, {pipeline_mode = #tpu.pipeline_mode<synchronous>, transform_indices = @transform_19, window_bounds = array<i64: 256, 128>}, {pipeline_mode = #tpu.pipeline_mode<synchronous>, transform_indices = @transform_20, window_bounds = array<i64: 256, 128>}, {pipeline_mode = #tpu.pipeline_mode<synchronous>, transform_indices = @transform_21, window_bounds = array<i64: 256, 128>}, {pipeline_mode = #tpu.pipeline_mode<synchronous>, transform_indices = @transform_22, window_bounds = array<i64: 256, 128>}, {pipeline_mode = #tpu.pipeline_mode<synchronous>, transform_indices = @transform_23, window_bounds = array<i64: 1, 128>}, {transform_indices = @transform_24, window_bounds = array<i64: 8, 128>}]} {
    %c0 = arith.constant 0 : index
    %c0_0 = arith.constant 0 : index
    %0 = vector.load %arg1[%c0, %c0_0] : memref<8x16xf32, #tpu.memory_space<vmem>>, vector<8x16xf32>
    %1 = arith.truncf %0 : vector<8x16xf32> to vector<8x16xbf16>
    %c0_1 = arith.constant 0 : index
    %c0_2 = arith.constant 0 : index
    %2 = vector.load %arg2[%c0_1, %c0_2] : memref<16x512xbf16, #tpu.memory_space<vmem>>, vector<16x512xbf16>
    %cst = arith.constant dense<0.000000e+00> : vector<8x512xf32>
    %3 = tpu.matmul %1, %2, %cst {dimension_numbers = #tpu.dot_dimension_numbers<[1], [0], [0], [1], [0, 0, 1, 1], [], []>} : vector<8x16xbf16>, vector<16x512xbf16>, vector<8x512xf32> -> vector<8x512xf32>
    %c0_3 = arith.constant 0 : index
    %c0_4 = arith.constant 0 : index
    %4 = vector.load %arg3[%c0_3, %c0_4] : memref<1x512xf32, #tpu.memory_space<vmem>>, vector<1x512xf32>
    %5 = vector.broadcast %4 : vector<1x512xf32> to vector<8x512xf32>
    %6 = arith.addf %3, %5 : vector<8x512xf32>
    %cst_5 = arith.constant 0.000000e+00 : f32
    %7 = vector.broadcast %cst_5 : f32 to vector<8x512xf32>
    %8 = arith.maximumf %6, %7 : vector<8x512xf32>
    %9 = arith.truncf %8 : vector<8x512xf32> to vector<8x512xbf16>
    %10 = vector.extract_strided_slice %9 {offsets = [0, 0], sizes = [8, 256], strides = [1, 1]} : vector<8x512xbf16> to vector<8x256xbf16>
    %c0_6 = arith.constant 0 : index
    %c0_7 = arith.constant 0 : index
    %11 = vector.load %arg4[%c0_6, %c0_7] : memref<256x256xbf16, #tpu.memory_space<vmem>>, vector<256x256xbf16>
    %cst_8 = arith.constant dense<0.000000e+00> : vector<8x256xf32>
    %12 = tpu.matmul %10, %11, %cst_8 {dimension_numbers = #tpu.dot_dimension_numbers<[1], [0], [0], [1], [0, 0, 1, 1], [], []>} : vector<8x256xbf16>, vector<256x256xbf16>, vector<8x256xf32> -> vector<8x256xf32>
    %c0_9 = arith.constant 0 : index
    %c0_10 = arith.constant 0 : index
    %13 = vector.load %arg5[%c0_9, %c0_10] : memref<1x256xf32, #tpu.memory_space<vmem>>, vector<1x256xf32>
    %14 = vector.broadcast %13 : vector<1x256xf32> to vector<8x256xf32>
    %15 = arith.addf %12, %14 : vector<8x256xf32>
    %cst_11 = arith.constant 0.000000e+00 : f32
    %16 = vector.broadcast %cst_11 : f32 to vector<8x256xf32>
    %17 = arith.maximumf %15, %16 : vector<8x256xf32>
    %18 = arith.truncf %17 : vector<8x256xf32> to vector<8x256xbf16>
    %19 = vector.extract_strided_slice %9 {offsets = [0, 256], sizes = [8, 256], strides = [1, 1]} : vector<8x512xbf16> to vector<8x256xbf16>
    %c0_12 = arith.constant 0 : index
    %c0_13 = arith.constant 0 : index
    %20 = vector.load %arg6[%c0_12, %c0_13] : memref<256x256xbf16, #tpu.memory_space<vmem>>, vector<256x256xbf16>
    %cst_14 = arith.constant dense<0.000000e+00> : vector<8x256xf32>
    %21 = tpu.matmul %19, %20, %cst_14 {dimension_numbers = #tpu.dot_dimension_numbers<[1], [0], [0], [1], [0, 0, 1, 1], [], []>} : vector<8x256xbf16>, vector<256x256xbf16>, vector<8x256xf32> -> vector<8x256xf32>
    %c0_15 = arith.constant 0 : index
    %c0_16 = arith.constant 0 : index
    %22 = vector.load %arg7[%c0_15, %c0_16] : memref<1x256xf32, #tpu.memory_space<vmem>>, vector<1x256xf32>
    %23 = vector.broadcast %22 : vector<1x256xf32> to vector<8x256xf32>
    %24 = arith.addf %21, %23 : vector<8x256xf32>
    %cst_17 = arith.constant 0.000000e+00 : f32
    %25 = vector.broadcast %cst_17 : f32 to vector<8x256xf32>
    %26 = arith.maximumf %24, %25 : vector<8x256xf32>
    %27 = arith.truncf %26 : vector<8x256xf32> to vector<8x256xbf16>
    %c0_18 = arith.constant 0 : index
    %c0_19 = arith.constant 0 : index
    %28 = vector.load %arg8[%c0_18, %c0_19] : memref<256x512xbf16, #tpu.memory_space<vmem>>, vector<256x512xbf16>
    %cst_20 = arith.constant dense<0.000000e+00> : vector<8x512xf32>
    %29 = tpu.matmul %18, %28, %cst_20 {dimension_numbers = #tpu.dot_dimension_numbers<[1], [0], [0], [1], [0, 0, 1, 1], [], []>} : vector<8x256xbf16>, vector<256x512xbf16>, vector<8x512xf32> -> vector<8x512xf32>
    %c0_21 = arith.constant 0 : index
    %c0_22 = arith.constant 0 : index
    %30 = vector.load %arg9[%c0_21, %c0_22] : memref<1x512xf32, #tpu.memory_space<vmem>>, vector<1x512xf32>
    %31 = vector.broadcast %30 : vector<1x512xf32> to vector<8x512xf32>
    %32 = arith.addf %29, %31 : vector<8x512xf32>
    %cst_23 = arith.constant 0.000000e+00 : f32
    %33 = vector.broadcast %cst_23 : f32 to vector<8x512xf32>
    %34 = arith.maximumf %32, %33 : vector<8x512xf32>
    %35 = arith.truncf %34 : vector<8x512xf32> to vector<8x512xbf16>
    %c0_24 = arith.constant 0 : index
    %c0_25 = arith.constant 0 : index
    %36 = vector.load %arg10[%c0_24, %c0_25] : memref<256x512xbf16, #tpu.memory_space<vmem>>, vector<256x512xbf16>
    %cst_26 = arith.constant dense<0.000000e+00> : vector<8x512xf32>
    %37 = tpu.matmul %27, %36, %cst_26 {dimension_numbers = #tpu.dot_dimension_numbers<[1], [0], [0], [1], [0, 0, 1, 1], [], []>} : vector<8x256xbf16>, vector<256x512xbf16>, vector<8x512xf32> -> vector<8x512xf32>
    %c0_27 = arith.constant 0 : index
    %c0_28 = arith.constant 0 : index
    %38 = vector.load %arg11[%c0_27, %c0_28] : memref<1x512xf32, #tpu.memory_space<vmem>>, vector<1x512xf32>
    %39 = vector.broadcast %38 : vector<1x512xf32> to vector<8x512xf32>
    %40 = arith.addf %37, %39 : vector<8x512xf32>
    %cst_29 = arith.constant 0.000000e+00 : f32
    %41 = vector.broadcast %cst_29 : f32 to vector<8x512xf32>
    %42 = arith.maximumf %40, %41 : vector<8x512xf32>
    %43 = arith.truncf %42 : vector<8x512xf32> to vector<8x512xbf16>
    %44 = vector.extract_strided_slice %35 {offsets = [0, 0], sizes = [8, 256], strides = [1, 1]} : vector<8x512xbf16> to vector<8x256xbf16>
    %c0_30 = arith.constant 0 : index
    %c0_31 = arith.constant 0 : index
    %45 = vector.load %arg12[%c0_30, %c0_31] : memref<256x256xbf16, #tpu.memory_space<vmem>>, vector<256x256xbf16>
    %cst_32 = arith.constant dense<0.000000e+00> : vector<8x256xf32>
    %46 = tpu.matmul %44, %45, %cst_32 {dimension_numbers = #tpu.dot_dimension_numbers<[1], [0], [0], [1], [0, 0, 1, 1], [], []>} : vector<8x256xbf16>, vector<256x256xbf16>, vector<8x256xf32> -> vector<8x256xf32>
    %c0_33 = arith.constant 0 : index
    %c0_34 = arith.constant 0 : index
    %47 = vector.load %arg13[%c0_33, %c0_34] : memref<1x256xf32, #tpu.memory_space<vmem>>, vector<1x256xf32>
    %48 = vector.broadcast %47 : vector<1x256xf32> to vector<8x256xf32>
    %49 = arith.addf %46, %48 : vector<8x256xf32>
    %cst_35 = arith.constant 0.000000e+00 : f32
    %50 = vector.broadcast %cst_35 : f32 to vector<8x256xf32>
    %51 = arith.maximumf %49, %50 : vector<8x256xf32>
    %52 = arith.truncf %51 : vector<8x256xf32> to vector<8x256xbf16>
    %53 = vector.extract_strided_slice %35 {offsets = [0, 256], sizes = [8, 256], strides = [1, 1]} : vector<8x512xbf16> to vector<8x256xbf16>
    %c0_36 = arith.constant 0 : index
    %c0_37 = arith.constant 0 : index
    %54 = vector.load %arg14[%c0_36, %c0_37] : memref<256x256xbf16, #tpu.memory_space<vmem>>, vector<256x256xbf16>
    %cst_38 = arith.constant dense<0.000000e+00> : vector<8x256xf32>
    %55 = tpu.matmul %53, %54, %cst_38 {dimension_numbers = #tpu.dot_dimension_numbers<[1], [0], [0], [1], [0, 0, 1, 1], [], []>} : vector<8x256xbf16>, vector<256x256xbf16>, vector<8x256xf32> -> vector<8x256xf32>
    %c0_39 = arith.constant 0 : index
    %c0_40 = arith.constant 0 : index
    %56 = vector.load %arg15[%c0_39, %c0_40] : memref<1x256xf32, #tpu.memory_space<vmem>>, vector<1x256xf32>
    %57 = vector.broadcast %56 : vector<1x256xf32> to vector<8x256xf32>
    %58 = arith.addf %55, %57 : vector<8x256xf32>
    %cst_41 = arith.constant 0.000000e+00 : f32
    %59 = vector.broadcast %cst_41 : f32 to vector<8x256xf32>
    %60 = arith.maximumf %58, %59 : vector<8x256xf32>
    %61 = arith.truncf %60 : vector<8x256xf32> to vector<8x256xbf16>
    %62 = vector.extract_strided_slice %43 {offsets = [0, 0], sizes = [8, 256], strides = [1, 1]} : vector<8x512xbf16> to vector<8x256xbf16>
    %c0_42 = arith.constant 0 : index
    %c0_43 = arith.constant 0 : index
    %63 = vector.load %arg16[%c0_42, %c0_43] : memref<256x256xbf16, #tpu.memory_space<vmem>>, vector<256x256xbf16>
    %cst_44 = arith.constant dense<0.000000e+00> : vector<8x256xf32>
    %64 = tpu.matmul %62, %63, %cst_44 {dimension_numbers = #tpu.dot_dimension_numbers<[1], [0], [0], [1], [0, 0, 1, 1], [], []>} : vector<8x256xbf16>, vector<256x256xbf16>, vector<8x256xf32> -> vector<8x256xf32>
    %c0_45 = arith.constant 0 : index
    %c0_46 = arith.constant 0 : index
    %65 = vector.load %arg17[%c0_45, %c0_46] : memref<1x256xf32, #tpu.memory_space<vmem>>, vector<1x256xf32>
    %66 = vector.broadcast %65 : vector<1x256xf32> to vector<8x256xf32>
    %67 = arith.addf %64, %66 : vector<8x256xf32>
    %cst_47 = arith.constant 0.000000e+00 : f32
    %68 = vector.broadcast %cst_47 : f32 to vector<8x256xf32>
    %69 = arith.maximumf %67, %68 : vector<8x256xf32>
    %70 = arith.truncf %69 : vector<8x256xf32> to vector<8x256xbf16>
    %71 = vector.extract_strided_slice %43 {offsets = [0, 256], sizes = [8, 256], strides = [1, 1]} : vector<8x512xbf16> to vector<8x256xbf16>
    %c0_48 = arith.constant 0 : index
    %c0_49 = arith.constant 0 : index
    %72 = vector.load %arg18[%c0_48, %c0_49] : memref<256x256xbf16, #tpu.memory_space<vmem>>, vector<256x256xbf16>
    %cst_50 = arith.constant dense<0.000000e+00> : vector<8x256xf32>
    %73 = tpu.matmul %71, %72, %cst_50 {dimension_numbers = #tpu.dot_dimension_numbers<[1], [0], [0], [1], [0, 0, 1, 1], [], []>} : vector<8x256xbf16>, vector<256x256xbf16>, vector<8x256xf32> -> vector<8x256xf32>
    %c0_51 = arith.constant 0 : index
    %c0_52 = arith.constant 0 : index
    %74 = vector.load %arg19[%c0_51, %c0_52] : memref<1x256xf32, #tpu.memory_space<vmem>>, vector<1x256xf32>
    %75 = vector.broadcast %74 : vector<1x256xf32> to vector<8x256xf32>
    %76 = arith.addf %73, %75 : vector<8x256xf32>
    %cst_53 = arith.constant 0.000000e+00 : f32
    %77 = vector.broadcast %cst_53 : f32 to vector<8x256xf32>
    %78 = arith.maximumf %76, %77 : vector<8x256xf32>
    %79 = arith.truncf %78 : vector<8x256xf32> to vector<8x256xbf16>
    %c0_54 = arith.constant 0 : index
    %c0_55 = arith.constant 0 : index
    %80 = vector.load %arg20[%c0_54, %c0_55] : memref<256x128xbf16, #tpu.memory_space<vmem>>, vector<256x128xbf16>
    %cst_56 = arith.constant dense<0.000000e+00> : vector<8x128xf32>
    %81 = tpu.matmul %52, %80, %cst_56 {dimension_numbers = #tpu.dot_dimension_numbers<[1], [0], [0], [1], [0, 0, 1, 1], [], []>} : vector<8x256xbf16>, vector<256x128xbf16>, vector<8x128xf32> -> vector<8x128xf32>
    %c0_57 = arith.constant 0 : index
    %c0_58 = arith.constant 0 : index
    %82 = vector.load %arg21[%c0_57, %c0_58] : memref<256x128xbf16, #tpu.memory_space<vmem>>, vector<256x128xbf16>
    %cst_59 = arith.constant dense<0.000000e+00> : vector<8x128xf32>
    %83 = tpu.matmul %61, %82, %cst_59 {dimension_numbers = #tpu.dot_dimension_numbers<[1], [0], [0], [1], [0, 0, 1, 1], [], []>} : vector<8x256xbf16>, vector<256x128xbf16>, vector<8x128xf32> -> vector<8x128xf32>
    %84 = arith.addf %81, %83 : vector<8x128xf32>
    %c0_60 = arith.constant 0 : index
    %c0_61 = arith.constant 0 : index
    %85 = vector.load %arg22[%c0_60, %c0_61] : memref<256x128xbf16, #tpu.memory_space<vmem>>, vector<256x128xbf16>
    %cst_62 = arith.constant dense<0.000000e+00> : vector<8x128xf32>
    %86 = tpu.matmul %70, %85, %cst_62 {dimension_numbers = #tpu.dot_dimension_numbers<[1], [0], [0], [1], [0, 0, 1, 1], [], []>} : vector<8x256xbf16>, vector<256x128xbf16>, vector<8x128xf32> -> vector<8x128xf32>
    %87 = arith.addf %84, %86 : vector<8x128xf32>
    %c0_63 = arith.constant 0 : index
    %c0_64 = arith.constant 0 : index
    %88 = vector.load %arg23[%c0_63, %c0_64] : memref<256x128xbf16, #tpu.memory_space<vmem>>, vector<256x128xbf16>
    %cst_65 = arith.constant dense<0.000000e+00> : vector<8x128xf32>
    %89 = tpu.matmul %79, %88, %cst_65 {dimension_numbers = #tpu.dot_dimension_numbers<[1], [0], [0], [1], [0, 0, 1, 1], [], []>} : vector<8x256xbf16>, vector<256x128xbf16>, vector<8x128xf32> -> vector<8x128xf32>
    %90 = arith.addf %87, %89 : vector<8x128xf32>
    %c0_66 = arith.constant 0 : index
    %c0_67 = arith.constant 0 : index
    %91 = vector.load %arg24[%c0_66, %c0_67] : memref<1x128xf32, #tpu.memory_space<vmem>>, vector<1x128xf32>
    %92 = vector.broadcast %91 : vector<1x128xf32> to vector<8x128xf32>
    %93 = arith.addf %90, %92 : vector<8x128xf32>
    %c0_68 = arith.constant 0 : index
    %c0_69 = arith.constant 0 : index
    %94 = vector.load %arg25[%c0_68, %c0_69] : memref<8x128xf32, #tpu.memory_space<vmem>>, vector<8x128xf32>
    tpu.vector_store %arg25[%c0_68, %c0_69], %93 {strides = array<i32>} : memref<8x128xf32, #tpu.memory_space<vmem>>, vector<8x128xf32>,
    return
  }
  func.func @transform_0(%arg0: i32) -> (i32, i32) {
    %c0_i32 = arith.constant 0 : i32
    %c0_i32_0 = arith.constant 0 : i32
    return %arg0, %c0_i32 : i32, i32
  }
  func.func @transform_1(%arg0: i32) -> (i32, i32) {
    %c0_i32 = arith.constant 0 : i32
    %c0_i32_0 = arith.constant 0 : i32
    %c0_i32_1 = arith.constant 0 : i32
    return %c0_i32, %c0_i32_0 : i32, i32
  }
  func.func @transform_2(%arg0: i32) -> (i32, i32) {
    %c0_i32 = arith.constant 0 : i32
    %c0_i32_0 = arith.constant 0 : i32
    %c0_i32_1 = arith.constant 0 : i32
    return %c0_i32, %c0_i32_0 : i32, i32
  }
  func.func @transform_3(%arg0: i32) -> (i32, i32) {
    %c0_i32 = arith.constant 0 : i32
    %c0_i32_0 = arith.constant 0 : i32
    %c0_i32_1 = arith.constant 0 : i32
    return %c0_i32, %c0_i32_0 : i32, i32
  }
  func.func @transform_4(%arg0: i32) -> (i32, i32) {
    %c0_i32 = arith.constant 0 : i32
    %c0_i32_0 = arith.constant 0 : i32
    %c0_i32_1 = arith.constant 0 : i32
    return %c0_i32, %c0_i32_0 : i32, i32
  }
  func.func @transform_5(%arg0: i32) -> (i32, i32) {
    %c0_i32 = arith.constant 0 : i32
    %c0_i32_0 = arith.constant 0 : i32
    %c0_i32_1 = arith.constant 0 : i32
    return %c0_i32, %c0_i32_0 : i32, i32
  }
  func.func @transform_6(%arg0: i32) -> (i32, i32) {
    %c0_i32 = arith.constant 0 : i32
    %c0_i32_0 = arith.constant 0 : i32
    %c0_i32_1 = arith.constant 0 : i32
    return %c0_i32, %c0_i32_0 : i32, i32
  }
  func.func @transform_7(%arg0: i32) -> (i32, i32) {
    %c0_i32 = arith.constant 0 : i32
    %c0_i32_0 = arith.constant 0 : i32
    %c0_i32_1 = arith.constant 0 : i32
    return %c0_i32, %c0_i32_0 : i32, i32
  }
  func.func @transform_8(%arg0: i32) -> (i32, i32) {
    %c0_i32 = arith.constant 0 : i32
    %c0_i32_0 = arith.constant 0 : i32
    %c0_i32_1 = arith.constant 0 : i32
    return %c0_i32, %c0_i32_0 : i32, i32
  }
  func.func @transform_9(%arg0: i32) -> (i32, i32) {
    %c0_i32 = arith.constant 0 : i32
    %c0_i32_0 = arith.constant 0 : i32
    %c0_i32_1 = arith.constant 0 : i32
    return %c0_i32, %c0_i32_0 : i32, i32
  }
  func.func @transform_10(%arg0: i32) -> (i32, i32) {
    %c0_i32 = arith.constant 0 : i32
    %c0_i32_0 = arith.constant 0 : i32
    %c0_i32_1 = arith.constant 0 : i32
    return %c0_i32, %c0_i32_0 : i32, i32
  }
  func.func @transform_11(%arg0: i32) -> (i32, i32) {
    %c0_i32 = arith.constant 0 : i32
    %c0_i32_0 = arith.constant 0 : i32
    %c0_i32_1 = arith.constant 0 : i32
    return %c0_i32, %c0_i32_0 : i32, i32
  }
  func.func @transform_12(%arg0: i32) -> (i32, i32) {
    %c0_i32 = arith.constant 0 : i32
    %c0_i32_0 = arith.constant 0 : i32
    %c0_i32_1 = arith.constant 0 : i32
    return %c0_i32, %c0_i32_0 : i32, i32
  }
  func.func @transform_13(%arg0: i32) -> (i32, i32) {
    %c0_i32 = arith.constant 0 : i32
    %c0_i32_0 = arith.constant 0 : i32
    %c0_i32_1 = arith.constant 0 : i32
    return %c0_i32, %c0_i32_0 : i32, i32
  }
  func.func @transform_14(%arg0: i32) -> (i32, i32) {
    %c0_i32 = arith.constant 0 : i32
    %c0_i32_0 = arith.constant 0 : i32
    %c0_i32_1 = arith.constant 0 : i32
    return %c0_i32, %c0_i32_0 : i32, i32
  }
  func.func @transform_15(%arg0: i32) -> (i32, i32) {
    %c0_i32 = arith.constant 0 : i32
    %c0_i32_0 = arith.constant 0 : i32
    %c0_i32_1 = arith.constant 0 : i32
    return %c0_i32, %c0_i32_0 : i32, i32
  }
  func.func @transform_16(%arg0: i32) -> (i32, i32) {
    %c0_i32 = arith.constant 0 : i32
    %c0_i32_0 = arith.constant 0 : i32
    %c0_i32_1 = arith.constant 0 : i32
    return %c0_i32, %c0_i32_0 : i32, i32
  }
  func.func @transform_17(%arg0: i32) -> (i32, i32) {
    %c0_i32 = arith.constant 0 : i32
    %c0_i32_0 = arith.constant 0 : i32
    %c0_i32_1 = arith.constant 0 : i32
    return %c0_i32, %c0_i32_0 : i32, i32
  }
  func.func @transform_18(%arg0: i32) -> (i32, i32) {
    %c0_i32 = arith.constant 0 : i32
    %c0_i32_0 = arith.constant 0 : i32
    %c0_i32_1 = arith.constant 0 : i32
    return %c0_i32, %c0_i32_0 : i32, i32
  }
  func.func @transform_19(%arg0: i32) -> (i32, i32) {
    %c0_i32 = arith.constant 0 : i32
    %c0_i32_0 = arith.constant 0 : i32
    %c0_i32_1 = arith.constant 0 : i32
    return %c0_i32, %c0_i32_0 : i32, i32
  }
  func.func @transform_20(%arg0: i32) -> (i32, i32) {
    %c0_i32 = arith.constant 0 : i32
    %c0_i32_0 = arith.constant 0 : i32
    %c0_i32_1 = arith.constant 0 : i32
    return %c0_i32, %c0_i32_0 : i32, i32
  }
  func.func @transform_21(%arg0: i32) -> (i32, i32) {
    %c0_i32 = arith.constant 0 : i32
    %c0_i32_0 = arith.constant 0 : i32
    %c0_i32_1 = arith.constant 0 : i32
    return %c0_i32, %c0_i32_0 : i32, i32
  }
  func.func @transform_22(%arg0: i32) -> (i32, i32) {
    %c0_i32 = arith.constant 0 : i32
    %c0_i32_0 = arith.constant 0 : i32
    %c0_i32_1 = arith.constant 0 : i32
    return %c0_i32, %c0_i32_0 : i32, i32
  }
  func.func @transform_23(%arg0: i32) -> (i32, i32) {
    %c0_i32 = arith.constant 0 : i32
    %c0_i32_0 = arith.constant 0 : i32
    %c0_i32_1 = arith.constant 0 : i32
    return %c0_i32, %c0_i32_0 : i32, i32
  }
  func.func @transform_24(%arg0: i32) -> (i32, i32) {
    %c0_i32 = arith.constant 0 : i32
    %c0_i32_0 = arith.constant 0 : i32
    return %arg0, %c0_i32 : i32, i32
  }
}

</mosaic_0001>

<llo_original>
// kernel: tpu_custom_call.1
$region0: #{tpu_custom_call.1}
  #allocation0 [shape = 'u32[]', space=smem, size = 0x4, offset = 0x4, fixed_abs, tag = 'smem constant byte address 0x4 - core index']
  #allocation1 [shape = 'u32[144,128]{1,0:T(1,128)}', space=vmem, size = 0x12000, scoped, tag = 'internal scratch']
  %s0 = inlined_call_operand.hbm [shape: f32[8,16], index: 0, kind: input, shape index: {}]
  %s1 = inlined_call_operand.hbm [shape: bf16[16,512], index: 1, kind: input, shape index: {}]
  %s2 = inlined_call_operand.hbm [shape: f32[1,512], index: 2, kind: input, shape index: {}]
  %s3 = inlined_call_operand.hbm [shape: bf16[256,256], index: 3, kind: input, shape index: {}]
  %s4 = inlined_call_operand.hbm [shape: f32[1,256], index: 4, kind: input, shape index: {}]
  %s5 = inlined_call_operand.hbm [shape: bf16[256,256], index: 5, kind: input, shape index: {}]
  %s6 = inlined_call_operand.vmem [shape: f32[1,256], index: 6, kind: input, shape index: {}]
  %s7 = inlined_call_operand.hbm [shape: bf16[256,512], index: 7, kind: input, shape index: {}]
  %s8 = inlined_call_operand.vmem [shape: f32[1,512], index: 8, kind: input, shape index: {}]
  %s9 = inlined_call_operand.hbm [shape: bf16[256,512], index: 9, kind: input, shape index: {}]
  %s10 = inlined_call_operand.vmem [shape: f32[1,512], index: 10, kind: input, shape index: {}]
  %s11 = inlined_call_operand.hbm [shape: bf16[256,256], index: 11, kind: input, shape index: {}]
  %s12 = inlined_call_operand.vmem [shape: f32[1,256], index: 12, kind: input, shape index: {}]
  %s13 = inlined_call_operand.hbm [shape: bf16[256,256], index: 13, kind: input, shape index: {}]
  %s14 = inlined_call_operand.vmem [shape: f32[1,256], index: 14, kind: input, shape index: {}]
  %s15 = inlined_call_operand.hbm [shape: bf16[256,256], index: 15, kind: input, shape index: {}]
  %s16 = inlined_call_operand.vmem [shape: f32[1,256], index: 16, kind: input, shape index: {}]
  %s17 = inlined_call_operand.hbm [shape: bf16[256,256], index: 17, kind: input, shape index: {}]
  %s18 = inlined_call_operand.vmem [shape: f32[1,256], index: 18, kind: input, shape index: {}]
  %s19 = inlined_call_operand.hbm [shape: bf16[256,128], index: 19, kind: input, shape index: {}]
  %s20 = inlined_call_operand.hbm [shape: bf16[256,128], index: 20, kind: input, shape index: {}]
  %s21 = inlined_call_operand.hbm [shape: bf16[256,128], index: 21, kind: input, shape index: {}]
  %s22 = inlined_call_operand.hbm [shape: bf16[256,128], index: 22, kind: input, shape index: {}]
  %s23 = inlined_call_operand.vmem [shape: f32[1,128], index: 23, kind: input, shape index: {}]
  %s24 = inlined_call_operand.hbm [shape: f32[8,128], index: 24, kind: output, shape index: {}]
  %s25 = sld [smem:[#allocation0]]
  $region170: #{tpu_custom_call.1} parent=0
    _
  %s27 = ssub.s32 1, %s25
  %s28 = scalar_select 0, %s27, %s25
  $region1: #{tpu_custom_call.1} parent=0
    #allocation2 [shape = 'u8[4096]{0}', space=vmem, size = 0x1000, scoped, tag = 'input window, operand 0, single buffered']
    #allocation3 [shape = 's32[1]{0}', space=sflag, size = 0x4, scoped, tag = 'scoped memory for tpu_custom_call.1']
    #allocation4 [shape = 's32[1]{0}', space=sflag, size = 0x4, scoped, tag = 'scoped memory for tpu_custom_call.1']
    #allocation5 [shape = 'u8[16384]{0}', space=vmem, size = 0x4000, scoped, tag = 'input window, operand 1, single buffered']
    #allocation6 [shape = 's32[1]{0}', space=sflag, size = 0x4, scoped, tag = 'scoped memory for tpu_custom_call.1']
    #allocation7 [shape = 'u8[2048]{0}', space=vmem, size = 0x800, scoped, tag = 'input window, operand 2, single buffered']
    #allocation8 [shape = 'u8[131072]{0}', space=vmem, size = 0x20000, scoped, tag = 'input window, operand 3, single buffered']
    #allocation9 [shape = 's32[1]{0}', space=sflag, size = 0x4, scoped, tag = 'scoped memory for tpu_custom_call.1']
    #allocation10 [shape = 'u8[1024]{0}', space=vmem, size = 0x400, scoped, tag = 'input window, operand 4, single buffered']
    #allocation11 [shape = 'u8[131072]{0}', space=vmem, size = 0x20000, scoped, tag = 'input window, operand 5, single buffered']
    #allocation12 [shape = 's32[1]{0}', space=sflag, size = 0x4, scoped, tag = 'scoped memory for tpu_custom_call.1']
    #allocation13 [shape = 'u8[262144]{0}', space=vmem, size = 0x40000, scoped, tag = 'input window, operand 7, single buffered']
    #allocation14 [shape = 'u8[262144]{0}', space=vmem, size = 0x40000, scoped, tag = 'input window, operand 9, single buffered']
    #allocation15 [shape = 's32[1]{0}', space=sflag, size = 0x4, scoped, tag = 'scoped memory for tpu_custom_call.1']
    #allocation16 [shape = 'u8[131072]{0}', space=vmem, size = 0x20000, scoped, tag = 'input window, operand 11, single buffered']
    #allocation17 [shape = 'u8[131072]{0}', space=vmem, size = 0x20000, scoped, tag = 'input window, operand 13, single buffered']
    #allocation18 [shape = 's32[1]{0}', space=sflag, size = 0x4, scoped, tag = 'scoped memory for tpu_custom_call.1']
    #allocation19 [shape = 'u8[131072]{0}', space=vmem, size = 0x20000, scoped, tag = 'input window, operand 15, single buffered']
    #allocation20 [shape = 'u8[131072]{0}', space=vmem, size = 0x20000, scoped, tag = 'input window, operand 17, single buffered']
    #allocation21 [shape = 's32[1]{0}', space=sflag, size = 0x4, scoped, tag = 'scoped memory for tpu_custom_call.1']
    #allocation22 [shape = 'u8[65536]{0}', space=vmem, size = 0x10000, scoped, tag = 'input window, operand 19, single buffered']
    #allocation23 [shape = 'u8[65536]{0}', space=vmem, size = 0x10000, scoped, tag = 'input window, operand 20, single buffered']
    #allocation24 [shape = 's32[1]{0}', space=sflag, size = 0x4, scoped, tag = 'scoped memory for tpu_custom_call.1']
    #allocation25 [shape = 'u8[65536]{0}', space=vmem, size = 0x10000, scoped, tag = 'input window, operand 21, single buffered']
    #allocation26 [shape = 'u8[65536]{0}', space=vmem, size = 0x10000, scoped, tag = 'input window, operand 22, single buffered']
    #allocation27 [shape = 's32[1]{0}', space=sflag, size = 0x4, scoped, tag = 'scoped memory for tpu_custom_call.1']
    #allocation28 [shape = 'u8[4096]{0}', space=vmem, size = 0x1000, scoped, tag = 'output window, operand 0, single buffered']
    %29 = vsyncpa [#allocation3], 0
    %30 = vsyncpa [#allocation6], 0
    %31 = vsyncpa [#allocation9], 0
    %32 = vsyncpa [#allocation12], 0
    %33 = vsyncpa [#allocation15], 0
    %34 = vsyncpa [#allocation18], 0
    %35 = vsyncpa [#allocation21], 0
    %36 = vsyncpa [#allocation24], 0
    %37 = vsyncpa [#allocation27], 0
    %38 = vsyncpa [#allocation4], 0
    // Predicated region
    $region2: #{tpu_custom_call.1} parent=1 // pred_check
      _
    $region3: #{tpu_custom_call.1} parent=1 // pred_check_branch
      %40 = sbr.rel (0) target = $region5
    $region4: #{tpu_custom_call.1} parent=1 // pred_region
      %s42 = ssub.s32 128, 128
      %43 = vsyncadd [#allocation3], %s42
      %s45 = sshll.u32 [#allocation2], 4
      %s46 = int_to_ptr.vmem [resolvable:$true] %s45
      %48 = dma.hbm_to_vmem [thread:$0]  %s0, 128, %s46, [#allocation3]
    $region5: #{tpu_custom_call.1} parent=1 // pred_fallthru
      _
    // Predicated region
    $region6: #{tpu_custom_call.1} parent=1 // pred_check
      _
    $region7: #{tpu_custom_call.1} parent=1 // pred_check_branch
      %50 = sbr.rel (0) target = $region9
    $region8: #{tpu_custom_call.1} parent=1 // pred_region
      %s52 = ssub.s32 512, 512
      %53 = vsyncadd [#allocation6], %s52
      %s54 = sshll.u32 [#allocation5], 4
      %s55 = int_to_ptr.vmem [resolvable:$true] %s54
      %60 = dma.hbm_to_vmem [thread:$0]  %s1, 512, %s55, [#allocation6], 256, 256, 16
    $region9: #{tpu_custom_call.1} parent=1 // pred_fallthru
      _
    // Predicated region
    $region10: #{tpu_custom_call.1} parent=1 // pred_check
      _
    $region11: #{tpu_custom_call.1} parent=1 // pred_check_branch
      %62 = sbr.rel (0) target = $region13
    $region12: #{tpu_custom_call.1} parent=1 // pred_region
      %s64 = ssub.s32 64, 64
      %65 = vsyncadd [#allocation6], %s64
      %s67 = sshll.u32 [#allocation7], 4
      %s68 = int_to_ptr.vmem [resolvable:$true] %s67
      %70 = dma.hbm_to_vmem [thread:$0]  %s2, 64, %s68, [#allocation6]
    $region13: #{tpu_custom_call.1} parent=1 // pred_fallthru
      _
    // Predicated region
    $region14: #{tpu_custom_call.1} parent=1 // pred_check
      _
    $region15: #{tpu_custom_call.1} parent=1 // pred_check_branch
      %72 = sbr.rel (0) target = $region17
    $region16: #{tpu_custom_call.1} parent=1 // pred_region
      %s74 = ssub.s32 4096, 4096
      %75 = vsyncadd [#allocation9], %s74
      %s76 = sshll.u32 [#allocation8], 4
      %s77 = int_to_ptr.vmem [resolvable:$true] %s76
      %82 = dma.hbm_to_vmem [thread:$0]  %s3, 4096, %s77, [#allocation9], 128, 128, 8
    $region17: #{tpu_custom_call.1} parent=1 // pred_fallthru
      _
    // Predicated region
    $region18: #{tpu_custom_call.1} parent=1 // pred_check
      _
    $region19: #{tpu_custom_call.1} parent=1 // pred_check_branch
      %84 = sbr.rel (0) target = $region21
    $region20: #{tpu_custom_call.1} parent=1 // pred_region
      %s86 = ssub.s32 32, 32
      %87 = vsyncadd [#allocation9], %s86
      %s89 = sshll.u32 [#allocation10], 4
      %s90 = int_to_ptr.vmem [resolvable:$true] %s89
      %92 = dma.hbm_to_vmem [thread:$0]  %s4, 32, %s90, [#allocation9]
    $region21: #{tpu_custom_call.1} parent=1 // pred_fallthru
      _
    // Predicated region
    $region22: #{tpu_custom_call.1} parent=1 // pred_check
      _
    $region23: #{tpu_custom_call.1} parent=1 // pred_check_branch
      %94 = sbr.rel (0) target = $region25
    $region24: #{tpu_custom_call.1} parent=1 // pred_region
      %s96 = ssub.s32 4096, 4096
      %97 = vsyncadd [#allocation12], %s96
      %s98 = sshll.u32 [#allocation11], 4
      %s99 = int_to_ptr.vmem [resolvable:$true] %s98
      %104 = dma.hbm_to_vmem [thread:$0]  %s5, 4096, %s99, [#allocation12], 128, 128, 8
    $region25: #{tpu_custom_call.1} parent=1 // pred_fallthru
      _
    // Predicated region
    $region26: #{tpu_custom_call.1} parent=1 // pred_check
      _
    $region27: #{tpu_custom_call.1} parent=1 // pred_check_branch
      %106 = sbr.rel (0) target = $region29
    $region28: #{tpu_custom_call.1} parent=1 // pred_region
      _
    $region29: #{tpu_custom_call.1} parent=1 // pred_fallthru
      _
    // Predicated region
    $region30: #{tpu_custom_call.1} parent=1 // pred_check
      _
    $region31: #{tpu_custom_call.1} parent=1 // pred_check_branch
      %108 = sbr.rel (0) target = $region33
    $region32: #{tpu_custom_call.1} parent=1 // pred_region
      %s110 = ssub.s32 8192, 8192
      %111 = vsyncadd [#allocation12], %s110
      %s112 = sshll.u32 [#allocation13], 4
      %s113 = int_to_ptr.vmem [resolvable:$true] %s112
      %118 = dma.hbm_to_vmem [thread:$0]  %s7, 8192, %s113, [#allocation12], 256, 256, 16
    $region33: #{tpu_custom_call.1} parent=1 // pred_fallthru
      _
    // Predicated region
    $region34: #{tpu_custom_call.1} parent=1 // pred_check
      _
    $region35: #{tpu_custom_call.1} parent=1 // pred_check_branch
      %120 = sbr.rel (0) target = $region37
    $region36: #{tpu_custom_call.1} parent=1 // pred_region
      _
    $region37: #{tpu_custom_call.1} parent=1 // pred_fallthru
      _
    // Predicated region
    $region38: #{tpu_custom_call.1} parent=1 // pred_check
      _
    $region39: #{tpu_custom_call.1} parent=1 // pred_check_branch
      %122 = sbr.rel (0) target = $region41
    $region40: #{tpu_custom_call.1} parent=1 // pred_region
      %s124 = ssub.s32 8192, 8192
      %125 = vsyncadd [#allocation15], %s124
      %s126 = sshll.u32 [#allocation14], 4
      %s127 = int_to_ptr.vmem [resolvable:$true] %s126
      %132 = dma.hbm_to_vmem [thread:$0]  %s9, 8192, %s127, [#allocation15], 256, 256, 16
    $region41: #{tpu_custom_call.1} parent=1 // pred_fallthru
      _
    // Predicated region
    $region42: #{tpu_custom_call.1} parent=1 // pred_check
      _
    $region43: #{tpu_custom_call.1} parent=1 // pred_check_branch
      %134 = sbr.rel (0) target = $region45
    $region44: #{tpu_custom_call.1} parent=1 // pred_region
      _
    $region45: #{tpu_custom_call.1} parent=1 // pred_fallthru
      _
    // Predicated region
    $region46: #{tpu_custom_call.1} parent=1 // pred_check
      _
    $region47: #{tpu_custom_call.1} parent=1 // pred_check_branch
      %136 = sbr.rel (0) target = $region49
    $region48: #{tpu_custom_call.1} parent=1 // pred_region
      %s138 = ssub.s32 4096, 4096
      %139 = vsyncadd [#allocation15], %s138
      %s140 = sshll.u32 [#allocation16], 4
      %s141 = int_to_ptr.vmem [resolvable:$true] %s140
      %146 = dma.hbm_to_vmem [thread:$0]  %s11, 4096, %s141, [#allocation15], 128, 128, 8
    $region49: #{tpu_custom_call.1} parent=1 // pred_fallthru
      _
    // Predicated region
    $region50: #{tpu_custom_call.1} parent=1 // pred_check
      _
    $region51: #{tpu_custom_call.1} parent=1 // pred_check_branch
      %148 = sbr.rel (0) target = $region53
    $region52: #{tpu_custom_call.1} parent=1 // pred_region
      _
    $region53: #{tpu_custom_call.1} parent=1 // pred_fallthru
      _
    // Predicated region
    $region54: #{tpu_custom_call.1} parent=1 // pred_check
      _
    $region55: #{tpu_custom_call.1} parent=1 // pred_check_branch
      %150 = sbr.rel (0) target = $region57
    $region56: #{tpu_custom_call.1} parent=1 // pred_region
      %s152 = ssub.s32 4096, 4096
      %153 = vsyncadd [#allocation18], %s152
      %s154 = sshll.u32 [#allocation17], 4
      %s155 = int_to_ptr.vmem [resolvable:$true] %s154
      %160 = dma.hbm_to_vmem [thread:$0]  %s13, 4096, %s155, [#allocation18], 128, 128, 8
    $region57: #{tpu_custom_call.1} parent=1 // pred_fallthru
      _
    // Predicated region
    $region58: #{tpu_custom_call.1} parent=1 // pred_check
      _
    $region59: #{tpu_custom_call.1} parent=1 // pred_check_branch
      %162 = sbr.rel (0) target = $region61
    $region60: #{tpu_custom_call.1} parent=1 // pred_region
      _
    $region61: #{tpu_custom_call.1} parent=1 // pred_fallthru
      _
    // Predicated region
    $region62: #{tpu_custom_call.1} parent=1 // pred_check
      _
    $region63: #{tpu_custom_call.1} parent=1 // pred_check_branch
      %164 = sbr.rel (0) target = $region65
    $region64: #{tpu_custom_call.1} parent=1 // pred_region
      %s166 = ssub.s32 4096, 4096
      %167 = vsyncadd [#allocation18], %s166
      %s168 = sshll.u32 [#allocation19], 4
      %s169 = int_to_ptr.vmem [resolvable:$true] %s168
      %174 = dma.hbm_to_vmem [thread:$0]  %s15, 4096, %s169, [#allocation18], 128, 128, 8
    $region65: #{tpu_custom_call.1} parent=1 // pred_fallthru
      _
    // Predicated region
    $region66: #{tpu_custom_call.1} parent=1 // pred_check
      _
    $region67: #{tpu_custom_call.1} parent=1 // pred_check_branch
      %176 = sbr.rel (0) target = $region69
    $region68: #{tpu_custom_call.1} parent=1 // pred_region
      _
    $region69: #{tpu_custom_call.1} parent=1 // pred_fallthru
      _
    // Predicated region
    $region70: #{tpu_custom_call.1} parent=1 // pred_check
      _
    $region71: #{tpu_custom_call.1} parent=1 // pred_check_branch
      %178 = sbr.rel (0) target = $region73
    $region72: #{tpu_custom_call.1} parent=1 // pred_region
      %s180 = ssub.s32 4096, 4096
      %181 = vsyncadd [#allocation21], %s180
      %s182 = sshll.u32 [#allocation20], 4
      %s183 = int_to_ptr.vmem [resolvable:$true] %s182
      %188 = dma.hbm_to_vmem [thread:$0]  %s17, 4096, %s183, [#allocation21], 128, 128, 8
    $region73: #{tpu_custom_call.1} parent=1 // pred_fallthru
      _
    // Predicated region
    $region74: #{tpu_custom_call.1} parent=1 // pred_check
      _
    $region75: #{tpu_custom_call.1} parent=1 // pred_check_branch
      %190 = sbr.rel (0) target = $region77
    $region76: #{tpu_custom_call.1} parent=1 // pred_region
      _
    $region77: #{tpu_custom_call.1} parent=1 // pred_fallthru
      _
    // Predicated region
    $region78: #{tpu_custom_call.1} parent=1 // pred_check
      _
    $region79: #{tpu_custom_call.1} parent=1 // pred_check_branch
      %192 = sbr.rel (0) target = $region81
    $region80: #{tpu_custom_call.1} parent=1 // pred_region
      %s194 = ssub.s32 2048, 2048
      %195 = vsyncadd [#allocation21], %s194
      %s196 = sshll.u32 [#allocation22], 4
      %s197 = int_to_ptr.vmem [resolvable:$true] %s196
      %202 = dma.hbm_to_vmem [thread:$0]  %s19, 2048, %s197, [#allocation21], 64, 64, 4
    $region81: #{tpu_custom_call.1} parent=1 // pred_fallthru
      _
    // Predicated region
    $region82: #{tpu_custom_call.1} parent=1 // pred_check
      _
    $region83: #{tpu_custom_call.1} parent=1 // pred_check_branch
      %204 = sbr.rel (0) target = $region85
    $region84: #{tpu_custom_call.1} parent=1 // pred_region
      %s206 = ssub.s32 2048, 2048
      %207 = vsyncadd [#allocation24], %s206
      %s208 = sshll.u32 [#allocation23], 4
      %s209 = int_to_ptr.vmem [resolvable:$true] %s208
      %214 = dma.hbm_to_vmem [thread:$0]  %s20, 2048, %s209, [#allocation24], 64, 64, 4
    $region85: #{tpu_custom_call.1} parent=1 // pred_fallthru
      _
    // Predicated region
    $region86: #{tpu_custom_call.1} parent=1 // pred_check
      _
    $region87: #{tpu_custom_call.1} parent=1 // pred_check_branch
      %216 = sbr.rel (0) target = $region89
    $region88: #{tpu_custom_call.1} parent=1 // pred_region
      %s218 = ssub.s32 2048, 2048
      %219 = vsyncadd [#allocation24], %s218
      %s220 = sshll.u32 [#allocation25], 4
      %s221 = int_to_ptr.vmem [resolvable:$true] %s220
      %226 = dma.hbm_to_vmem [thread:$0]  %s21, 2048, %s221, [#allocation24], 64, 64, 4
    $region89: #{tpu_custom_call.1} parent=1 // pred_fallthru
      _
    // Predicated region
    $region90: #{tpu_custom_call.1} parent=1 // pred_check
      _
    $region91: #{tpu_custom_call.1} parent=1 // pred_check_branch
      %228 = sbr.rel (0) target = $region93
    $region92: #{tpu_custom_call.1} parent=1 // pred_region
      %s230 = ssub.s32 2048, 2048
      %231 = vsyncadd [#allocation27], %s230
      %s232 = sshll.u32 [#allocation26], 4
      %s233 = int_to_ptr.vmem [resolvable:$true] %s232
      %238 = dma.hbm_to_vmem [thread:$0]  %s22, 2048, %s233, [#allocation27], 64, 64, 4
    $region93: #{tpu_custom_call.1} parent=1 // pred_fallthru
      _
    // Predicated region
    $region94: #{tpu_custom_call.1} parent=1 // pred_check
      _
    $region95: #{tpu_custom_call.1} parent=1 // pred_check_branch
      %240 = sbr.rel (0) target = $region97
    $region96: #{tpu_custom_call.1} parent=1 // pred_region
      _
    $region97: #{tpu_custom_call.1} parent=1 // pred_fallthru
      _
    // Predicated region
    $region98: #{tpu_custom_call.1} parent=1 // pred_check
      _
    $region99: #{tpu_custom_call.1} parent=1 // pred_check_branch
      %242 = sbr.rel (0) target = $region101
    $region100: #{tpu_custom_call.1} parent=1 // pred_region
      %243 = dma.done [#allocation3], 128
    $region101: #{tpu_custom_call.1} parent=1 // pred_fallthru
      _
    // Predicated region
    $region102: #{tpu_custom_call.1} parent=1 // pred_check
      _
    $region103: #{tpu_custom_call.1} parent=1 // pred_check_branch
      %245 = sbr.rel (0) target = $region105
    $region104: #{tpu_custom_call.1} parent=1 // pred_region
      %246 = dma.done [#allocation6], 512
    $region105: #{tpu_custom_call.1} parent=1 // pred_fallthru
      _
    // Predicated region
    $region106: #{tpu_custom_call.1} parent=1 // pred_check
      _
    $region107: #{tpu_custom_call.1} parent=1 // pred_check_branch
      %248 = sbr.rel (0) target = $region109
    $region108: #{tpu_custom_call.1} parent=1 // pred_region
      %249 = dma.done [#allocation6], 64
    $region109: #{tpu_custom_call.1} parent=1 // pred_fallthru
      _
    // Predicated region
    $region110: #{tpu_custom_call.1} parent=1 // pred_check
      _
    $region111: #{tpu_custom_call.1} parent=1 // pred_check_branch
      %251 = sbr.rel (0) target = $region113
    $region112: #{tpu_custom_call.1} parent=1 // pred_region
      %252 = dma.done [#allocation9], 4096
    $region113: #{tpu_custom_call.1} parent=1 // pred_fallthru
      _
    // Predicated region
    $region114: #{tpu_custom_call.1} parent=1 // pred_check
      _
    $region115: #{tpu_custom_call.1} parent=1 // pred_check_branch
      %254 = sbr.rel (0) target = $region117
    $region116: #{tpu_custom_call.1} parent=1 // pred_region
      %255 = dma.done [#allocation9], 32
    $region117: #{tpu_custom_call.1} parent=1 // pred_fallthru
      _
    // Predicated region
    $region118: #{tpu_custom_call.1} parent=1 // pred_check
      _
    $region119: #{tpu_custom_call.1} parent=1 // pred_check_branch
      %257 = sbr.rel (0) target = $region121
    $region120: #{tpu_custom_call.1} parent=1 // pred_region
      %258 = dma.done [#allocation12], 4096
    $region121: #{tpu_custom_call.1} parent=1 // pred_fallthru
      _
    // Predicated region
    $region122: #{tpu_custom_call.1} parent=1 // pred_check
      _
    $region123: #{tpu_custom_call.1} parent=1 // pred_check_branch
      %260 = sbr.rel (0) target = $region125
    $region124: #{tpu_custom_call.1} parent=1 // pred_region
      %261 = dma.done [#allocation12], 8192
    $region125: #{tpu_custom_call.1} parent=1 // pred_fallthru
      _
    // Predicated region
    $region126: #{tpu_custom_call.1} parent=1 // pred_check
      _
    $region127: #{tpu_custom_call.1} parent=1 // pred_check_branch
      %263 = sbr.rel (0) target = $region129
    $region128: #{tpu_custom_call.1} parent=1 // pred_region
      %264 = dma.done [#allocation15], 8192
    $region129: #{tpu_custom_call.1} parent=1 // pred_fallthru
      _
    // Predicated region
    $region130: #{tpu_custom_call.1} parent=1 // pred_check
      _
    $region131: #{tpu_custom_call.1} parent=1 // pred_check_branch
      %266 = sbr.rel (0) target = $region133
    $region132: #{tpu_custom_call.1} parent=1 // pred_region
      %267 = dma.done [#allocation15], 4096
    $region133: #{tpu_custom_call.1} parent=1 // pred_fallthru
      _
    // Predicated region
    $region134: #{tpu_custom_call.1} parent=1 // pred_check
      _
    $region135: #{tpu_custom_call.1} parent=1 // pred_check_branch
      %269 = sbr.rel (0) target = $region137
    $region136: #{tpu_custom_call.1} parent=1 // pred_region
      %270 = dma.done [#allocation18], 4096
    $region137: #{tpu_custom_call.1} parent=1 // pred_fallthru
      _
    // Predicated region
    $region138: #{tpu_custom_call.1} parent=1 // pred_check
      _
    $region139: #{tpu_custom_call.1} parent=1 // pred_check_branch
      %272 = sbr.rel (0) target = $region141
    $region140: #{tpu_custom_call.1} parent=1 // pred_region
      %273 = dma.done [#allocation18], 4096
    $region141: #{tpu_custom_call.1} parent=1 // pred_fallthru
      _
    // Predicated region
    $region142: #{tpu_custom_call.1} parent=1 // pred_check
      _
    $region143: #{tpu_custom_call.1} parent=1 // pred_check_branch
      %275 = sbr.rel (0) target = $region145
    $region144: #{tpu_custom_call.1} parent=1 // pred_region
      %276 = dma.done [#allocation21], 4096
    $region145: #{tpu_custom_call.1} parent=1 // pred_fallthru
      _
    // Predicated region
    $region146: #{tpu_custom_call.1} parent=1 // pred_check
      _
    $region147: #{tpu_custom_call.1} parent=1 // pred_check_branch
      %278 = sbr.rel (0) target = $region149
    $region148: #{tpu_custom_call.1} parent=1 // pred_region
      %279 = dma.done [#allocation21], 2048
    $region149: #{tpu_custom_call.1} parent=1 // pred_fallthru
      _
    // Predicated region
    $region150: #{tpu_custom_call.1} parent=1 // pred_check
      _
    $region151: #{tpu_custom_call.1} parent=1 // pred_check_branch
      %281 = sbr.rel (0) target = $region153
    $region152: #{tpu_custom_call.1} parent=1 // pred_region
      %282 = dma.done [#allocation24], 2048
    $region153: #{tpu_custom_call.1} parent=1 // pred_fallthru
      _
    // Predicated region
    $region154: #{tpu_custom_call.1} parent=1 // pred_check
      _
    $region155: #{tpu_custom_call.1} parent=1 // pred_check_branch
      %284 = sbr.rel (0) target = $region157
    $region156: #{tpu_custom_call.1} parent=1 // pred_region
      %285 = dma.done [#allocation24], 2048
    $region157: #{tpu_custom_call.1} parent=1 // pred_fallthru
      _
    // Predicated region
    $region158: #{tpu_custom_call.1} parent=1 // pred_check
      _
    $region159: #{tpu_custom_call.1} parent=1 // pred_check_branch
      %287 = sbr.rel (0) target = $region161
    $region160: #{tpu_custom_call.1} parent=1 // pred_region
      %288 = dma.done [#allocation27], 2048
    $region161: #{tpu_custom_call.1} parent=1 // pred_fallthru
      _
    %v290 = vld [vmem:[#allocation2] sm:$0xff]
    %v291 = vpack.c.bf16 %v290, %v290
    %v292 = vld [vmem:[#allocation5] sm:$0xff]
    %v293 = vld [vmem:[#allocation5 + $0x8] sm:$0xff]
    %v294 = vld [vmem:[#allocation5 + $0x10] sm:$0xff]
    %v295 = vld [vmem:[#allocation5 + $0x18] sm:$0xff]
    %v296 = vld [vmem:[#allocation7] sm:$0xf]
    %v298 = vlaneseq
    %v299 = vshrl.u32 %v298, 7
    %v300 = vsub.s32 0, %v299
    %v301 = vrot.slane %v296, %v300
    %v302 = vlaneseq
    %v303 = vshrl.u32 %v302, 7
    %v304 = vsub.s32 1, %v303
    %v305 = vrot.slane %v296, %v304
    %v306 = vlaneseq
    %v307 = vshrl.u32 %v306, 7
    %v308 = vsub.s32 2, %v307
    %v309 = vrot.slane %v296, %v308
    %v310 = vlaneseq
    %v311 = vshrl.u32 %v310, 7
    %v312 = vsub.s32 3, %v311
    %v313 = vrot.slane %v296, %v312
    %v322 = vunpack.c.l.b16 %v292
    %v323 = vunpack.c.h.b16 %v292
    %v324 = vunpack.c.l.b16 %v293
    %v325 = vunpack.c.h.b16 %v293
    %v326 = vunpack.c.l.b16 %v294
    %v327 = vunpack.c.h.b16 %v294
    %v328 = vunpack.c.l.b16 %v295
    %v329 = vunpack.c.h.b16 %v295
    %v330 = vpack.c.b16 %v326, %v322
    %v331 = vpack.c.b16 %v327, %v323
    %v332 = vpack.c.b16 %v328, %v324
    %v333 = vpack.c.b16 %v329, %v325
    %vm338 = vcmask 130048
    %v340 = vsel %vm338, %v291, 0
    %342 = vmatprep.subr.bf16.mxu0 0
    %343 = vmatpush1.bf16.msra.mxu0 0
    %344 = vmatprep.subr.bf16.mxu0 0
    %345 = vmatpush1.bf16.msra.mxu0 0
    %346 = vmatprep.subr.bf16.mxu0 0
    %347 = vmatpush1.bf16.msra.mxu0 0
    %348 = vmatprep.subr.bf16.mxu0 0
    %349 = vmatpush1.bf16.msra.mxu0 0
    %350 = vmatprep.subr.bf16.mxu0 0
    %351 = vmatpush1.bf16.msra.mxu0 0
    %352 = vmatprep.subr.bf16.mxu0 0
    %353 = vmatpush1.bf16.msra.mxu0 0
    %354 = vmatprep.subr.bf16.mxu0 0
    %355 = vmatpush1.bf16.msra.mxu0 0
    %356 = vmatprep.subr.bf16.mxu0 %v331
    %357 = vmatpush1.bf16.msra.mxu0 %v330
    %358 = vmatprep.subr.bf16.mxu0 0
    %359 = vmatpush2.bf16.msra.mxu0 0
    %360 = vmatprep.subr.bf16.mxu0 0
    %361 = vmatpush2.bf16.msra.mxu0 0
    %362 = vmatprep.subr.bf16.mxu0 0
    %363 = vmatpush2.bf16.msra.mxu0 0
    %364 = vmatprep.subr.bf16.mxu0 0
    %365 = vmatpush2.bf16.msra.mxu0 0
    %366 = vmatprep.subr.bf16.mxu0 0
    %367 = vmatpush2.bf16.msra.mxu0 0
    %368 = vmatprep.subr.bf16.mxu0 0
    %369 = vmatpush2.bf16.msra.mxu0 0
    %370 = vmatprep.subr.bf16.mxu0 0
    %371 = vmatpush2.bf16.msra.mxu0 0
    %372 = vmatprep.subr.bf16.mxu0 0
    %373 = vmatpush2.bf16.msra.mxu0 0
    %374 = vmatprep.mubr.bf16.mxu0 0
    %375 = vmatmul.mubr.bf16.gmra.mxu0 %v340
    %v376 = vpop.f32.mrf.mxu0
    %v377 = vadd.f32 %v301, %v376
    %v378 = vpop.f32.mrf.mxu0
    %v379 = vadd.f32 %v305, %v378
    %v380 = vpop.f32.mrf.mxu0
    %v381 = vpop.f32.mrf.mxu0
    %382 = vdwg.mxu0
    %383 = vmatprep.subr.bf16.mxu0 0
    %384 = vmatpush1.bf16.msra.mxu0 0
    %385 = vmatprep.subr.bf16.mxu0 0
    %386 = vmatpush1.bf16.msra.mxu0 0
    %387 = vmatprep.subr.bf16.mxu0 0
    %388 = vmatpush1.bf16.msra.mxu0 0
    %389 = vmatprep.subr.bf16.mxu0 0
    %390 = vmatpush1.bf16.msra.mxu0 0
    %391 = vmatprep.subr.bf16.mxu0 0
    %392 = vmatpush1.bf16.msra.mxu0 0
    %393 = vmatprep.subr.bf16.mxu0 0
    %394 = vmatpush1.bf16.msra.mxu0 0
    %395 = vmatprep.subr.bf16.mxu0 0
    %396 = vmatpush1.bf16.msra.mxu0 0
    %397 = vmatprep.subr.bf16.mxu0 %v333
    %398 = vmatpush1.bf16.msra.mxu0 %v332
    %399 = vmatprep.subr.bf16.mxu0 0
    %400 = vmatpush2.bf16.msra.mxu0 0
    %401 = vmatprep.subr.bf16.mxu0 0
    %402 = vmatpush2.bf16.msra.mxu0 0
    %403 = vmatprep.subr.bf16.mxu0 0
    %404 = vmatpush2.bf16.msra.mxu0 0
    %405 = vmatprep.subr.bf16.mxu0 0
    %406 = vmatpush2.bf16.msra.mxu0 0
    %407 = vmatprep.subr.bf16.mxu0 0
    %408 = vmatpush2.bf16.msra.mxu0 0
    %409 = vmatprep.subr.bf16.mxu0 0
    %410 = vmatpush2.bf16.msra.mxu0 0
    %411 = vmatprep.subr.bf16.mxu0 0
    %412 = vmatpush2.bf16.msra.mxu0 0
    %413 = vmatprep.subr.bf16.mxu0 0
    %414 = vmatpush2.bf16.msra.mxu0 0
    %415 = vmatprep.mubr.bf16.mxu0 0
    %416 = vmatmul.mubr.bf16.gmra.mxu0 %v340
    %v417 = vpop.f32.mrf.mxu0
    %v418 = vadd.f32 %v309, %v417
    %v419 = vpop.f32.mrf.mxu0
    %v420 = vadd.f32 %v313, %v419
    %v421 = vpop.f32.mrf.mxu0
    %v422 = vpop.f32.mrf.mxu0
    %423 = vdwg.mxu0
    %v424 = vmax.f32 %v377, 0.0
    %v425 = vmax.f32 %v379, 0.0
    %v426 = vmax.f32 %v418, 0.0
    %v427 = vmax.f32 %v420, 0.0
    %v428 = vpack.c.bf16 %v424, %v424
    %v429 = vpack.c.bf16 %v425, %v425
    %v430 = vpack.c.bf16 %v426, %v426
    %v431 = vpack.c.bf16 %v427, %v427
    %v432 = vld [vmem:[#allocation8] sm:$0xff]
    %v433 = vld [vmem:[#allocation8 + $0x8] sm:$0xff]
    %v434 = vld [vmem:[#allocation8 + $0x10] sm:$0xff]
    %v435 = vld [vmem:[#allocation8 + $0x18] sm:$0xff]
    %v436 = vld [vmem:[#allocation8 + $0x20] sm:$0xff]
    %v437 = vld [vmem:[#allocation8 + $0x28] sm:$0xff]
    %v438 = vld [vmem:[#allocation8 + $0x30] sm:$0xff]
    %v439 = vld [vmem:[#allocation8 + $0x38] sm:$0xff]
    %v440 = vld [vmem:[#allocation8 + $0x40] sm:$0xff]
    %v441 = vld [vmem:[#allocation8 + $0x48] sm:$0xff]
    %v442 = vld [vmem:[#allocation8 + $0x50] sm:$0xff]
    %v443 = vld [vmem:[#allocation8 + $0x58] sm:$0xff]
    %v444 = vld [vmem:[#allocation8 + $0x60] sm:$0xff]
    %v445 = vld [vmem:[#allocation8 + $0x68] sm:$0xff]
    %v446 = vld [vmem:[#allocation8 + $0x70] sm:$0xff]
    %v447 = vld [vmem:[#allocation8 + $0x78] sm:$0xff]
    %v448 = vld [vmem:[#allocation8 + $0x80] sm:$0xff]
    %v449 = vld [vmem:[#allocation8 + $0x88] sm:$0xff]
    %v450 = vld [vmem:[#allocation8 + $0x90] sm:$0xff]
    %v451 = vld [vmem:[#allocation8 + $0x98] sm:$0xff]
    %v452 = vld [vmem:[#allocation8 + $0xa0] sm:$0xff]
    %v453 = vld [vmem:[#allocation8 + $0xa8] sm:$0xff]
    %v454 = vld [vmem:[#allocation8 + $0xb0] sm:$0xff]
    %v455 = vld [vmem:[#allocation8 + $0xb8] sm:$0xff]
    %v456 = vld [vmem:[#allocation8 + $0xc0] sm:$0xff]
    %v457 = vld [vmem:[#allocation8 + $0xc8] sm:$0xff]
    %v458 = vld [vmem:[#allocation8 + $0xd0] sm:$0xff]
    %v459 = vld [vmem:[#allocation8 + $0xd8] sm:$0xff]
    %v460 = vld [vmem:[#allocation8 + $0xe0] sm:$0xff]
    %v461 = vld [vmem:[#allocation8 + $0xe8] sm:$0xff]
    %v462 = vld [vmem:[#allocation8 + $0xf0] sm:$0xff]
    %v463 = vld [vmem:[#allocation8 + $0xf8] sm:$0xff]
    %v464 = vld [vmem:[#allocation10] sm:$0x3]
    %v466 = vlaneseq
    %v467 = vshrl.u32 %v466, 7
    %v468 = vsub.s32 0, %v467
    %v469 = vrot.slane %v464, %v468
    %v470 = vlaneseq
    %v471 = vshrl.u32 %v470, 7
    %v472 = vsub.s32 1, %v471
    %v473 = vrot.slane %v464, %v472
    %v508 = vunpack.c.l.b16 %v432
    %v509 = vunpack.c.h.b16 %v432
    %v510 = vunpack.c.l.b16 %v433
    %v511 = vunpack.c.h.b16 %v433
    %v512 = vunpack.c.l.b16 %v434
    %v513 = vunpack.c.h.b16 %v434
    %v514 = vunpack.c.l.b16 %v435
    %v515 = vunpack.c.h.b16 %v435
    %v516 = vunpack.c.l.b16 %v436
    %v517 = vunpack.c.h.b16 %v436
    %v518 = vunpack.c.l.b16 %v437
    %v519 = vunpack.c.h.b16 %v437
    %v520 = vunpack.c.l.b16 %v438
    %v521 = vunpack.c.h.b16 %v438
    %v522 = vunpack.c.l.b16 %v439
    %v523 = vunpack.c.h.b16 %v439
    %v524 = vunpack.c.l.b16 %v440
    %v525 = vunpack.c.h.b16 %v440
    %v526 = vunpack.c.l.b16 %v441
    %v527 = vunpack.c.h.b16 %v441
    %v528 = vunpack.c.l.b16 %v442
    %v529 = vunpack.c.h.b16 %v442
    %v530 = vunpack.c.l.b16 %v443
    %v531 = vunpack.c.h.b16 %v443
    %v532 = vunpack.c.l.b16 %v444
    %v533 = vunpack.c.h.b16 %v444
    %v534 = vunpack.c.l.b16 %v445
    %v535 = vunpack.c.h.b16 %v445
    %v536 = vunpack.c.l.b16 %v446
    %v537 = vunpack.c.h.b16 %v446
    %v538 = vunpack.c.l.b16 %v447
    %v539 = vunpack.c.h.b16 %v447
    %v540 = vunpack.c.l.b16 %v448
    %v541 = vunpack.c.h.b16 %v448
    %v542 = vunpack.c.l.b16 %v449
    %v543 = vunpack.c.h.b16 %v449
    %v544 = vunpack.c.l.b16 %v450
    %v545 = vunpack.c.h.b16 %v450
    %v546 = vunpack.c.l.b16 %v451
    %v547 = vunpack.c.h.b16 %v451
    %v548 = vunpack.c.l.b16 %v452
    %v549 = vunpack.c.h.b16 %v452
    %v550 = vunpack.c.l.b16 %v453
    %v551 = vunpack.c.h.b16 %v453
    %v552 = vunpack.c.l.b16 %v454
    %v553 = vunpack.c.h.b16 %v454
    %v554 = vunpack.c.l.b16 %v455
    %v555 = vunpack.c.h.b16 %v455
    %v556 = vunpack.c.l.b16 %v456
    %v557 = vunpack.c.h.b16 %v456
    %v558 = vunpack.c.l.b16 %v457
    %v559 = vunpack.c.h.b16 %v457
    %v560 = vunpack.c.l.b16 %v458
    %v561 = vunpack.c.h.b16 %v458
    %v562 = vunpack.c.l.b16 %v459
    %v563 = vunpack.c.h.b16 %v459
    %v564 = vunpack.c.l.b16 %v460
    %v565 = vunpack.c.h.b16 %v460
    %v566 = vunpack.c.l.b16 %v461
    %v567 = vunpack.c.h.b16 %v461
    %v568 = vunpack.c.l.b16 %v462
    %v569 = vunpack.c.h.b16 %v462
    %v570 = vunpack.c.l.b16 %v463
    %v571 = vunpack.c.h.b16 %v463
    %v572 = vpack.c.b16 %v510, %v508
    %v573 = vpack.c.b16 %v511, %v509
    %v574 = vpack.c.b16 %v514, %v512
    %v575 = vpack.c.b16 %v515, %v513
    %v576 = vpack.c.b16 %v518, %v516
    %v577 = vpack.c.b16 %v519, %v517
    %v578 = vpack.c.b16 %v522, %v520
    %v579 = vpack.c.b16 %v523, %v521
    %v580 = vpack.c.b16 %v526, %v524
    %v581 = vpack.c.b16 %v527, %v525
    %v582 = vpack.c.b16 %v530, %v528
    %v583 = vpack.c.b16 %v531, %v529
    %v584 = vpack.c.b16 %v534, %v532
    %v585 = vpack.c.b16 %v535, %v533
    %v586 = vpack.c.b16 %v538, %v536
    %v587 = vpack.c.b16 %v539, %v537
    %v588 = vpack.c.b16 %v542, %v540
    %v589 = vpack.c.b16 %v543, %v541
    %v590 = vpack.c.b16 %v546, %v544
    %v591 = vpack.c.b16 %v547, %v545
    %v592 = vpack.c.b16 %v550, %v548
    %v593 = vpack.c.b16 %v551, %v549
    %v594 = vpack.c.b16 %v554, %v552
    %v595 = vpack.c.b16 %v555, %v553
    %v596 = vpack.c.b16 %v558, %v556
    %v597 = vpack.c.b16 %v559, %v557
    %v598 = vpack.c.b16 %v562, %v560
    %v599 = vpack.c.b16 %v563, %v561
    %v600 = vpack.c.b16 %v566, %v564
    %v601 = vpack.c.b16 %v567, %v565
    %v602 = vpack.c.b16 %v570, %v568
    %v603 = vpack.c.b16 %v571, %v569
    %636 = vmatprep.subr.bf16.mxu0 %v587
    %637 = vmatpush1.bf16.msra.mxu0 %v586
    %638 = vmatprep.subr.bf16.mxu0 %v585
    %639 = vmatpush1.bf16.msra.mxu0 %v584
    %640 = vmatprep.subr.bf16.mxu0 %v583
    %641 = vmatpush1.bf16.msra.mxu0 %v582
    %642 = vmatprep.subr.bf16.mxu0 %v581
    %643 = vmatpush1.bf16.msra.mxu0 %v580
    %644 = vmatprep.subr.bf16.mxu0 %v579
    %645 = vmatpush1.bf16.msra.mxu0 %v578
    %646 = vmatprep.subr.bf16.mxu0 %v577
    %647 = vmatpush1.bf16.msra.mxu0 %v576
    %648 = vmatprep.subr.bf16.mxu0 %v575
    %649 = vmatpush1.bf16.msra.mxu0 %v574
    %650 = vmatprep.subr.bf16.mxu0 %v573
    %651 = vmatpush1.bf16.msra.mxu0 %v572
    %652 = vmatprep.subr.bf16.mxu0 %v603
    %653 = vmatpush2.bf16.msra.mxu0 %v602
    %654 = vmatprep.subr.bf16.mxu0 %v601
    %655 = vmatpush2.bf16.msra.mxu0 %v600
    %656 = vmatprep.subr.bf16.mxu0 %v599
    %657 = vmatpush2.bf16.msra.mxu0 %v598
    %658 = vmatprep.subr.bf16.mxu0 %v597
    %659 = vmatpush2.bf16.msra.mxu0 %v596
    %660 = vmatprep.subr.bf16.mxu0 %v595
    %661 = vmatpush2.bf16.msra.mxu0 %v594
    %662 = vmatprep.subr.bf16.mxu0 %v593
    %663 = vmatpush2.bf16.msra.mxu0 %v592
    %664 = vmatprep.subr.bf16.mxu0 %v591
    %665 = vmatpush2.bf16.msra.mxu0 %v590
    %666 = vmatprep.subr.bf16.mxu0 %v589
    %667 = vmatpush2.bf16.msra.mxu0 %v588
    %668 = vmatprep.mubr.bf16.mxu0 %v429
    %669 = vmatmul.mubr.bf16.gmra.mxu0 %v428
    %v670 = vpop.f32.mrf.mxu0
    %v671 = vadd.f32 %v469, %v670
    %v672 = vpop.f32.mrf.mxu0
    %v673 = vadd.f32 %v473, %v672
    %v674 = vpop.f32.mrf.mxu0
    %v675 = vpop.f32.mrf.mxu0
    %676 = vdwg.mxu0
    %v677 = vmax.f32 %v671, 0.0
    %v678 = vmax.f32 %v673, 0.0
    %v679 = vpack.c.bf16 %v677, %v677
    %v680 = vpack.c.bf16 %v678, %v678
    %v681 = vld [vmem:[#allocation11] sm:$0xff]
    %v682 = vld [vmem:[#allocation11 + $0x8] sm:$0xff]
    %v683 = vld [vmem:[#allocation11 + $0x10] sm:$0xff]
    %v684 = vld [vmem:[#allocation11 + $0x18] sm:$0xff]
    %v685 = vld [vmem:[#allocation11 + $0x20] sm:$0xff]
    %v686 = vld [vmem:[#allocation11 + $0x28] sm:$0xff]
    %v687 = vld [vmem:[#allocation11 + $0x30] sm:$0xff]
    %v688 = vld [vmem:[#allocation11 + $0x38] sm:$0xff]
    %v689 = vld [vmem:[#allocation11 + $0x40] sm:$0xff]
    %v690 = vld [vmem:[#allocation11 + $0x48] sm:$0xff]
    %v691 = vld [vmem:[#allocation11 + $0x50] sm:$0xff]
    %v692 = vld [vmem:[#allocation11 + $0x58] sm:$0xff]
    %v693 = vld [vmem:[#allocation11 + $0x60] sm:$0xff]
    %v694 = vld [vmem:[#allocation11 + $0x68] sm:$0xff]
    %v695 = vld [vmem:[#allocation11 + $0x70] sm:$0xff]
    %v696 = vld [vmem:[#allocation11 + $0x78] sm:$0xff]
    %v697 = vld [vmem:[#allocation11 + $0x80] sm:$0xff]
    %v698 = vld [vmem:[#allocation11 + $0x88] sm:$0xff]
    %v699 = vld [vmem:[#allocation11 + $0x90] sm:$0xff]
    %v700 = vld [vmem:[#allocation11 + $0x98] sm:$0xff]
    %v701 = vld [vmem:[#allocation11 + $0xa0] sm:$0xff]
    %v702 = vld [vmem:[#allocation11 + $0xa8] sm:$0xff]
    %v703 = vld [vmem:[#allocation11 + $0xb0] sm:$0xff]
    %v704 = vld [vmem:[#allocation11 + $0xb8] sm:$0xff]
    %v705 = vld [vmem:[#allocation11 + $0xc0] sm:$0xff]
    %v706 = vld [vmem:[#allocation11 + $0xc8] sm:$0xff]
    %v707 = vld [vmem:[#allocation11 + $0xd0] sm:$0xff]
    %v708 = vld [vmem:[#allocation11 + $0xd8] sm:$0xff]
    %v709 = vld [vmem:[#allocation11 + $0xe0] sm:$0xff]
    %v710 = vld [vmem:[#allocation11 + $0xe8] sm:$0xff]
    %v711 = vld [vmem:[#allocation11 + $0xf0] sm:$0xff]
    %v712 = vld [vmem:[#allocation11 + $0xf8] sm:$0xff]
    %v713 = vld [vmem:[%s6] sm:$0x3]
    %v715 = vlaneseq
    %v716 = vshrl.u32 %v715, 7
    %v717 = vsub.s32 0, %v716
    %v718 = vrot.slane %v713, %v717
    %v719 = vlaneseq
    %v720 = vshrl.u32 %v719, 7
    %v721 = vsub.s32 1, %v720
    %v722 = vrot.slane %v713, %v721
    %v757 = vunpack.c.l.b16 %v681
    %v758 = vunpack.c.h.b16 %v681
    %v759 = vunpack.c.l.b16 %v682
    %v760 = vunpack.c.h.b16 %v682
    %v761 = vunpack.c.l.b16 %v683
    %v762 = vunpack.c.h.b16 %v683
    %v763 = vunpack.c.l.b16 %v684
    %v764 = vunpack.c.h.b16 %v684
    %v765 = vunpack.c.l.b16 %v685
    %v766 = vunpack.c.h.b16 %v685
    %v767 = vunpack.c.l.b16 %v686
    %v768 = vunpack.c.h.b16 %v686
    %v769 = vunpack.c.l.b16 %v687
    %v770 = vunpack.c.h.b16 %v687
    %v771 = vunpack.c.l.b16 %v688
    %v772 = vunpack.c.h.b16 %v688
    %v773 = vunpack.c.l.b16 %v689
    %v774 = vunpack.c.h.b16 %v689
    %v775 = vunpack.c.l.b16 %v690
    %v776 = vunpack.c.h.b16 %v690
    %v777 = vunpack.c.l.b16 %v691
    %v778 = vunpack.c.h.b16 %v691
    %v779 = vunpack.c.l.b16 %v692
    %v780 = vunpack.c.h.b16 %v692
    %v781 = vunpack.c.l.b16 %v693
    %v782 = vunpack.c.h.b16 %v693
    %v783 = vunpack.c.l.b16 %v694
    %v784 = vunpack.c.h.b16 %v694
    %v785 = vunpack.c.l.b16 %v695
    %v786 = vunpack.c.h.b16 %v695
    %v787 = vunpack.c.l.b16 %v696
    %v788 = vunpack.c.h.b16 %v696
    %v789 = vunpack.c.l.b16 %v697
    %v790 = vunpack.c.h.b16 %v697
    %v791 = vunpack.c.l.b16 %v698
    %v792 = vunpack.c.h.b16 %v698
    %v793 = vunpack.c.l.b16 %v699
    %v794 = vunpack.c.h.b16 %v699
    %v795 = vunpack.c.l.b16 %v700
    %v796 = vunpack.c.h.b16 %v700
    %v797 = vunpack.c.l.b16 %v701
    %v798 = vunpack.c.h.b16 %v701
    %v799 = vunpack.c.l.b16 %v702
    %v800 = vunpack.c.h.b16 %v702
    %v801 = vunpack.c.l.b16 %v703
    %v802 = vunpack.c.h.b16 %v703
    %v803 = vunpack.c.l.b16 %v704
    %v804 = vunpack.c.h.b16 %v704
    %v805 = vunpack.c.l.b16 %v705
    %v806 = vunpack.c.h.b16 %v705
    %v807 = vunpack.c.l.b16 %v706
    %v808 = vunpack.c.h.b16 %v706
    %v809 = vunpack.c.l.b16 %v707
    %v810 = vunpack.c.h.b16 %v707
    %v811 = vunpack.c.l.b16 %v708
    %v812 = vunpack.c.h.b16 %v708
    %v813 = vunpack.c.l.b16 %v709
    %v814 = vunpack.c.h.b16 %v709
    %v815 = vunpack.c.l.b16 %v710
    %v816 = vunpack.c.h.b16 %v710
    %v817 = vunpack.c.l.b16 %v711
    %v818 = vunpack.c.h.b16 %v711
    %v819 = vunpack.c.l.b16 %v712
    %v820 = vunpack.c.h.b16 %v712
    %v821 = vpack.c.b16 %v759, %v757
    %v822 = vpack.c.b16 %v760, %v758
    %v823 = vpack.c.b16 %v763, %v761
    %v824 = vpack.c.b16 %v764, %v762
    %v825 = vpack.c.b16 %v767, %v765
    %v826 = vpack.c.b16 %v768, %v766
    %v827 = vpack.c.b16 %v771, %v769
    %v828 = vpack.c.b16 %v772, %v770
    %v829 = vpack.c.b16 %v775, %v773
    %v830 = vpack.c.b16 %v776, %v774
    %v831 = vpack.c.b16 %v779, %v777
    %v832 = vpack.c.b16 %v780, %v778
    %v833 = vpack.c.b16 %v783, %v781
    %v834 = vpack.c.b16 %v784, %v782
    %v835 = vpack.c.b16 %v787, %v785
    %v836 = vpack.c.b16 %v788, %v786
    %v837 = vpack.c.b16 %v791, %v789
    %v838 = vpack.c.b16 %v792, %v790
    %v839 = vpack.c.b16 %v795, %v793
    %v840 = vpack.c.b16 %v796, %v794
    %v841 = vpack.c.b16 %v799, %v797
    %v842 = vpack.c.b16 %v800, %v798
    %v843 = vpack.c.b16 %v803, %v801
    %v844 = vpack.c.b16 %v804, %v802
    %v845 = vpack.c.b16 %v807, %v805
    %v846 = vpack.c.b16 %v808, %v806
    %v847 = vpack.c.b16 %v811, %v809
    %v848 = vpack.c.b16 %v812, %v810
    %v849 = vpack.c.b16 %v815, %v813
    %v850 = vpack.c.b16 %v816, %v814
    %v851 = vpack.c.b16 %v819, %v817
    %v852 = vpack.c.b16 %v820, %v818
    %885 = vmatprep.subr.bf16.mxu0 %v836
    %886 = vmatpush1.bf16.msra.mxu0 %v835
    %887 = vmatprep.subr.bf16.mxu0 %v834
    %888 = vmatpush1.bf16.msra.mxu0 %v833
    %889 = vmatprep.subr.bf16.mxu0 %v832
    %890 = vmatpush1.bf16.msra.mxu0 %v831
    %891 = vmatprep.subr.bf16.mxu0 %v830
    %892 = vmatpush1.bf16.msra.mxu0 %v829
    %893 = vmatprep.subr.bf16.mxu0 %v828
    %894 = vmatpush1.bf16.msra.mxu0 %v827
    %895 = vmatprep.subr.bf16.mxu0 %v826
    %896 = vmatpush1.bf16.msra.mxu0 %v825
    %897 = vmatprep.subr.bf16.mxu0 %v824
    %898 = vmatpush1.bf16.msra.mxu0 %v823
    %899 = vmatprep.subr.bf16.mxu0 %v822
    %900 = vmatpush1.bf16.msra.mxu0 %v821
    %901 = vmatprep.subr.bf16.mxu0 %v852
    %902 = vmatpush2.bf16.msra.mxu0 %v851
    %903 = vmatprep.subr.bf16.mxu0 %v850
    %904 = vmatpush2.bf16.msra.mxu0 %v849
    %905 = vmatprep.subr.bf16.mxu0 %v848
    %906 = vmatpush2.bf16.msra.mxu0 %v847
    %907 = vmatprep.subr.bf16.mxu0 %v846
    %908 = vmatpush2.bf16.msra.mxu0 %v845
    %909 = vmatprep.subr.bf16.mxu0 %v844
    %910 = vmatpush2.bf16.msra.mxu0 %v843
    %911 = vmatprep.subr.bf16.mxu0 %v842
    %912 = vmatpush2.bf16.msra.mxu0 %v841
    %913 = vmatprep.subr.bf16.mxu0 %v840
    %914 = vmatpush2.bf16.msra.mxu0 %v839
    %915 = vmatprep.subr.bf16.mxu0 %v838
    %916 = vmatpush2.bf16.msra.mxu0 %v837
    %917 = vmatprep.mubr.bf16.mxu0 %v431
    %918 = vmatmul.mubr.bf16.gmra.mxu0 %v430
    %v919 = vpop.f32.mrf.mxu0
    %v920 = vadd.f32 %v718, %v919
    %v921 = vpop.f32.mrf.mxu0
    %v922 = vadd.f32 %v722, %v921
    %v923 = vpop.f32.mrf.mxu0
    %v924 = vpop.f32.mrf.mxu0
    %925 = vdwg.mxu0
    %v926 = vmax.f32 %v920, 0.0
    %v927 = vmax.f32 %v922, 0.0
    %v928 = vpack.c.bf16 %v926, %v926
    %v929 = vpack.c.bf16 %v927, %v927
    %v930 = vld [vmem:[#allocation13] sm:$0xff]
    %v931 = vld [vmem:[#allocation13 + $0x8] sm:$0xff]
    %v932 = vld [vmem:[#allocation13 + $0x10] sm:$0xff]
    %v933 = vld [vmem:[#allocation13 + $0x18] sm:$0xff]
    %v934 = vld [vmem:[#allocation13 + $0x20] sm:$0xff]
    %v935 = vld [vmem:[#allocation13 + $0x28] sm:$0xff]
    %v936 = vld [vmem:[#allocation13 + $0x30] sm:$0xff]
    %v937 = vld [vmem:[#allocation13 + $0x38] sm:$0xff]
    %v938 = vld [vmem:[#allocation13 + $0x40] sm:$0xff]
    %v939 = vld [vmem:[#allocation13 + $0x48] sm:$0xff]
    %v940 = vld [vmem:[#allocation13 + $0x50] sm:$0xff]
    %v941 = vld [vmem:[#allocation13 + $0x58] sm:$0xff]
    %v942 = vld [vmem:[#allocation13 + $0x60] sm:$0xff]
    %v943 = vld [vmem:[#allocation13 + $0x68] sm:$0xff]
    %v944 = vld [vmem:[#allocation13 + $0x70] sm:$0xff]
    %v945 = vld [vmem:[#allocation13 + $0x78] sm:$0xff]
    %v946 = vld [vmem:[#allocation13 + $0x80] sm:$0xff]
    %v947 = vld [vmem:[#allocation13 + $0x88] sm:$0xff]
    %v948 = vld [vmem:[#allocation13 + $0x90] sm:$0xff]
    %v949 = vld [vmem:[#allocation13 + $0x98] sm:$0xff]
    %v950 = vld [vmem:[#allocation13 + $0xa0] sm:$0xff]
    %v951 = vld [vmem:[#allocation13 + $0xa8] sm:$0xff]
    %v952 = vld [vmem:[#allocation13 + $0xb0] sm:$0xff]
    %v953 = vld [vmem:[#allocation13 + $0xb8] sm:$0xff]
    %v954 = vld [vmem:[#allocation13 + $0xc0] sm:$0xff]
    %v955 = vld [vmem:[#allocation13 + $0xc8] sm:$0xff]
    %v956 = vld [vmem:[#allocation13 + $0xd0] sm:$0xff]
    %v957 = vld [vmem:[#allocation13 + $0xd8] sm:$0xff]
    %v958 = vld [vmem:[#allocation13 + $0xe0] sm:$0xff]
    %v959 = vld [vmem:[#allocation13 + $0xe8] sm:$0xff]
    %v960 = vld [vmem:[#allocation13 + $0xf0] sm:$0xff]
    %v961 = vld [vmem:[#allocation13 + $0xf8] sm:$0xff]
    %v962 = vld [vmem:[#allocation13 + $0x100] sm:$0xff]
    %v963 = vld [vmem:[#allocation13 + $0x108] sm:$0xff]
    %v964 = vld [vmem:[#allocation13 + $0x110] sm:$0xff]
    %v965 = vld [vmem:[#allocation13 + $0x118] sm:$0xff]
    %v966 = vld [vmem:[#allocation13 + $0x120] sm:$0xff]
    %v967 = vld [vmem:[#allocation13 + $0x128] sm:$0xff]
    %v968 = vld [vmem:[#allocation13 + $0x130] sm:$0xff]
    %v969 = vld [vmem:[#allocation13 + $0x138] sm:$0xff]
    %v970 = vld [vmem:[#allocation13 + $0x140] sm:$0xff]
    %v971 = vld [vmem:[#allocation13 + $0x148] sm:$0xff]
    %v972 = vld [vmem:[#allocation13 + $0x150] sm:$0xff]
    %v973 = vld [vmem:[#allocation13 + $0x158] sm:$0xff]
    %v974 = vld [vmem:[#allocation13 + $0x160] sm:$0xff]
    %v975 = vld [vmem:[#allocation13 + $0x168] sm:$0xff]
    %v976 = vld [vmem:[#allocation13 + $0x170] sm:$0xff]
    %v977 = vld [vmem:[#allocation13 + $0x178] sm:$0xff]
    %v978 = vld [vmem:[#allocation13 + $0x180] sm:$0xff]
    %v979 = vld [vmem:[#allocation13 + $0x188] sm:$0xff]
    %v980 = vld [vmem:[#allocation13 + $0x190] sm:$0xff]
    %v981 = vld [vmem:[#allocation13 + $0x198] sm:$0xff]
    %v982 = vld [vmem:[#allocation13 + $0x1a0] sm:$0xff]
    %v983 = vld [vmem:[#allocation13 + $0x1a8] sm:$0xff]
    %v984 = vld [vmem:[#allocation13 + $0x1b0] sm:$0xff]
    %v985 = vld [vmem:[#allocation13 + $0x1b8] sm:$0xff]
    %v986 = vld [vmem:[#allocation13 + $0x1c0] sm:$0xff]
    %v987 = vld [vmem:[#allocation13 + $0x1c8] sm:$0xff]
    %v988 = vld [vmem:[#allocation13 + $0x1d0] sm:$0xff]
    %v989 = vld [vmem:[#allocation13 + $0x1d8] sm:$0xff]
    %v990 = vld [vmem:[#allocation13 + $0x1e0] sm:$0xff]
    %v991 = vld [vmem:[#allocation13 + $0x1e8] sm:$0xff]
    %v992 = vld [vmem:[#allocation13 + $0x1f0] sm:$0xff]
    %v993 = vld [vmem:[#allocation13 + $0x1f8] sm:$0xff]
    %v994 = vld [vmem:[%s8] sm:$0xf]
    %v996 = vlaneseq
    %v997 = vshrl.u32 %v996, 7
    %v998 = vsub.s32 0, %v997
    %v999 = vrot.slane %v994, %v998
    %v1000 = vlaneseq
    %v1001 = vshrl.u32 %v1000, 7
    %v1002 = vsub.s32 1, %v1001
    %v1003 = vrot.slane %v994, %v1002
    %v1004 = vlaneseq
    %v1005 = vshrl.u32 %v1004, 7
    %v1006 = vsub.s32 2, %v1005
    %v1007 = vrot.slane %v994, %v1006
    %v1008 = vlaneseq
    %v1009 = vshrl.u32 %v1008, 7
    %v1010 = vsub.s32 3, %v1009
    %v1011 = vrot.slane %v994, %v1010
    %v1080 = vunpack.c.l.b16 %v930
    %v1081 = vunpack.c.h.b16 %v930
    %v1082 = vunpack.c.l.b16 %v931
    %v1083 = vunpack.c.h.b16 %v931
    %v1084 = vunpack.c.l.b16 %v932
    %v1085 = vunpack.c.h.b16 %v932
    %v1086 = vunpack.c.l.b16 %v933
    %v1087 = vunpack.c.h.b16 %v933
    %v1088 = vunpack.c.l.b16 %v934
    %v1089 = vunpack.c.h.b16 %v934
    %v1090 = vunpack.c.l.b16 %v935
    %v1091 = vunpack.c.h.b16 %v935
    %v1092 = vunpack.c.l.b16 %v936
    %v1093 = vunpack.c.h.b16 %v936
    %v1094 = vunpack.c.l.b16 %v937
    %v1095 = vunpack.c.h.b16 %v937
    %v1096 = vunpack.c.l.b16 %v938
    %v1097 = vunpack.c.h.b16 %v938
    %v1098 = vunpack.c.l.b16 %v939
    %v1099 = vunpack.c.h.b16 %v939
    %v1100 = vunpack.c.l.b16 %v940
    %v1101 = vunpack.c.h.b16 %v940
    %v1102 = vunpack.c.l.b16 %v941
    %v1103 = vunpack.c.h.b16 %v941
    %v1104 = vunpack.c.l.b16 %v942
    %v1105 = vunpack.c.h.b16 %v942
    %v1106 = vunpack.c.l.b16 %v943
    %v1107 = vunpack.c.h.b16 %v943
    %v1108 = vunpack.c.l.b16 %v944
    %v1109 = vunpack.c.h.b16 %v944
    %v1110 = vunpack.c.l.b16 %v945
    %v1111 = vunpack.c.h.b16 %v945
    %v1112 = vunpack.c.l.b16 %v946
    %v1113 = vunpack.c.h.b16 %v946
    %v1114 = vunpack.c.l.b16 %v947
    %v1115 = vunpack.c.h.b16 %v947
    %v1116 = vunpack.c.l.b16 %v948
    %v1117 = vunpack.c.h.b16 %v948
    %v1118 = vunpack.c.l.b16 %v949
    %v1119 = vunpack.c.h.b16 %v949
    %v1120 = vunpack.c.l.b16 %v950
    %v1121 = vunpack.c.h.b16 %v950
    %v1122 = vunpack.c.l.b16 %v951
    %v1123 = vunpack.c.h.b16 %v951
    %v1124 = vunpack.c.l.b16 %v952
    %v1125 = vunpack.c.h.b16 %v952
    %v1126 = vunpack.c.l.b16 %v953
    %v1127 = vunpack.c.h.b16 %v953
    %v1128 = vunpack.c.l.b16 %v954
    %v1129 = vunpack.c.h.b16 %v954
    %v1130 = vunpack.c.l.b16 %v955
    %v1131 = vunpack.c.h.b16 %v955
    %v1132 = vunpack.c.l.b16 %v956
    %v1133 = vunpack.c.h.b16 %v956
    %v1134 = vunpack.c.l.b16 %v957
    %v1135 = vunpack.c.h.b16 %v957
    %v1136 = vunpack.c.l.b16 %v958
    %v1137 = vunpack.c.h.b16 %v958
    %v1138 = vunpack.c.l.b16 %v959
    %v1139 = vunpack.c.h.b16 %v959
    %v1140 = vunpack.c.l.b16 %v960
    %v1141 = vunpack.c.h.b16 %v960
    %v1142 = vunpack.c.l.b16 %v961
    %v1143 = vunpack.c.h.b16 %v961
    %v1144 = vunpack.c.l.b16 %v962
    %v1145 = vunpack.c.h.b16 %v962
    %v1146 = vunpack.c.l.b16 %v963
    %v1147 = vunpack.c.h.b16 %v963
    %v1148 = vunpack.c.l.b16 %v964
    %v1149 = vunpack.c.h.b16 %v964
    %v1150 = vunpack.c.l.b16 %v965
    %v1151 = vunpack.c.h.b16 %v965
    %v1152 = vunpack.c.l.b16 %v966
    %v1153 = vunpack.c.h.b16 %v966
    %v1154 = vunpack.c.l.b16 %v967
    %v1155 = vunpack.c.h.b16 %v967
    %v1156 = vunpack.c.l.b16 %v968
    %v1157 = vunpack.c.h.b16 %v968
    %v1158 = vunpack.c.l.b16 %v969
    %v1159 = vunpack.c.h.b16 %v969
    %v1160 = vunpack.c.l.b16 %v970
    %v1161 = vunpack.c.h.b16 %v970
    %v1162 = vunpack.c.l.b16 %v971
    %v1163 = vunpack.c.h.b16 %v971
    %v1164 = vunpack.c.l.b16 %v972
    %v1165 = vunpack.c.h.b16 %v972
    %v1166 = vunpack.c.l.b16 %v973
    %v1167 = vunpack.c.h.b16 %v973
    %v1168 = vunpack.c.l.b16 %v974
    %v1169 = vunpack.c.h.b16 %v974
    %v1170 = vunpack.c.l.b16 %v975
    %v1171 = vunpack.c.h.b16 %v975
    %v1172 = vunpack.c.l.b16 %v976
    %v1173 = vunpack.c.h.b16 %v976
    %v1174 = vunpack.c.l.b16 %v977
    %v1175 = vunpack.c.h.b16 %v977
    %v1176 = vunpack.c.l.b16 %v978
    %v1177 = vunpack.c.h.b16 %v978
    %v1178 = vunpack.c.l.b16 %v979
    %v1179 = vunpack.c.h.b16 %v979
    %v1180 = vunpack.c.l.b16 %v980
    %v1181 = vunpack.c.h.b16 %v980
    %v1182 = vunpack.c.l.b16 %v981
    %v1183 = vunpack.c.h.b16 %v981
    %v1184 = vunpack.c.l.b16 %v982
    %v1185 = vunpack.c.h.b16 %v982
    %v1186 = vunpack.c.l.b16 %v983
    %v1187 = vunpack.c.h.b16 %v983
    %v1188 = vunpack.c.l.b16 %v984
    %v1189 = vunpack.c.h.b16 %v984
    %v1190 = vunpack.c.l.b16 %v985
    %v1191 = vunpack.c.h.b16 %v985
    %v1192 = vunpack.c.l.b16 %v986
    %v1193 = vunpack.c.h.b16 %v986
    %v1194 = vunpack.c.l.b16 %v987
    %v1195 = vunpack.c.h.b16 %v987
    %v1196 = vunpack.c.l.b16 %v988
    %v1197 = vunpack.c.h.b16 %v988
    %v1198 = vunpack.c.l.b16 %v989
    %v1199 = vunpack.c.h.b16 %v989
    %v1200 = vunpack.c.l.b16 %v990
    %v1201 = vunpack.c.h.b16 %v990
    %v1202 = vunpack.c.l.b16 %v991
    %v1203 = vunpack.c.h.b16 %v991
    %v1204 = vunpack.c.l.b16 %v992
    %v1205 = vunpack.c.h.b16 %v992
    %v1206 = vunpack.c.l.b16 %v993
    %v1207 = vunpack.c.h.b16 %v993
    %v1208 = vpack.c.b16 %v1084, %v1080
    %v1209 = vpack.c.b16 %v1085, %v1081
    %v1210 = vpack.c.b16 %v1086, %v1082
    %v1211 = vpack.c.b16 %v1087, %v1083
    %v1212 = vpack.c.b16 %v1092, %v1088
    %v1213 = vpack.c.b16 %v1093, %v1089
    %v1214 = vpack.c.b16 %v1094, %v1090
    %v1215 = vpack.c.b16 %v1095, %v1091
    %v1216 = vpack.c.b16 %v1100, %v1096
    %v1217 = vpack.c.b16 %v1101, %v1097
    %v1218 = vpack.c.b16 %v1102, %v1098
    %v1219 = vpack.c.b16 %v1103, %v1099
    %v1220 = vpack.c.b16 %v1108, %v1104
    %v1221 = vpack.c.b16 %v1109, %v1105
    %v1222 = vpack.c.b16 %v1110, %v1106
    %v1223 = vpack.c.b16 %v1111, %v1107
    %v1224 = vpack.c.b16 %v1116, %v1112
    %v1225 = vpack.c.b16 %v1117, %v1113
    %v1226 = vpack.c.b16 %v1118, %v1114
    %v1227 = vpack.c.b16 %v1119, %v1115
    %v1228 = vpack.c.b16 %v1124, %v1120
    %v1229 = vpack.c.b16 %v1125, %v1121
    %v1230 = vpack.c.b16 %v1126, %v1122
    %v1231 = vpack.c.b16 %v1127, %v1123
    %v1232 = vpack.c.b16 %v1132, %v1128
    %v1233 = vpack.c.b16 %v1133, %v1129
    %v1234 = vpack.c.b16 %v1134, %v1130
    %v1235 = vpack.c.b16 %v1135, %v1131
    %v1236 = vpack.c.b16 %v1140, %v1136
    %v1237 = vpack.c.b16 %v1141, %v1137
    %v1238 = vpack.c.b16 %v1142, %v1138
    %v1239 = vpack.c.b16 %v1143, %v1139
    %v1240 = vpack.c.b16 %v1148, %v1144
    %v1241 = vpack.c.b16 %v1149, %v1145
    %v1242 = vpack.c.b16 %v1150, %v1146
    %v1243 = vpack.c.b16 %v1151, %v1147
    %v1244 = vpack.c.b16 %v1156, %v1152
    %v1245 = vpack.c.b16 %v1157, %v1153
    %v1246 = vpack.c.b16 %v1158, %v1154
    %v1247 = vpack.c.b16 %v1159, %v1155
    %v1248 = vpack.c.b16 %v1164, %v1160
    %v1249 = vpack.c.b16 %v1165, %v1161
    %v1250 = vpack.c.b16 %v1166, %v1162
    %v1251 = vpack.c.b16 %v1167, %v1163
    %v1252 = vpack.c.b16 %v1172, %v1168
    %v1253 = vpack.c.b16 %v1173, %v1169
    %v1254 = vpack.c.b16 %v1174, %v1170
    %v1255 = vpack.c.b16 %v1175, %v1171
    %v1256 = vpack.c.b16 %v1180, %v1176
    %v1257 = vpack.c.b16 %v1181, %v1177
    %v1258 = vpack.c.b16 %v1182, %v1178
    %v1259 = vpack.c.b16 %v1183, %v1179
    %v1260 = vpack.c.b16 %v1188, %v1184
    %v1261 = vpack.c.b16 %v1189, %v1185
    %v1262 = vpack.c.b16 %v1190, %v1186
    %v1263 = vpack.c.b16 %v1191, %v1187
    %v1264 = vpack.c.b16 %v1196, %v1192
    %v1265 = vpack.c.b16 %v1197, %v1193
    %v1266 = vpack.c.b16 %v1198, %v1194
    %v1267 = vpack.c.b16 %v1199, %v1195
    %v1268 = vpack.c.b16 %v1204, %v1200
    %v1269 = vpack.c.b16 %v1205, %v1201
    %v1270 = vpack.c.b16 %v1206, %v1202
    %v1271 = vpack.c.b16 %v1207, %v1203
    %1336 = vmatprep.subr.bf16.mxu0 %v1237
    %1337 = vmatpush1.bf16.msra.mxu0 %v1236
    %1338 = vmatprep.subr.bf16.mxu0 %v1233
    %1339 = vmatpush1.bf16.msra.mxu0 %v1232
    %1340 = vmatprep.subr.bf16.mxu0 %v1229
    %1341 = vmatpush1.bf16.msra.mxu0 %v1228
    %1342 = vmatprep.subr.bf16.mxu0 %v1225
    %1343 = vmatpush1.bf16.msra.mxu0 %v1224
    %1344 = vmatprep.subr.bf16.mxu0 %v1221
    %1345 = vmatpush1.bf16.msra.mxu0 %v1220
    %1346 = vmatprep.subr.bf16.mxu0 %v1217
    %1347 = vmatpush1.bf16.msra.mxu0 %v1216
    %1348 = vmatprep.subr.bf16.mxu0 %v1213
    %1349 = vmatpush1.bf16.msra.mxu0 %v1212
    %1350 = vmatprep.subr.bf16.mxu0 %v1209
    %1351 = vmatpush1.bf16.msra.mxu0 %v1208
    %1352 = vmatprep.subr.bf16.mxu0 %v1269
    %1353 = vmatpush2.bf16.msra.mxu0 %v1268
    %1354 = vmatprep.subr.bf16.mxu0 %v1265
    %1355 = vmatpush2.bf16.msra.mxu0 %v1264
    %1356 = vmatprep.subr.bf16.mxu0 %v1261
    %1357 = vmatpush2.bf16.msra.mxu0 %v1260
    %1358 = vmatprep.subr.bf16.mxu0 %v1257
    %1359 = vmatpush2.bf16.msra.mxu0 %v1256
    %1360 = vmatprep.subr.bf16.mxu0 %v1253
    %1361 = vmatpush2.bf16.msra.mxu0 %v1252
    %1362 = vmatprep.subr.bf16.mxu0 %v1249
    %1363 = vmatpush2.bf16.msra.mxu0 %v1248
    %1364 = vmatprep.subr.bf16.mxu0 %v1245
    %1365 = vmatpush2.bf16.msra.mxu0 %v1244
    %1366 = vmatprep.subr.bf16.mxu0 %v1241
    %1367 = vmatpush2.bf16.msra.mxu0 %v1240
    %1368 = vmatprep.mubr.bf16.mxu0 %v680
    %1369 = vmatmul.mubr.bf16.gmra.mxu0 %v679
    %v1370 = vpop.f32.mrf.mxu0
    %v1371 = vadd.f32 %v999, %v1370
    %v1372 = vpop.f32.mrf.mxu0
    %v1373 = vadd.f32 %v1003, %v1372
    %v1374 = vpop.f32.mrf.mxu0
    %v1375 = vpop.f32.mrf.mxu0
    %1376 = vdwg.mxu0
    %1377 = vmatprep.subr.bf16.mxu0 %v1239
    %1378 = vmatpush1.bf16.msra.mxu0 %v1238
    %1379 = vmatprep.subr.bf16.mxu0 %v1235
    %1380 = vmatpush1.bf16.msra.mxu0 %v1234
    %1381 = vmatprep.subr.bf16.mxu0 %v1231
    %1382 = vmatpush1.bf16.msra.mxu0 %v1230
    %1383 = vmatprep.subr.bf16.mxu0 %v1227
    %1384 = vmatpush1.bf16.msra.mxu0 %v1226
    %1385 = vmatprep.subr.bf16.mxu0 %v1223
    %1386 = vmatpush1.bf16.msra.mxu0 %v1222
    %1387 = vmatprep.subr.bf16.mxu0 %v1219
    %1388 = vmatpush1.bf16.msra.mxu0 %v1218
    %1389 = vmatprep.subr.bf16.mxu0 %v1215
    %1390 = vmatpush1.bf16.msra.mxu0 %v1214
    %1391 = vmatprep.subr.bf16.mxu0 %v1211
    %1392 = vmatpush1.bf16.msra.mxu0 %v1210
    %1393 = vmatprep.subr.bf16.mxu0 %v1271
    %1394 = vmatpush2.bf16.msra.mxu0 %v1270
    %1395 = vmatprep.subr.bf16.mxu0 %v1267
    %1396 = vmatpush2.bf16.msra.mxu0 %v1266
    %1397 = vmatprep.subr.bf16.mxu0 %v1263
    %1398 = vmatpush2.bf16.msra.mxu0 %v1262
    %1399 = vmatprep.subr.bf16.mxu0 %v1259
    %1400 = vmatpush2.bf16.msra.mxu0 %v1258
    %1401 = vmatprep.subr.bf16.mxu0 %v1255
    %1402 = vmatpush2.bf16.msra.mxu0 %v1254
    %1403 = vmatprep.subr.bf16.mxu0 %v1251
    %1404 = vmatpush2.bf16.msra.mxu0 %v1250
    %1405 = vmatprep.subr.bf16.mxu0 %v1247
    %1406 = vmatpush2.bf16.msra.mxu0 %v1246
    %1407 = vmatprep.subr.bf16.mxu0 %v1243
    %1408 = vmatpush2.bf16.msra.mxu0 %v1242
    %1409 = vmatprep.mubr.bf16.mxu0 %v680
    %1410 = vmatmul.mubr.bf16.gmra.mxu0 %v679
    %v1411 = vpop.f32.mrf.mxu0
    %v1412 = vadd.f32 %v1007, %v1411
    %v1413 = vpop.f32.mrf.mxu0
    %v1414 = vadd.f32 %v1011, %v1413
    %v1415 = vpop.f32.mrf.mxu0
    %v1416 = vpop.f32.mrf.mxu0
    %1417 = vdwg.mxu0
    %v1418 = vmax.f32 %v1371, 0.0
    %v1419 = vmax.f32 %v1373, 0.0
    %v1420 = vmax.f32 %v1412, 0.0
    %v1421 = vmax.f32 %v1414, 0.0
    %v1422 = vpack.c.bf16 %v1418, %v1418
    %v1423 = vpack.c.bf16 %v1419, %v1419
    %v1424 = vpack.c.bf16 %v1420, %v1420
    %v1425 = vpack.c.bf16 %v1421, %v1421
    %v1426 = vld [vmem:[#allocation14] sm:$0xff]
    %v1427 = vld [vmem:[#allocation14 + $0x8] sm:$0xff]
    %v1428 = vld [vmem:[#allocation14 + $0x10] sm:$0xff]
    %v1429 = vld [vmem:[#allocation14 + $0x18] sm:$0xff]
    %v1430 = vld [vmem:[#allocation14 + $0x20] sm:$0xff]
    %v1431 = vld [vmem:[#allocation14 + $0x28] sm:$0xff]
    %v1432 = vld [vmem:[#allocation14 + $0x30] sm:$0xff]
    %v1433 = vld [vmem:[#allocation14 + $0x38] sm:$0xff]
    %v1434 = vld [vmem:[#allocation14 + $0x40] sm:$0xff]
    %v1435 = vld [vmem:[#allocation14 + $0x48] sm:$0xff]
    %v1436 = vld [vmem:[#allocation14 + $0x50] sm:$0xff]
    %v1437 = vld [vmem:[#allocation14 + $0x58] sm:$0xff]
    %v1438 = vld [vmem:[#allocation14 + $0x60] sm:$0xff]
    %v1439 = vld [vmem:[#allocation14 + $0x68] sm:$0xff]
    %v1440 = vld [vmem:[#allocation14 + $0x70] sm:$0xff]
    %v1441 = vld [vmem:[#allocation14 + $0x78] sm:$0xff]
    %v1442 = vld [vmem:[#allocation14 + $0x80] sm:$0xff]
    %v1443 = vld [vmem:[#allocation14 + $0x88] sm:$0xff]
    %v1444 = vld [vmem:[#allocation14 + $0x90] sm:$0xff]
    %v1445 = vld [vmem:[#allocation14 + $0x98] sm:$0xff]
    %v1446 = vld [vmem:[#allocation14 + $0xa0] sm:$0xff]
    %v1447 = vld [vmem:[#allocation14 + $0xa8] sm:$0xff]
    %v1448 = vld [vmem:[#allocation14 + $0xb0] sm:$0xff]
    %v1449 = vld [vmem:[#allocation14 + $0xb8] sm:$0xff]
    %v1450 = vld [vmem:[#allocation14 + $0xc0] sm:$0xff]
    %v1451 = vld [vmem:[#allocation14 + $0xc8] sm:$0xff]
    %v1452 = vld [vmem:[#allocation14 + $0xd0] sm:$0xff]
    %v1453 = vld [vmem:[#allocation14 + $0xd8] sm:$0xff]
    %v1454 = vld [vmem:[#allocation14 + $0xe0] sm:$0xff]
    %v1455 = vld [vmem:[#allocation14 + $0xe8] sm:$0xff]
    %v1456 = vld [vmem:[#allocation14 + $0xf0] sm:$0xff]
    %v1457 = vld [vmem:[#allocation14 + $0xf8] sm:$0xff]
    %v1458 = vld [vmem:[#allocation14 + $0x100] sm:$0xff]
    %v1459 = vld [vmem:[#allocation14 + $0x108] sm:$0xff]
    %v1460 = vld [vmem:[#allocation14 + $0x110] sm:$0xff]
    %v1461 = vld [vmem:[#allocation14 + $0x118] sm:$0xff]
    %v1462 = vld [vmem:[#allocation14 + $0x120] sm:$0xff]
    %v1463 = vld [vmem:[#allocation14 + $0x128] sm:$0xff]
    %v1464 = vld [vmem:[#allocation14 + $0x130] sm:$0xff]
    %v1465 = vld [vmem:[#allocation14 + $0x138] sm:$0xff]
    %v1466 = vld [vmem:[#allocation14 + $0x140] sm:$0xff]
    %v1467 = vld [vmem:[#allocation14 + $0x148] sm:$0xff]
    %v1468 = vld [vmem:[#allocation14 + $0x150] sm:$0xff]
    %v1469 = vld [vmem:[#allocation14 + $0x158] sm:$0xff]
    %v1470 = vld [vmem:[#allocation14 + $0x160] sm:$0xff]
    %v1471 = vld [vmem:[#allocation14 + $0x168] sm:$0xff]
    %v1472 = vld [vmem:[#allocation14 + $0x170] sm:$0xff]
    %v1473 = vld [vmem:[#allocation14 + $0x178] sm:$0xff]
    %v1474 = vld [vmem:[#allocation14 + $0x180] sm:$0xff]
    %v1475 = vld [vmem:[#allocation14 + $0x188] sm:$0xff]
    %v1476 = vld [vmem:[#allocation14 + $0x190] sm:$0xff]
    %v1477 = vld [vmem:[#allocation14 + $0x198] sm:$0xff]
    %v1478 = vld [vmem:[#allocation14 + $0x1a0] sm:$0xff]
    %v1479 = vld [vmem:[#allocation14 + $0x1a8] sm:$0xff]
    %v1480 = vld [vmem:[#allocation14 + $0x1b0] sm:$0xff]
    %v1481 = vld [vmem:[#allocation14 + $0x1b8] sm:$0xff]
    %v1482 = vld [vmem:[#allocation14 + $0x1c0] sm:$0xff]
    %v1483 = vld [vmem:[#allocation14 + $0x1c8] sm:$0xff]
    %v1484 = vld [vmem:[#allocation14 + $0x1d0] sm:$0xff]
    %v1485 = vld [vmem:[#allocation14 + $0x1d8] sm:$0xff]
    %v1486 = vld [vmem:[#allocation14 + $0x1e0] sm:$0xff]
    %v1487 = vld [vmem:[#allocation14 + $0x1e8] sm:$0xff]
    %v1488 = vld [vmem:[#allocation14 + $0x1f0] sm:$0xff]
    %v1489 = vld [vmem:[#allocation14 + $0x1f8] sm:$0xff]
    %v1490 = vld [vmem:[%s10] sm:$0xf]
    %v1492 = vlaneseq
    %v1493 = vshrl.u32 %v1492, 7
    %v1494 = vsub.s32 0, %v1493
    %v1495 = vrot.slane %v1490, %v1494
    %v1496 = vlaneseq
    %v1497 = vshrl.u32 %v1496, 7
    %v1498 = vsub.s32 1, %v1497
    %v1499 = vrot.slane %v1490, %v1498
    %v1500 = vlaneseq
    %v1501 = vshrl.u32 %v1500, 7
    %v1502 = vsub.s32 2, %v1501
    %v1503 = vrot.slane %v1490, %v1502
    %v1504 = vlaneseq
    %v1505 = vshrl.u32 %v1504, 7
    %v1506 = vsub.s32 3, %v1505
    %v1507 = vrot.slane %v1490, %v1506
    %v1576 = vunpack.c.l.b16 %v1426
    %v1577 = vunpack.c.h.b16 %v1426
    %v1578 = vunpack.c.l.b16 %v1427
    %v1579 = vunpack.c.h.b16 %v1427
    %v1580 = vunpack.c.l.b16 %v1428
    %v1581 = vunpack.c.h.b16 %v1428
    %v1582 = vunpack.c.l.b16 %v1429
    %v1583 = vunpack.c.h.b16 %v1429
    %v1584 = vunpack.c.l.b16 %v1430
    %v1585 = vunpack.c.h.b16 %v1430
    %v1586 = vunpack.c.l.b16 %v1431
    %v1587 = vunpack.c.h.b16 %v1431
    %v1588 = vunpack.c.l.b16 %v1432
    %v1589 = vunpack.c.h.b16 %v1432
    %v1590 = vunpack.c.l.b16 %v1433
    %v1591 = vunpack.c.h.b16 %v1433
    %v1592 = vunpack.c.l.b16 %v1434
    %v1593 = vunpack.c.h.b16 %v1434
    %v1594 = vunpack.c.l.b16 %v1435
    %v1595 = vunpack.c.h.b16 %v1435
    %v1596 = vunpack.c.l.b16 %v1436
    %v1597 = vunpack.c.h.b16 %v1436
    %v1598 = vunpack.c.l.b16 %v1437
    %v1599 = vunpack.c.h.b16 %v1437
    %v1600 = vunpack.c.l.b16 %v1438
    %v1601 = vunpack.c.h.b16 %v1438
    %v1602 = vunpack.c.l.b16 %v1439
    %v1603 = vunpack.c.h.b16 %v1439
    %v1604 = vunpack.c.l.b16 %v1440
    %v1605 = vunpack.c.h.b16 %v1440
    %v1606 = vunpack.c.l.b16 %v1441
    %v1607 = vunpack.c.h.b16 %v1441
    %v1608 = vunpack.c.l.b16 %v1442
    %v1609 = vunpack.c.h.b16 %v1442
    %v1610 = vunpack.c.l.b16 %v1443
    %v1611 = vunpack.c.h.b16 %v1443
    %v1612 = vunpack.c.l.b16 %v1444
    %v1613 = vunpack.c.h.b16 %v1444
    %v1614 = vunpack.c.l.b16 %v1445
    %v1615 = vunpack.c.h.b16 %v1445
    %v1616 = vunpack.c.l.b16 %v1446
    %v1617 = vunpack.c.h.b16 %v1446
    %v1618 = vunpack.c.l.b16 %v1447
    %v1619 = vunpack.c.h.b16 %v1447
    %v1620 = vunpack.c.l.b16 %v1448
    %v1621 = vunpack.c.h.b16 %v1448
    %v1622 = vunpack.c.l.b16 %v1449
    %v1623 = vunpack.c.h.b16 %v1449
    %v1624 = vunpack.c.l.b16 %v1450
    %v1625 = vunpack.c.h.b16 %v1450
    %v1626 = vunpack.c.l.b16 %v1451
    %v1627 = vunpack.c.h.b16 %v1451
    %v1628 = vunpack.c.l.b16 %v1452
    %v1629 = vunpack.c.h.b16 %v1452
    %v1630 = vunpack.c.l.b16 %v1453
    %v1631 = vunpack.c.h.b16 %v1453
    %v1632 = vunpack.c.l.b16 %v1454
    %v1633 = vunpack.c.h.b16 %v1454
    %v1634 = vunpack.c.l.b16 %v1455
    %v1635 = vunpack.c.h.b16 %v1455
    %v1636 = vunpack.c.l.b16 %v1456
    %v1637 = vunpack.c.h.b16 %v1456
    %v1638 = vunpack.c.l.b16 %v1457
    %v1639 = vunpack.c.h.b16 %v1457
    %v1640 = vunpack.c.l.b16 %v1458
    %v1641 = vunpack.c.h.b16 %v1458
    %v1642 = vunpack.c.l.b16 %v1459
    %v1643 = vunpack.c.h.b16 %v1459
    %v1644 = vunpack.c.l.b16 %v1460
    %v1645 = vunpack.c.h.b16 %v1460
    %v1646 = vunpack.c.l.b16 %v1461
    %v1647 = vunpack.c.h.b16 %v1461
    %v1648 = vunpack.c.l.b16 %v1462
    %v1649 = vunpack.c.h.b16 %v1462
    %v1650 = vunpack.c.l.b16 %v1463
    %v1651 = vunpack.c.h.b16 %v1463
    %v1652 = vunpack.c.l.b16 %v1464
    %v1653 = vunpack.c.h.b16 %v1464
    %v1654 = vunpack.c.l.b16 %v1465
    %v1655 = vunpack.c.h.b16 %v1465
    %v1656 = vunpack.c.l.b16 %v1466
    %v1657 = vunpack.c.h.b16 %v1466
    %v1658 = vunpack.c.l.b16 %v1467
    %v1659 = vunpack.c.h.b16 %v1467
    %v1660 = vunpack.c.l.b16 %v1468
    %v1661 = vunpack.c.h.b16 %v1468
    %v1662 = vunpack.c.l.b16 %v1469
    %v1663 = vunpack.c.h.b16 %v1469
    %v1664 = vunpack.c.l.b16 %v1470
    %v1665 = vunpack.c.h.b16 %v1470
    %v1666 = vunpack.c.l.b16 %v1471
    %v1667 = vunpack.c.h.b16 %v1471
    %v1668 = vunpack.c.l.b16 %v1472
    %v1669 = vunpack.c.h.b16 %v1472
    %v1670 = vunpack.c.l.b16 %v1473
    %v1671 = vunpack.c.h.b16 %v1473
    %v1672 = vunpack.c.l.b16 %v1474
    %v1673 = vunpack.c.h.b16 %v1474
    %v1674 = vunpack.c.l.b16 %v1475
    %v1675 = vunpack.c.h.b16 %v1475
    %v1676 = vunpack.c.l.b16 %v1476
    %v1677 = vunpack.c.h.b16 %v1476
    %v1678 = vunpack.c.l.b16 %v1477
    %v1679 = vunpack.c.h.b16 %v1477
    %v1680 = vunpack.c.l.b16 %v1478
    %v1681 = vunpack.c.h.b16 %v1478
    %v1682 = vunpack.c.l.b16 %v1479
    %v1683 = vunpack.c.h.b16 %v1479
    %v1684 = vunpack.c.l.b16 %v1480
    %v1685 = vunpack.c.h.b16 %v1480
    %v1686 = vunpack.c.l.b16 %v1481
    %v1687 = vunpack.c.h.b16 %v1481
    %v1688 = vunpack.c.l.b16 %v1482
    %v1689 = vunpack.c.h.b16 %v1482
    %v1690 = vunpack.c.l.b16 %v1483
    %v1691 = vunpack.c.h.b16 %v1483
    %v1692 = vunpack.c.l.b16 %v1484
    %v1693 = vunpack.c.h.b16 %v1484
    %v1694 = vunpack.c.l.b16 %v1485
    %v1695 = vunpack.c.h.b16 %v1485
    %v1696 = vunpack.c.l.b16 %v1486
    %v1697 = vunpack.c.h.b16 %v1486
    %v1698 = vunpack.c.l.b16 %v1487
    %v1699 = vunpack.c.h.b16 %v1487
    %v1700 = vunpack.c.l.b16 %v1488
    %v1701 = vunpack.c.h.b16 %v1488
    %v1702 = vunpack.c.l.b16 %v1489
    %v1703 = vunpack.c.h.b16 %v1489
    %v1704 = vpack.c.b16 %v1580, %v1576
    %v1705 = vpack.c.b16 %v1581, %v1577
    %v1706 = vpack.c.b16 %v1582, %v1578
    %v1707 = vpack.c.b16 %v1583, %v1579
    %v1708 = vpack.c.b16 %v1588, %v1584
    %v1709 = vpack.c.b16 %v1589, %v1585
    %v1710 = vpack.c.b16 %v1590, %v1586
    %v1711 = vpack.c.b16 %v1591, %v1587
    %v1712 = vpack.c.b16 %v1596, %v1592
    %v1713 = vpack.c.b16 %v1597, %v1593
    %v1714 = vpack.c.b16 %v1598, %v1594
    %v1715 = vpack.c.b16 %v1599, %v1595
    %v1716 = vpack.c.b16 %v1604, %v1600
    %v1717 = vpack.c.b16 %v1605, %v1601
    %v1718 = vpack.c.b16 %v1606, %v1602
    %v1719 = vpack.c.b16 %v1607, %v1603
    %v1720 = vpack.c.b16 %v1612, %v1608
    %v1721 = vpack.c.b16 %v1613, %v1609
    %v1722 = vpack.c.b16 %v1614, %v1610
    %v1723 = vpack.c.b16 %v1615, %v1611
    %v1724 = vpack.c.b16 %v1620, %v1616
    %v1725 = vpack.c.b16 %v1621, %v1617
    %v1726 = vpack.c.b16 %v1622, %v1618
    %v1727 = vpack.c.b16 %v1623, %v1619
    %v1728 = vpack.c.b16 %v1628, %v1624
    %v1729 = vpack.c.b16 %v1629, %v1625
    %v1730 = vpack.c.b16 %v1630, %v1626
    %v1731 = vpack.c.b16 %v1631, %v1627
    %v1732 = vpack.c.b16 %v1636, %v1632
    %v1733 = vpack.c.b16 %v1637, %v1633
    %v1734 = vpack.c.b16 %v1638, %v1634
    %v1735 = vpack.c.b16 %v1639, %v1635
    %v1736 = vpack.c.b16 %v1644, %v1640
    %v1737 = vpack.c.b16 %v1645, %v1641
    %v1738 = vpack.c.b16 %v1646, %v1642
    %v1739 = vpack.c.b16 %v1647, %v1643
    %v1740 = vpack.c.b16 %v1652, %v1648
    %v1741 = vpack.c.b16 %v1653, %v1649
    %v1742 = vpack.c.b16 %v1654, %v1650
    %v1743 = vpack.c.b16 %v1655, %v1651
    %v1744 = vpack.c.b16 %v1660, %v1656
    %v1745 = vpack.c.b16 %v1661, %v1657
    %v1746 = vpack.c.b16 %v1662, %v1658
    %v1747 = vpack.c.b16 %v1663, %v1659
    %v1748 = vpack.c.b16 %v1668, %v1664
    %v1749 = vpack.c.b16 %v1669, %v1665
    %v1750 = vpack.c.b16 %v1670, %v1666
    %v1751 = vpack.c.b16 %v1671, %v1667
    %v1752 = vpack.c.b16 %v1676, %v1672
    %v1753 = vpack.c.b16 %v1677, %v1673
    %v1754 = vpack.c.b16 %v1678, %v1674
    %v1755 = vpack.c.b16 %v1679, %v1675
    %v1756 = vpack.c.b16 %v1684, %v1680
    %v1757 = vpack.c.b16 %v1685, %v1681
    %v1758 = vpack.c.b16 %v1686, %v1682
    %v1759 = vpack.c.b16 %v1687, %v1683
    %v1760 = vpack.c.b16 %v1692, %v1688
    %v1761 = vpack.c.b16 %v1693, %v1689
    %v1762 = vpack.c.b16 %v1694, %v1690
    %v1763 = vpack.c.b16 %v1695, %v1691
    %v1764 = vpack.c.b16 %v1700, %v1696
    %v1765 = vpack.c.b16 %v1701, %v1697
    %v1766 = vpack.c.b16 %v1702, %v1698
    %v1767 = vpack.c.b16 %v1703, %v1699
    %1832 = vmatprep.subr.bf16.mxu0 %v1733
    %1833 = vmatpush1.bf16.msra.mxu0 %v1732
    %1834 = vmatprep.subr.bf16.mxu0 %v1729
    %1835 = vmatpush1.bf16.msra.mxu0 %v1728
    %1836 = vmatprep.subr.bf16.mxu0 %v1725
    %1837 = vmatpush1.bf16.msra.mxu0 %v1724
    %1838 = vmatprep.subr.bf16.mxu0 %v1721
    %1839 = vmatpush1.bf16.msra.mxu0 %v1720
    %1840 = vmatprep.subr.bf16.mxu0 %v1717
    %1841 = vmatpush1.bf16.msra.mxu0 %v1716
    %1842 = vmatprep.subr.bf16.mxu0 %v1713
    %1843 = vmatpush1.bf16.msra.mxu0 %v1712
    %1844 = vmatprep.subr.bf16.mxu0 %v1709
    %1845 = vmatpush1.bf16.msra.mxu0 %v1708
    %1846 = vmatprep.subr.bf16.mxu0 %v1705
    %1847 = vmatpush1.bf16.msra.mxu0 %v1704
    %1848 = vmatprep.subr.bf16.mxu0 %v1765
    %1849 = vmatpush2.bf16.msra.mxu0 %v1764
    %1850 = vmatprep.subr.bf16.mxu0 %v1761
    %1851 = vmatpush2.bf16.msra.mxu0 %v1760
    %1852 = vmatprep.subr.bf16.mxu0 %v1757
    %1853 = vmatpush2.bf16.msra.mxu0 %v1756
    %1854 = vmatprep.subr.bf16.mxu0 %v1753
    %1855 = vmatpush2.bf16.msra.mxu0 %v1752
    %1856 = vmatprep.subr.bf16.mxu0 %v1749
    %1857 = vmatpush2.bf16.msra.mxu0 %v1748
    %1858 = vmatprep.subr.bf16.mxu0 %v1745
    %1859 = vmatpush2.bf16.msra.mxu0 %v1744
    %1860 = vmatprep.subr.bf16.mxu0 %v1741
    %1861 = vmatpush2.bf16.msra.mxu0 %v1740
    %1862 = vmatprep.subr.bf16.mxu0 %v1737
    %1863 = vmatpush2.bf16.msra.mxu0 %v1736
    %1864 = vmatprep.mubr.bf16.mxu0 %v929
    %1865 = vmatmul.mubr.bf16.gmra.mxu0 %v928
    %v1866 = vpop.f32.mrf.mxu0
    %v1867 = vadd.f32 %v1495, %v1866
    %v1868 = vpop.f32.mrf.mxu0
    %v1869 = vadd.f32 %v1499, %v1868
    %v1870 = vpop.f32.mrf.mxu0
    %v1871 = vpop.f32.mrf.mxu0
    %1872 = vdwg.mxu0
    %1873 = vmatprep.subr.bf16.mxu0 %v1735
    %1874 = vmatpush1.bf16.msra.mxu0 %v1734
    %1875 = vmatprep.subr.bf16.mxu0 %v1731
    %1876 = vmatpush1.bf16.msra.mxu0 %v1730
    %1877 = vmatprep.subr.bf16.mxu0 %v1727
    %1878 = vmatpush1.bf16.msra.mxu0 %v1726
    %1879 = vmatprep.subr.bf16.mxu0 %v1723
    %1880 = vmatpush1.bf16.msra.mxu0 %v1722
    %1881 = vmatprep.subr.bf16.mxu0 %v1719
    %1882 = vmatpush1.bf16.msra.mxu0 %v1718
    %1883 = vmatprep.subr.bf16.mxu0 %v1715
    %1884 = vmatpush1.bf16.msra.mxu0 %v1714
    %1885 = vmatprep.subr.bf16.mxu0 %v1711
    %1886 = vmatpush1.bf16.msra.mxu0 %v1710
    %1887 = vmatprep.subr.bf16.mxu0 %v1707
    %1888 = vmatpush1.bf16.msra.mxu0 %v1706
    %1889 = vmatprep.subr.bf16.mxu0 %v1767
    %1890 = vmatpush2.bf16.msra.mxu0 %v1766
    %1891 = vmatprep.subr.bf16.mxu0 %v1763
    %1892 = vmatpush2.bf16.msra.mxu0 %v1762
    %1893 = vmatprep.subr.bf16.mxu0 %v1759
    %1894 = vmatpush2.bf16.msra.mxu0 %v1758
    %1895 = vmatprep.subr.bf16.mxu0 %v1755
    %1896 = vmatpush2.bf16.msra.mxu0 %v1754
    %1897 = vmatprep.subr.bf16.mxu0 %v1751
    %1898 = vmatpush2.bf16.msra.mxu0 %v1750
    %1899 = vmatprep.subr.bf16.mxu0 %v1747
    %1900 = vmatpush2.bf16.msra.mxu0 %v1746
    %1901 = vmatprep.subr.bf16.mxu0 %v1743
    %1902 = vmatpush2.bf16.msra.mxu0 %v1742
    %1903 = vmatprep.subr.bf16.mxu0 %v1739
    %1904 = vmatpush2.bf16.msra.mxu0 %v1738
    %1905 = vmatprep.mubr.bf16.mxu0 %v929
    %1906 = vmatmul.mubr.bf16.gmra.mxu0 %v928
    %v1907 = vpop.f32.mrf.mxu0
    %v1908 = vadd.f32 %v1503, %v1907
    %v1909 = vpop.f32.mrf.mxu0
    %v1910 = vadd.f32 %v1507, %v1909
    %v1911 = vpop.f32.mrf.mxu0
    %v1912 = vpop.f32.mrf.mxu0
    %1913 = vdwg.mxu0
    %v1914 = vmax.f32 %v1867, 0.0
    %v1915 = vmax.f32 %v1869, 0.0
    %v1916 = vmax.f32 %v1908, 0.0
    %v1917 = vmax.f32 %v1910, 0.0
    %v1918 = vpack.c.bf16 %v1914, %v1914
    %v1919 = vpack.c.bf16 %v1915, %v1915
    %v1920 = vpack.c.bf16 %v1916, %v1916
    %v1921 = vpack.c.bf16 %v1917, %v1917
    %v1922 = vld [vmem:[#allocation16] sm:$0xff]
    %v1923 = vld [vmem:[#allocation16 + $0x8] sm:$0xff]
    %v1924 = vld [vmem:[#allocation16 + $0x10] sm:$0xff]
    %v1925 = vld [vmem:[#allocation16 + $0x18] sm:$0xff]
    %v1926 = vld [vmem:[#allocation16 + $0x20] sm:$0xff]
    %v1927 = vld [vmem:[#allocation16 + $0x28] sm:$0xff]
    %v1928 = vld [vmem:[#allocation16 + $0x30] sm:$0xff]
    %v1929 = vld [vmem:[#allocation16 + $0x38] sm:$0xff]
    %v1930 = vld [vmem:[#allocation16 + $0x40] sm:$0xff]
    %v1931 = vld [vmem:[#allocation16 + $0x48] sm:$0xff]
    %v1932 = vld [vmem:[#allocation16 + $0x50] sm:$0xff]
    %v1933 = vld [vmem:[#allocation16 + $0x58] sm:$0xff]
    %v1934 = vld [vmem:[#allocation16 + $0x60] sm:$0xff]
    %v1935 = vld [vmem:[#allocation16 + $0x68] sm:$0xff]
    %v1936 = vld [vmem:[#allocation16 + $0x70] sm:$0xff]
    %v1937 = vld [vmem:[#allocation16 + $0x78] sm:$0xff]
    %v1938 = vld [vmem:[#allocation16 + $0x80] sm:$0xff]
    %v1939 = vld [vmem:[#allocation16 + $0x88] sm:$0xff]
    %v1940 = vld [vmem:[#allocation16 + $0x90] sm:$0xff]
    %v1941 = vld [vmem:[#allocation16 + $0x98] sm:$0xff]
    %v1942 = vld [vmem:[#allocation16 + $0xa0] sm:$0xff]
    %v1943 = vld [vmem:[#allocation16 + $0xa8] sm:$0xff]
    %v1944 = vld [vmem:[#allocation16 + $0xb0] sm:$0xff]
    %v1945 = vld [vmem:[#allocation16 + $0xb8] sm:$0xff]
    %v1946 = vld [vmem:[#allocation16 + $0xc0] sm:$0xff]
    %v1947 = vld [vmem:[#allocation16 + $0xc8] sm:$0xff]
    %v1948 = vld [vmem:[#allocation16 + $0xd0] sm:$0xff]
    %v1949 = vld [vmem:[#allocation16 + $0xd8] sm:$0xff]
    %v1950 = vld [vmem:[#allocation16 + $0xe0] sm:$0xff]
    %v1951 = vld [vmem:[#allocation16 + $0xe8] sm:$0xff]
    %v1952 = vld [vmem:[#allocation16 + $0xf0] sm:$0xff]
    %v1953 = vld [vmem:[#allocation16 + $0xf8] sm:$0xff]
    %v1954 = vld [vmem:[%s12] sm:$0x3]
    %v1956 = vlaneseq
    %v1957 = vshrl.u32 %v1956, 7
    %v1958 = vsub.s32 0, %v1957
    %v1959 = vrot.slane %v1954, %v1958
    %v1960 = vlaneseq
    %v1961 = vshrl.u32 %v1960, 7
    %v1962 = vsub.s32 1, %v1961
    %v1963 = vrot.slane %v1954, %v1962
    %v1998 = vunpack.c.l.b16 %v1922
    %v1999 = vunpack.c.h.b16 %v1922
    %v2000 = vunpack.c.l.b16 %v1923
    %v2001 = vunpack.c.h.b16 %v1923
    %v2002 = vunpack.c.l.b16 %v1924
    %v2003 = vunpack.c.h.b16 %v1924
    %v2004 = vunpack.c.l.b16 %v1925
    %v2005 = vunpack.c.h.b16 %v1925
    %v2006 = vunpack.c.l.b16 %v1926
    %v2007 = vunpack.c.h.b16 %v1926
    %v2008 = vunpack.c.l.b16 %v1927
    %v2009 = vunpack.c.h.b16 %v1927
    %v2010 = vunpack.c.l.b16 %v1928
    %v2011 = vunpack.c.h.b16 %v1928
    %v2012 = vunpack.c.l.b16 %v1929
    %v2013 = vunpack.c.h.b16 %v1929
    %v2014 = vunpack.c.l.b16 %v1930
    %v2015 = vunpack.c.h.b16 %v1930
    %v2016 = vunpack.c.l.b16 %v1931
    %v2017 = vunpack.c.h.b16 %v1931
    %v2018 = vunpack.c.l.b16 %v1932
    %v2019 = vunpack.c.h.b16 %v1932
    %v2020 = vunpack.c.l.b16 %v1933
    %v2021 = vunpack.c.h.b16 %v1933
    %v2022 = vunpack.c.l.b16 %v1934
    %v2023 = vunpack.c.h.b16 %v1934
    %v2024 = vunpack.c.l.b16 %v1935
    %v2025 = vunpack.c.h.b16 %v1935
    %v2026 = vunpack.c.l.b16 %v1936
    %v2027 = vunpack.c.h.b16 %v1936
    %v2028 = vunpack.c.l.b16 %v1937
    %v2029 = vunpack.c.h.b16 %v1937
    %v2030 = vunpack.c.l.b16 %v1938
    %v2031 = vunpack.c.h.b16 %v1938
    %v2032 = vunpack.c.l.b16 %v1939
    %v2033 = vunpack.c.h.b16 %v1939
    %v2034 = vunpack.c.l.b16 %v1940
    %v2035 = vunpack.c.h.b16 %v1940
    %v2036 = vunpack.c.l.b16 %v1941
    %v2037 = vunpack.c.h.b16 %v1941
    %v2038 = vunpack.c.l.b16 %v1942
    %v2039 = vunpack.c.h.b16 %v1942
    %v2040 = vunpack.c.l.b16 %v1943
    %v2041 = vunpack.c.h.b16 %v1943
    %v2042 = vunpack.c.l.b16 %v1944
    %v2043 = vunpack.c.h.b16 %v1944
    %v2044 = vunpack.c.l.b16 %v1945
    %v2045 = vunpack.c.h.b16 %v1945
    %v2046 = vunpack.c.l.b16 %v1946
    %v2047 = vunpack.c.h.b16 %v1946
    %v2048 = vunpack.c.l.b16 %v1947
    %v2049 = vunpack.c.h.b16 %v1947
    %v2050 = vunpack.c.l.b16 %v1948
    %v2051 = vunpack.c.h.b16 %v1948
    %v2052 = vunpack.c.l.b16 %v1949
    %v2053 = vunpack.c.h.b16 %v1949
    %v2054 = vunpack.c.l.b16 %v1950
    %v2055 = vunpack.c.h.b16 %v1950
    %v2056 = vunpack.c.l.b16 %v1951
    %v2057 = vunpack.c.h.b16 %v1951
    %v2058 = vunpack.c.l.b16 %v1952
    %v2059 = vunpack.c.h.b16 %v1952
    %v2060 = vunpack.c.l.b16 %v1953
    %v2061 = vunpack.c.h.b16 %v1953
    %v2062 = vpack.c.b16 %v2000, %v1998
    %v2063 = vpack.c.b16 %v2001, %v1999
    %v2064 = vpack.c.b16 %v2004, %v2002
    %v2065 = vpack.c.b16 %v2005, %v2003
    %v2066 = vpack.c.b16 %v2008, %v2006
    %v2067 = vpack.c.b16 %v2009, %v2007
    %v2068 = vpack.c.b16 %v2012, %v2010
    %v2069 = vpack.c.b16 %v2013, %v2011
    %v2070 = vpack.c.b16 %v2016, %v2014
    %v2071 = vpack.c.b16 %v2017, %v2015
    %v2072 = vpack.c.b16 %v2020, %v2018
    %v2073 = vpack.c.b16 %v2021, %v2019
    %v2074 = vpack.c.b16 %v2024, %v2022
    %v2075 = vpack.c.b16 %v2025, %v2023
    %v2076 = vpack.c.b16 %v2028, %v2026
    %v2077 = vpack.c.b16 %v2029, %v2027
    %v2078 = vpack.c.b16 %v2032, %v2030
    %v2079 = vpack.c.b16 %v2033, %v2031
    %v2080 = vpack.c.b16 %v2036, %v2034
    %v2081 = vpack.c.b16 %v2037, %v2035
    %v2082 = vpack.c.b16 %v2040, %v2038
    %v2083 = vpack.c.b16 %v2041, %v2039
    %v2084 = vpack.c.b16 %v2044, %v2042
    %v2085 = vpack.c.b16 %v2045, %v2043
    %v2086 = vpack.c.b16 %v2048, %v2046
    %v2087 = vpack.c.b16 %v2049, %v2047
    %v2088 = vpack.c.b16 %v2052, %v2050
    %v2089 = vpack.c.b16 %v2053, %v2051
    %v2090 = vpack.c.b16 %v2056, %v2054
    %v2091 = vpack.c.b16 %v2057, %v2055
    %v2092 = vpack.c.b16 %v2060, %v2058
    %v2093 = vpack.c.b16 %v2061, %v2059
    %2126 = vmatprep.subr.bf16.mxu0 %v2077
    %2127 = vmatpush1.bf16.msra.mxu0 %v2076
    %2128 = vmatprep.subr.bf16.mxu0 %v2075
    %2129 = vmatpush1.bf16.msra.mxu0 %v2074
    %2130 = vmatprep.subr.bf16.mxu0 %v2073
    %2131 = vmatpush1.bf16.msra.mxu0 %v2072
    %2132 = vmatprep.subr.bf16.mxu0 %v2071
    %2133 = vmatpush1.bf16.msra.mxu0 %v2070
    %2134 = vmatprep.subr.bf16.mxu0 %v2069
    %2135 = vmatpush1.bf16.msra.mxu0 %v2068
    %2136 = vmatprep.subr.bf16.mxu0 %v2067
    %2137 = vmatpush1.bf16.msra.mxu0 %v2066
    %2138 = vmatprep.subr.bf16.mxu0 %v2065
    %2139 = vmatpush1.bf16.msra.mxu0 %v2064
    %2140 = vmatprep.subr.bf16.mxu0 %v2063
    %2141 = vmatpush1.bf16.msra.mxu0 %v2062
    %2142 = vmatprep.subr.bf16.mxu0 %v2093
    %2143 = vmatpush2.bf16.msra.mxu0 %v2092
    %2144 = vmatprep.subr.bf16.mxu0 %v2091
    %2145 = vmatpush2.bf16.msra.mxu0 %v2090
    %2146 = vmatprep.subr.bf16.mxu0 %v2089
    %2147 = vmatpush2.bf16.msra.mxu0 %v2088
    %2148 = vmatprep.subr.bf16.mxu0 %v2087
    %2149 = vmatpush2.bf16.msra.mxu0 %v2086
    %2150 = vmatprep.subr.bf16.mxu0 %v2085
    %2151 = vmatpush2.bf16.msra.mxu0 %v2084
    %2152 = vmatprep.subr.bf16.mxu0 %v2083
    %2153 = vmatpush2.bf16.msra.mxu0 %v2082
    %2154 = vmatprep.subr.bf16.mxu0 %v2081
    %2155 = vmatpush2.bf16.msra.mxu0 %v2080
    %2156 = vmatprep.subr.bf16.mxu0 %v2079
    %2157 = vmatpush2.bf16.msra.mxu0 %v2078
    %2158 = vmatprep.mubr.bf16.mxu0 %v1423
    %2159 = vmatmul.mubr.bf16.gmra.mxu0 %v1422
    %v2160 = vpop.f32.mrf.mxu0
    %v2161 = vadd.f32 %v1959, %v2160
    %v2162 = vpop.f32.mrf.mxu0
    %v2163 = vadd.f32 %v1963, %v2162
    %v2164 = vpop.f32.mrf.mxu0
    %v2165 = vpop.f32.mrf.mxu0
    %2166 = vdwg.mxu0
    %v2167 = vmax.f32 %v2161, 0.0
    %v2168 = vmax.f32 %v2163, 0.0
    %v2169 = vpack.c.bf16 %v2167, %v2167
    %v2170 = vpack.c.bf16 %v2168, %v2168
    %v2171 = vld [vmem:[#allocation17] sm:$0xff]
    %v2172 = vld [vmem:[#allocation17 + $0x8] sm:$0xff]
    %v2173 = vld [vmem:[#allocation17 + $0x10] sm:$0xff]
    %v2174 = vld [vmem:[#allocation17 + $0x18] sm:$0xff]
    %v2175 = vld [vmem:[#allocation17 + $0x20] sm:$0xff]
    %v2176 = vld [vmem:[#allocation17 + $0x28] sm:$0xff]
    %v2177 = vld [vmem:[#allocation17 + $0x30] sm:$0xff]
    %v2178 = vld [vmem:[#allocation17 + $0x38] sm:$0xff]
    %v2179 = vld [vmem:[#allocation17 + $0x40] sm:$0xff]
    %v2180 = vld [vmem:[#allocation17 + $0x48] sm:$0xff]
    %v2181 = vld [vmem:[#allocation17 + $0x50] sm:$0xff]
    %v2182 = vld [vmem:[#allocation17 + $0x58] sm:$0xff]
    %v2183 = vld [vmem:[#allocation17 + $0x60] sm:$0xff]
    %v2184 = vld [vmem:[#allocation17 + $0x68] sm:$0xff]
    %v2185 = vld [vmem:[#allocation17 + $0x70] sm:$0xff]
    %v2186 = vld [vmem:[#allocation17 + $0x78] sm:$0xff]
    %v2187 = vld [vmem:[#allocation17 + $0x80] sm:$0xff]
    %v2188 = vld [vmem:[#allocation17 + $0x88] sm:$0xff]
    %v2189 = vld [vmem:[#allocation17 + $0x90] sm:$0xff]
    %v2190 = vld [vmem:[#allocation17 + $0x98] sm:$0xff]
    %v2191 = vld [vmem:[#allocation17 + $0xa0] sm:$0xff]
    %v2192 = vld [vmem:[#allocation17 + $0xa8] sm:$0xff]
    %v2193 = vld [vmem:[#allocation17 + $0xb0] sm:$0xff]
    %v2194 = vld [vmem:[#allocation17 + $0xb8] sm:$0xff]
    %v2195 = vld [vmem:[#allocation17 + $0xc0] sm:$0xff]
    %v2196 = vld [vmem:[#allocation17 + $0xc8] sm:$0xff]
    %v2197 = vld [vmem:[#allocation17 + $0xd0] sm:$0xff]
    %v2198 = vld [vmem:[#allocation17 + $0xd8] sm:$0xff]
    %v2199 = vld [vmem:[#allocation17 + $0xe0] sm:$0xff]
    %v2200 = vld [vmem:[#allocation17 + $0xe8] sm:$0xff]
    %v2201 = vld [vmem:[#allocation17 + $0xf0] sm:$0xff]
    %v2202 = vld [vmem:[#allocation17 + $0xf8] sm:$0xff]
    %v2203 = vld [vmem:[%s14] sm:$0x3]
    %v2205 = vlaneseq
    %v2206 = vshrl.u32 %v2205, 7
    %v2207 = vsub.s32 0, %v2206
    %v2208 = vrot.slane %v2203, %v2207
    %v2209 = vlaneseq
    %v2210 = vshrl.u32 %v2209, 7
    %v2211 = vsub.s32 1, %v2210
    %v2212 = vrot.slane %v2203, %v2211
    %v2247 = vunpack.c.l.b16 %v2171
    %v2248 = vunpack.c.h.b16 %v2171
    %v2249 = vunpack.c.l.b16 %v2172
    %v2250 = vunpack.c.h.b16 %v2172
    %v2251 = vunpack.c.l.b16 %v2173
    %v2252 = vunpack.c.h.b16 %v2173
    %v2253 = vunpack.c.l.b16 %v2174
    %v2254 = vunpack.c.h.b16 %v2174
    %v2255 = vunpack.c.l.b16 %v2175
    %v2256 = vunpack.c.h.b16 %v2175
    %v2257 = vunpack.c.l.b16 %v2176
    %v2258 = vunpack.c.h.b16 %v2176
    %v2259 = vunpack.c.l.b16 %v2177
    %v2260 = vunpack.c.h.b16 %v2177
    %v2261 = vunpack.c.l.b16 %v2178
    %v2262 = vunpack.c.h.b16 %v2178
    %v2263 = vunpack.c.l.b16 %v2179
    %v2264 = vunpack.c.h.b16 %v2179
    %v2265 = vunpack.c.l.b16 %v2180
    %v2266 = vunpack.c.h.b16 %v2180
    %v2267 = vunpack.c.l.b16 %v2181
    %v2268 = vunpack.c.h.b16 %v2181
    %v2269 = vunpack.c.l.b16 %v2182
    %v2270 = vunpack.c.h.b16 %v2182
    %v2271 = vunpack.c.l.b16 %v2183
    %v2272 = vunpack.c.h.b16 %v2183
    %v2273 = vunpack.c.l.b16 %v2184
    %v2274 = vunpack.c.h.b16 %v2184
    %v2275 = vunpack.c.l.b16 %v2185
    %v2276 = vunpack.c.h.b16 %v2185
    %v2277 = vunpack.c.l.b16 %v2186
    %v2278 = vunpack.c.h.b16 %v2186
    %v2279 = vunpack.c.l.b16 %v2187
    %v2280 = vunpack.c.h.b16 %v2187
    %v2281 = vunpack.c.l.b16 %v2188
    %v2282 = vunpack.c.h.b16 %v2188
    %v2283 = vunpack.c.l.b16 %v2189
    %v2284 = vunpack.c.h.b16 %v2189
    %v2285 = vunpack.c.l.b16 %v2190
    %v2286 = vunpack.c.h.b16 %v2190
    %v2287 = vunpack.c.l.b16 %v2191
    %v2288 = vunpack.c.h.b16 %v2191
    %v2289 = vunpack.c.l.b16 %v2192
    %v2290 = vunpack.c.h.b16 %v2192
    %v2291 = vunpack.c.l.b16 %v2193
    %v2292 = vunpack.c.h.b16 %v2193
    %v2293 = vunpack.c.l.b16 %v2194
    %v2294 = vunpack.c.h.b16 %v2194
    %v2295 = vunpack.c.l.b16 %v2195
    %v2296 = vunpack.c.h.b16 %v2195
    %v2297 = vunpack.c.l.b16 %v2196
    %v2298 = vunpack.c.h.b16 %v2196
    %v2299 = vunpack.c.l.b16 %v2197
    %v2300 = vunpack.c.h.b16 %v2197
    %v2301 = vunpack.c.l.b16 %v2198
    %v2302 = vunpack.c.h.b16 %v2198
    %v2303 = vunpack.c.l.b16 %v2199
    %v2304 = vunpack.c.h.b16 %v2199
    %v2305 = vunpack.c.l.b16 %v2200
    %v2306 = vunpack.c.h.b16 %v2200
    %v2307 = vunpack.c.l.b16 %v2201
    %v2308 = vunpack.c.h.b16 %v2201
    %v2309 = vunpack.c.l.b16 %v2202
    %v2310 = vunpack.c.h.b16 %v2202
    %v2311 = vpack.c.b16 %v2249, %v2247
    %v2312 = vpack.c.b16 %v2250, %v2248
    %v2313 = vpack.c.b16 %v2253, %v2251
    %v2314 = vpack.c.b16 %v2254, %v2252
    %v2315 = vpack.c.b16 %v2257, %v2255
    %v2316 = vpack.c.b16 %v2258, %v2256
    %v2317 = vpack.c.b16 %v2261, %v2259
    %v2318 = vpack.c.b16 %v2262, %v2260
    %v2319 = vpack.c.b16 %v2265, %v2263
    %v2320 = vpack.c.b16 %v2266, %v2264
    %v2321 = vpack.c.b16 %v2269, %v2267
    %v2322 = vpack.c.b16 %v2270, %v2268
    %v2323 = vpack.c.b16 %v2273, %v2271
    %v2324 = vpack.c.b16 %v2274, %v2272
    %v2325 = vpack.c.b16 %v2277, %v2275
    %v2326 = vpack.c.b16 %v2278, %v2276
    %v2327 = vpack.c.b16 %v2281, %v2279
    %v2328 = vpack.c.b16 %v2282, %v2280
    %v2329 = vpack.c.b16 %v2285, %v2283
    %v2330 = vpack.c.b16 %v2286, %v2284
    %v2331 = vpack.c.b16 %v2289, %v2287
    %v2332 = vpack.c.b16 %v2290, %v2288
    %v2333 = vpack.c.b16 %v2293, %v2291
    %v2334 = vpack.c.b16 %v2294, %v2292
    %v2335 = vpack.c.b16 %v2297, %v2295
    %v2336 = vpack.c.b16 %v2298, %v2296
    %v2337 = vpack.c.b16 %v2301, %v2299
    %v2338 = vpack.c.b16 %v2302, %v2300
    %v2339 = vpack.c.b16 %v2305, %v2303
    %v2340 = vpack.c.b16 %v2306, %v2304
    %v2341 = vpack.c.b16 %v2309, %v2307
    %v2342 = vpack.c.b16 %v2310, %v2308
    %2375 = vmatprep.subr.bf16.mxu0 %v2326
    %2376 = vmatpush1.bf16.msra.mxu0 %v2325
    %2377 = vmatprep.subr.bf16.mxu0 %v2324
    %2378 = vmatpush1.bf16.msra.mxu0 %v2323
    %2379 = vmatprep.subr.bf16.mxu0 %v2322
    %2380 = vmatpush1.bf16.msra.mxu0 %v2321
    %2381 = vmatprep.subr.bf16.mxu0 %v2320
    %2382 = vmatpush1.bf16.msra.mxu0 %v2319
    %2383 = vmatprep.subr.bf16.mxu0 %v2318
    %2384 = vmatpush1.bf16.msra.mxu0 %v2317
    %2385 = vmatprep.subr.bf16.mxu0 %v2316
    %2386 = vmatpush1.bf16.msra.mxu0 %v2315
    %2387 = vmatprep.subr.bf16.mxu0 %v2314
    %2388 = vmatpush1.bf16.msra.mxu0 %v2313
    %2389 = vmatprep.subr.bf16.mxu0 %v2312
    %2390 = vmatpush1.bf16.msra.mxu0 %v2311
    %2391 = vmatprep.subr.bf16.mxu0 %v2342
    %2392 = vmatpush2.bf16.msra.mxu0 %v2341
    %2393 = vmatprep.subr.bf16.mxu0 %v2340
    %2394 = vmatpush2.bf16.msra.mxu0 %v2339
    %2395 = vmatprep.subr.bf16.mxu0 %v2338
    %2396 = vmatpush2.bf16.msra.mxu0 %v2337
    %2397 = vmatprep.subr.bf16.mxu0 %v2336
    %2398 = vmatpush2.bf16.msra.mxu0 %v2335
    %2399 = vmatprep.subr.bf16.mxu0 %v2334
    %2400 = vmatpush2.bf16.msra.mxu0 %v2333
    %2401 = vmatprep.subr.bf16.mxu0 %v2332
    %2402 = vmatpush2.bf16.msra.mxu0 %v2331
    %2403 = vmatprep.subr.bf16.mxu0 %v2330
    %2404 = vmatpush2.bf16.msra.mxu0 %v2329
    %2405 = vmatprep.subr.bf16.mxu0 %v2328
    %2406 = vmatpush2.bf16.msra.mxu0 %v2327
    %2407 = vmatprep.mubr.bf16.mxu0 %v1425
    %2408 = vmatmul.mubr.bf16.gmra.mxu0 %v1424
    %v2409 = vpop.f32.mrf.mxu0
    %v2410 = vadd.f32 %v2208, %v2409
    %v2411 = vpop.f32.mrf.mxu0
    %v2412 = vadd.f32 %v2212, %v2411
    %v2413 = vpop.f32.mrf.mxu0
    %v2414 = vpop.f32.mrf.mxu0
    %2415 = vdwg.mxu0
    %v2416 = vmax.f32 %v2410, 0.0
    %v2417 = vmax.f32 %v2412, 0.0
    %v2418 = vpack.c.bf16 %v2416, %v2416
    %v2419 = vpack.c.bf16 %v2417, %v2417
    %v2420 = vld [vmem:[#allocation19] sm:$0xff]
    %v2421 = vld [vmem:[#allocation19 + $0x8] sm:$0xff]
    %v2422 = vld [vmem:[#allocation19 + $0x10] sm:$0xff]
    %v2423 = vld [vmem:[#allocation19 + $0x18] sm:$0xff]
    %v2424 = vld [vmem:[#allocation19 + $0x20] sm:$0xff]
    %v2425 = vld [vmem:[#allocation19 + $0x28] sm:$0xff]
    %v2426 = vld [vmem:[#allocation19 + $0x30] sm:$0xff]
    %v2427 = vld [vmem:[#allocation19 + $0x38] sm:$0xff]
    %v2428 = vld [vmem:[#allocation19 + $0x40] sm:$0xff]
    %v2429 = vld [vmem:[#allocation19 + $0x48] sm:$0xff]
    %v2430 = vld [vmem:[#allocation19 + $0x50] sm:$0xff]
    %v2431 = vld [vmem:[#allocation19 + $0x58] sm:$0xff]
    %v2432 = vld [vmem:[#allocation19 + $0x60] sm:$0xff]
    %v2433 = vld [vmem:[#allocation19 + $0x68] sm:$0xff]
    %v2434 = vld [vmem:[#allocation19 + $0x70] sm:$0xff]
    %v2435 = vld [vmem:[#allocation19 + $0x78] sm:$0xff]
    %v2436 = vld [vmem:[#allocation19 + $0x80] sm:$0xff]
    %v2437 = vld [vmem:[#allocation19 + $0x88] sm:$0xff]
    %v2438 = vld [vmem:[#allocation19 + $0x90] sm:$0xff]
    %v2439 = vld [vmem:[#allocation19 + $0x98] sm:$0xff]
    %v2440 = vld [vmem:[#allocation19 + $0xa0] sm:$0xff]
    %v2441 = vld [vmem:[#allocation19 + $0xa8] sm:$0xff]
    %v2442 = vld [vmem:[#allocation19 + $0xb0] sm:$0xff]
    %v2443 = vld [vmem:[#allocation19 + $0xb8] sm:$0xff]
    %v2444 = vld [vmem:[#allocation19 + $0xc0] sm:$0xff]
    %v2445 = vld [vmem:[#allocation19 + $0xc8] sm:$0xff]
    %v2446 = vld [vmem:[#allocation19 + $0xd0] sm:$0xff]
    %v2447 = vld [vmem:[#allocation19 + $0xd8] sm:$0xff]
    %v2448 = vld [vmem:[#allocation19 + $0xe0] sm:$0xff]
    %v2449 = vld [vmem:[#allocation19 + $0xe8] sm:$0xff]
    %v2450 = vld [vmem:[#allocation19 + $0xf0] sm:$0xff]
    %v2451 = vld [vmem:[#allocation19 + $0xf8] sm:$0xff]
    %v2452 = vld [vmem:[%s16] sm:$0x3]
    %v2454 = vlaneseq
    %v2455 = vshrl.u32 %v2454, 7
    %v2456 = vsub.s32 0, %v2455
    %v2457 = vrot.slane %v2452, %v2456
    %v2458 = vlaneseq
    %v2459 = vshrl.u32 %v2458, 7
    %v2460 = vsub.s32 1, %v2459
    %v2461 = vrot.slane %v2452, %v2460
    %v2496 = vunpack.c.l.b16 %v2420
    %v2497 = vunpack.c.h.b16 %v2420
    %v2498 = vunpack.c.l.b16 %v2421
    %v2499 = vunpack.c.h.b16 %v2421
    %v2500 = vunpack.c.l.b16 %v2422
    %v2501 = vunpack.c.h.b16 %v2422
    %v2502 = vunpack.c.l.b16 %v2423
    %v2503 = vunpack.c.h.b16 %v2423
    %v2504 = vunpack.c.l.b16 %v2424
    %v2505 = vunpack.c.h.b16 %v2424
    %v2506 = vunpack.c.l.b16 %v2425
    %v2507 = vunpack.c.h.b16 %v2425
    %v2508 = vunpack.c.l.b16 %v2426
    %v2509 = vunpack.c.h.b16 %v2426
    %v2510 = vunpack.c.l.b16 %v2427
    %v2511 = vunpack.c.h.b16 %v2427
    %v2512 = vunpack.c.l.b16 %v2428
    %v2513 = vunpack.c.h.b16 %v2428
    %v2514 = vunpack.c.l.b16 %v2429
    %v2515 = vunpack.c.h.b16 %v2429
    %v2516 = vunpack.c.l.b16 %v2430
    %v2517 = vunpack.c.h.b16 %v2430
    %v2518 = vunpack.c.l.b16 %v2431
    %v2519 = vunpack.c.h.b16 %v2431
    %v2520 = vunpack.c.l.b16 %v2432
    %v2521 = vunpack.c.h.b16 %v2432
    %v2522 = vunpack.c.l.b16 %v2433
    %v2523 = vunpack.c.h.b16 %v2433
    %v2524 = vunpack.c.l.b16 %v2434
    %v2525 = vunpack.c.h.b16 %v2434
    %v2526 = vunpack.c.l.b16 %v2435
    %v2527 = vunpack.c.h.b16 %v2435
    %v2528 = vunpack.c.l.b16 %v2436
    %v2529 = vunpack.c.h.b16 %v2436
    %v2530 = vunpack.c.l.b16 %v2437
    %v2531 = vunpack.c.h.b16 %v2437
    %v2532 = vunpack.c.l.b16 %v2438
    %v2533 = vunpack.c.h.b16 %v2438
    %v2534 = vunpack.c.l.b16 %v2439
    %v2535 = vunpack.c.h.b16 %v2439
    %v2536 = vunpack.c.l.b16 %v2440
    %v2537 = vunpack.c.h.b16 %v2440
    %v2538 = vunpack.c.l.b16 %v2441
    %v2539 = vunpack.c.h.b16 %v2441
    %v2540 = vunpack.c.l.b16 %v2442
    %v2541 = vunpack.c.h.b16 %v2442
    %v2542 = vunpack.c.l.b16 %v2443
    %v2543 = vunpack.c.h.b16 %v2443
    %v2544 = vunpack.c.l.b16 %v2444
    %v2545 = vunpack.c.h.b16 %v2444
    %v2546 = vunpack.c.l.b16 %v2445
    %v2547 = vunpack.c.h.b16 %v2445
    %v2548 = vunpack.c.l.b16 %v2446
    %v2549 = vunpack.c.h.b16 %v2446
    %v2550 = vunpack.c.l.b16 %v2447
    %v2551 = vunpack.c.h.b16 %v2447
    %v2552 = vunpack.c.l.b16 %v2448
    %v2553 = vunpack.c.h.b16 %v2448
    %v2554 = vunpack.c.l.b16 %v2449
    %v2555 = vunpack.c.h.b16 %v2449
    %v2556 = vunpack.c.l.b16 %v2450
    %v2557 = vunpack.c.h.b16 %v2450
    %v2558 = vunpack.c.l.b16 %v2451
    %v2559 = vunpack.c.h.b16 %v2451
    %v2560 = vpack.c.b16 %v2498, %v2496
    %v2561 = vpack.c.b16 %v2499, %v2497
    %v2562 = vpack.c.b16 %v2502, %v2500
    %v2563 = vpack.c.b16 %v2503, %v2501
    %v2564 = vpack.c.b16 %v2506, %v2504
    %v2565 = vpack.c.b16 %v2507, %v2505
    %v2566 = vpack.c.b16 %v2510, %v2508
    %v2567 = vpack.c.b16 %v2511, %v2509
    %v2568 = vpack.c.b16 %v2514, %v2512
    %v2569 = vpack.c.b16 %v2515, %v2513
    %v2570 = vpack.c.b16 %v2518, %v2516
    %v2571 = vpack.c.b16 %v2519, %v2517
    %v2572 = vpack.c.b16 %v2522, %v2520
    %v2573 = vpack.c.b16 %v2523, %v2521
    %v2574 = vpack.c.b16 %v2526, %v2524
    %v2575 = vpack.c.b16 %v2527, %v2525
    %v2576 = vpack.c.b16 %v2530, %v2528
    %v2577 = vpack.c.b16 %v2531, %v2529
    %v2578 = vpack.c.b16 %v2534, %v2532
    %v2579 = vpack.c.b16 %v2535, %v2533
    %v2580 = vpack.c.b16 %v2538, %v2536
    %v2581 = vpack.c.b16 %v2539, %v2537
    %v2582 = vpack.c.b16 %v2542, %v2540
    %v2583 = vpack.c.b16 %v2543, %v2541
    %v2584 = vpack.c.b16 %v2546, %v2544
    %v2585 = vpack.c.b16 %v2547, %v2545
    %v2586 = vpack.c.b16 %v2550, %v2548
    %v2587 = vpack.c.b16 %v2551, %v2549
    %v2588 = vpack.c.b16 %v2554, %v2552
    %v2589 = vpack.c.b16 %v2555, %v2553
    %v2590 = vpack.c.b16 %v2558, %v2556
    %v2591 = vpack.c.b16 %v2559, %v2557
    %2624 = vmatprep.subr.bf16.mxu0 %v2575
    %2625 = vmatpush1.bf16.msra.mxu0 %v2574
    %2626 = vmatprep.subr.bf16.mxu0 %v2573
    %2627 = vmatpush1.bf16.msra.mxu0 %v2572
    %2628 = vmatprep.subr.bf16.mxu0 %v2571
    %2629 = vmatpush1.bf16.msra.mxu0 %v2570
    %2630 = vmatprep.subr.bf16.mxu0 %v2569
    %2631 = vmatpush1.bf16.msra.mxu0 %v2568
    %2632 = vmatprep.subr.bf16.mxu0 %v2567
    %2633 = vmatpush1.bf16.msra.mxu0 %v2566
    %2634 = vmatprep.subr.bf16.mxu0 %v2565
    %2635 = vmatpush1.bf16.msra.mxu0 %v2564
    %2636 = vmatprep.subr.bf16.mxu0 %v2563
    %2637 = vmatpush1.bf16.msra.mxu0 %v2562
    %2638 = vmatprep.subr.bf16.mxu0 %v2561
    %2639 = vmatpush1.bf16.msra.mxu0 %v2560
    %2640 = vmatprep.subr.bf16.mxu0 %v2591
    %2641 = vmatpush2.bf16.msra.mxu0 %v2590
    %2642 = vmatprep.subr.bf16.mxu0 %v2589
    %2643 = vmatpush2.bf16.msra.mxu0 %v2588
    %2644 = vmatprep.subr.bf16.mxu0 %v2587
    %2645 = vmatpush2.bf16.msra.mxu0 %v2586
    %2646 = vmatprep.subr.bf16.mxu0 %v2585
    %2647 = vmatpush2.bf16.msra.mxu0 %v2584
    %2648 = vmatprep.subr.bf16.mxu0 %v2583
    %2649 = vmatpush2.bf16.msra.mxu0 %v2582
    %2650 = vmatprep.subr.bf16.mxu0 %v2581
    %2651 = vmatpush2.bf16.msra.mxu0 %v2580
    %2652 = vmatprep.subr.bf16.mxu0 %v2579
    %2653 = vmatpush2.bf16.msra.mxu0 %v2578
    %2654 = vmatprep.subr.bf16.mxu0 %v2577
    %2655 = vmatpush2.bf16.msra.mxu0 %v2576
    %2656 = vmatprep.mubr.bf16.mxu0 %v1919
    %2657 = vmatmul.mubr.bf16.gmra.mxu0 %v1918
    %v2658 = vpop.f32.mrf.mxu0
    %v2659 = vadd.f32 %v2457, %v2658
    %v2660 = vpop.f32.mrf.mxu0
    %v2661 = vadd.f32 %v2461, %v2660
    %v2662 = vpop.f32.mrf.mxu0
    %v2663 = vpop.f32.mrf.mxu0
    %2664 = vdwg.mxu0
    %v2665 = vmax.f32 %v2659, 0.0
    %v2666 = vmax.f32 %v2661, 0.0
    %v2667 = vpack.c.bf16 %v2665, %v2665
    %v2668 = vpack.c.bf16 %v2666, %v2666
    %v2669 = vld [vmem:[#allocation20] sm:$0xff]
    %v2670 = vld [vmem:[#allocation20 + $0x8] sm:$0xff]
    %v2671 = vld [vmem:[#allocation20 + $0x10] sm:$0xff]
    %v2672 = vld [vmem:[#allocation20 + $0x18] sm:$0xff]
    %v2673 = vld [vmem:[#allocation20 + $0x20] sm:$0xff]
    %v2674 = vld [vmem:[#allocation20 + $0x28] sm:$0xff]
    %v2675 = vld [vmem:[#allocation20 + $0x30] sm:$0xff]
    %v2676 = vld [vmem:[#allocation20 + $0x38] sm:$0xff]
    %v2677 = vld [vmem:[#allocation20 + $0x40] sm:$0xff]
    %v2678 = vld [vmem:[#allocation20 + $0x48] sm:$0xff]
    %v2679 = vld [vmem:[#allocation20 + $0x50] sm:$0xff]
    %v2680 = vld [vmem:[#allocation20 + $0x58] sm:$0xff]
    %v2681 = vld [vmem:[#allocation20 + $0x60] sm:$0xff]
    %v2682 = vld [vmem:[#allocation20 + $0x68] sm:$0xff]
    %v2683 = vld [vmem:[#allocation20 + $0x70] sm:$0xff]
    %v2684 = vld [vmem:[#allocation20 + $0x78] sm:$0xff]
    %v2685 = vld [vmem:[#allocation20 + $0x80] sm:$0xff]
    %v2686 = vld [vmem:[#allocation20 + $0x88] sm:$0xff]
    %v2687 = vld [vmem:[#allocation20 + $0x90] sm:$0xff]
    %v2688 = vld [vmem:[#allocation20 + $0x98] sm:$0xff]
    %v2689 = vld [vmem:[#allocation20 + $0xa0] sm:$0xff]
    %v2690 = vld [vmem:[#allocation20 + $0xa8] sm:$0xff]
    %v2691 = vld [vmem:[#allocation20 + $0xb0] sm:$0xff]
    %v2692 = vld [vmem:[#allocation20 + $0xb8] sm:$0xff]
    %v2693 = vld [vmem:[#allocation20 + $0xc0] sm:$0xff]
    %v2694 = vld [vmem:[#allocation20 + $0xc8] sm:$0xff]
    %v2695 = vld [vmem:[#allocation20 + $0xd0] sm:$0xff]
    %v2696 = vld [vmem:[#allocation20 + $0xd8] sm:$0xff]
    %v2697 = vld [vmem:[#allocation20 + $0xe0] sm:$0xff]
    %v2698 = vld [vmem:[#allocation20 + $0xe8] sm:$0xff]
    %v2699 = vld [vmem:[#allocation20 + $0xf0] sm:$0xff]
    %v2700 = vld [vmem:[#allocation20 + $0xf8] sm:$0xff]
    %v2701 = vld [vmem:[%s18] sm:$0x3]
    %v2703 = vlaneseq
    %v2704 = vshrl.u32 %v2703, 7
    %v2705 = vsub.s32 0, %v2704
    %v2706 = vrot.slane %v2701, %v2705
    %v2707 = vlaneseq
    %v2708 = vshrl.u32 %v2707, 7
    %v2709 = vsub.s32 1, %v2708
    %v2710 = vrot.slane %v2701, %v2709
    %v2745 = vunpack.c.l.b16 %v2669
    %v2746 = vunpack.c.h.b16 %v2669
    %v2747 = vunpack.c.l.b16 %v2670
    %v2748 = vunpack.c.h.b16 %v2670
    %v2749 = vunpack.c.l.b16 %v2671
    %v2750 = vunpack.c.h.b16 %v2671
    %v2751 = vunpack.c.l.b16 %v2672
    %v2752 = vunpack.c.h.b16 %v2672
    %v2753 = vunpack.c.l.b16 %v2673
    %v2754 = vunpack.c.h.b16 %v2673
    %v2755 = vunpack.c.l.b16 %v2674
    %v2756 = vunpack.c.h.b16 %v2674
    %v2757 = vunpack.c.l.b16 %v2675
    %v2758 = vunpack.c.h.b16 %v2675
    %v2759 = vunpack.c.l.b16 %v2676
    %v2760 = vunpack.c.h.b16 %v2676
    %v2761 = vunpack.c.l.b16 %v2677
    %v2762 = vunpack.c.h.b16 %v2677
    %v2763 = vunpack.c.l.b16 %v2678
    %v2764 = vunpack.c.h.b16 %v2678
    %v2765 = vunpack.c.l.b16 %v2679
    %v2766 = vunpack.c.h.b16 %v2679
    %v2767 = vunpack.c.l.b16 %v2680
    %v2768 = vunpack.c.h.b16 %v2680
    %v2769 = vunpack.c.l.b16 %v2681
    %v2770 = vunpack.c.h.b16 %v2681
    %v2771 = vunpack.c.l.b16 %v2682
    %v2772 = vunpack.c.h.b16 %v2682
    %v2773 = vunpack.c.l.b16 %v2683
    %v2774 = vunpack.c.h.b16 %v2683
    %v2775 = vunpack.c.l.b16 %v2684
    %v2776 = vunpack.c.h.b16 %v2684
    %v2777 = vunpack.c.l.b16 %v2685
    %v2778 = vunpack.c.h.b16 %v2685
    %v2779 = vunpack.c.l.b16 %v2686
    %v2780 = vunpack.c.h.b16 %v2686
    %v2781 = vunpack.c.l.b16 %v2687
    %v2782 = vunpack.c.h.b16 %v2687
    %v2783 = vunpack.c.l.b16 %v2688
    %v2784 = vunpack.c.h.b16 %v2688
    %v2785 = vunpack.c.l.b16 %v2689
    %v2786 = vunpack.c.h.b16 %v2689
    %v2787 = vunpack.c.l.b16 %v2690
    %v2788 = vunpack.c.h.b16 %v2690
    %v2789 = vunpack.c.l.b16 %v2691
    %v2790 = vunpack.c.h.b16 %v2691
    %v2791 = vunpack.c.l.b16 %v2692
    %v2792 = vunpack.c.h.b16 %v2692
    %v2793 = vunpack.c.l.b16 %v2693
    %v2794 = vunpack.c.h.b16 %v2693
    %v2795 = vunpack.c.l.b16 %v2694
    %v2796 = vunpack.c.h.b16 %v2694
    %v2797 = vunpack.c.l.b16 %v2695
    %v2798 = vunpack.c.h.b16 %v2695
    %v2799 = vunpack.c.l.b16 %v2696
    %v2800 = vunpack.c.h.b16 %v2696
    %v2801 = vunpack.c.l.b16 %v2697
    %v2802 = vunpack.c.h.b16 %v2697
    %v2803 = vunpack.c.l.b16 %v2698
    %v2804 = vunpack.c.h.b16 %v2698
    %v2805 = vunpack.c.l.b16 %v2699
    %v2806 = vunpack.c.h.b16 %v2699
    %v2807 = vunpack.c.l.b16 %v2700
    %v2808 = vunpack.c.h.b16 %v2700
    %v2809 = vpack.c.b16 %v2747, %v2745
    %v2810 = vpack.c.b16 %v2748, %v2746
    %v2811 = vpack.c.b16 %v2751, %v2749
    %v2812 = vpack.c.b16 %v2752, %v2750
    %v2813 = vpack.c.b16 %v2755, %v2753
    %v2814 = vpack.c.b16 %v2756, %v2754
    %v2815 = vpack.c.b16 %v2759, %v2757
    %v2816 = vpack.c.b16 %v2760, %v2758
    %v2817 = vpack.c.b16 %v2763, %v2761
    %v2818 = vpack.c.b16 %v2764, %v2762
    %v2819 = vpack.c.b16 %v2767, %v2765
    %v2820 = vpack.c.b16 %v2768, %v2766
    %v2821 = vpack.c.b16 %v2771, %v2769
    %v2822 = vpack.c.b16 %v2772, %v2770
    %v2823 = vpack.c.b16 %v2775, %v2773
    %v2824 = vpack.c.b16 %v2776, %v2774
    %v2825 = vpack.c.b16 %v2779, %v2777
    %v2826 = vpack.c.b16 %v2780, %v2778
    %v2827 = vpack.c.b16 %v2783, %v2781
    %v2828 = vpack.c.b16 %v2784, %v2782
    %v2829 = vpack.c.b16 %v2787, %v2785
    %v2830 = vpack.c.b16 %v2788, %v2786
    %v2831 = vpack.c.b16 %v2791, %v2789
    %v2832 = vpack.c.b16 %v2792, %v2790
    %v2833 = vpack.c.b16 %v2795, %v2793
    %v2834 = vpack.c.b16 %v2796, %v2794
    %v2835 = vpack.c.b16 %v2799, %v2797
    %v2836 = vpack.c.b16 %v2800, %v2798
    %v2837 = vpack.c.b16 %v2803, %v2801
    %v2838 = vpack.c.b16 %v2804, %v2802
    %v2839 = vpack.c.b16 %v2807, %v2805
    %v2840 = vpack.c.b16 %v2808, %v2806
    %2873 = vmatprep.subr.bf16.mxu0 %v2824
    %2874 = vmatpush1.bf16.msra.mxu0 %v2823
    %2875 = vmatprep.subr.bf16.mxu0 %v2822
    %2876 = vmatpush1.bf16.msra.mxu0 %v2821
    %2877 = vmatprep.subr.bf16.mxu0 %v2820
    %2878 = vmatpush1.bf16.msra.mxu0 %v2819
    %2879 = vmatprep.subr.bf16.mxu0 %v2818
    %2880 = vmatpush1.bf16.msra.mxu0 %v2817
    %2881 = vmatprep.subr.bf16.mxu0 %v2816
    %2882 = vmatpush1.bf16.msra.mxu0 %v2815
    %2883 = vmatprep.subr.bf16.mxu0 %v2814
    %2884 = vmatpush1.bf16.msra.mxu0 %v2813
    %2885 = vmatprep.subr.bf16.mxu0 %v2812
    %2886 = vmatpush1.bf16.msra.mxu0 %v2811
    %2887 = vmatprep.subr.bf16.mxu0 %v2810
    %2888 = vmatpush1.bf16.msra.mxu0 %v2809
    %2889 = vmatprep.subr.bf16.mxu0 %v2840
    %2890 = vmatpush2.bf16.msra.mxu0 %v2839
    %2891 = vmatprep.subr.bf16.mxu0 %v2838
    %2892 = vmatpush2.bf16.msra.mxu0 %v2837
    %2893 = vmatprep.subr.bf16.mxu0 %v2836
    %2894 = vmatpush2.bf16.msra.mxu0 %v2835
    %2895 = vmatprep.subr.bf16.mxu0 %v2834
    %2896 = vmatpush2.bf16.msra.mxu0 %v2833
    %2897 = vmatprep.subr.bf16.mxu0 %v2832
    %2898 = vmatpush2.bf16.msra.mxu0 %v2831
    %2899 = vmatprep.subr.bf16.mxu0 %v2830
    %2900 = vmatpush2.bf16.msra.mxu0 %v2829
    %2901 = vmatprep.subr.bf16.mxu0 %v2828
    %2902 = vmatpush2.bf16.msra.mxu0 %v2827
    %2903 = vmatprep.subr.bf16.mxu0 %v2826
    %2904 = vmatpush2.bf16.msra.mxu0 %v2825
    %2905 = vmatprep.mubr.bf16.mxu0 %v1921
    %2906 = vmatmul.mubr.bf16.gmra.mxu0 %v1920
    %v2907 = vpop.f32.mrf.mxu0
    %v2908 = vadd.f32 %v2706, %v2907
    %v2909 = vpop.f32.mrf.mxu0
    %v2910 = vadd.f32 %v2710, %v2909
    %v2911 = vpop.f32.mrf.mxu0
    %v2912 = vpop.f32.mrf.mxu0
    %2913 = vdwg.mxu0
    %v2914 = vmax.f32 %v2908, 0.0
    %v2915 = vmax.f32 %v2910, 0.0
    %v2916 = vpack.c.bf16 %v2914, %v2914
    %v2917 = vpack.c.bf16 %v2915, %v2915
    %v2918 = vld [vmem:[#allocation22] sm:$0xf]
    %v2919 = vld [vmem:[#allocation22 + $0x4] sm:$0xf]
    %v2920 = vld [vmem:[#allocation22 + $0x8] sm:$0xf]
    %v2921 = vld [vmem:[#allocation22 + $0xc] sm:$0xf]
    %v2922 = vld [vmem:[#allocation22 + $0x10] sm:$0xf]
    %v2923 = vld [vmem:[#allocation22 + $0x14] sm:$0xf]
    %v2924 = vld [vmem:[#allocation22 + $0x18] sm:$0xf]
    %v2925 = vld [vmem:[#allocation22 + $0x1c] sm:$0xf]
    %v2926 = vld [vmem:[#allocation22 + $0x20] sm:$0xf]
    %v2927 = vld [vmem:[#allocation22 + $0x24] sm:$0xf]
    %v2928 = vld [vmem:[#allocation22 + $0x28] sm:$0xf]
    %v2929 = vld [vmem:[#allocation22 + $0x2c] sm:$0xf]
    %v2930 = vld [vmem:[#allocation22 + $0x30] sm:$0xf]
    %v2931 = vld [vmem:[#allocation22 + $0x34] sm:$0xf]
    %v2932 = vld [vmem:[#allocation22 + $0x38] sm:$0xf]
    %v2933 = vld [vmem:[#allocation22 + $0x3c] sm:$0xf]
    %v2934 = vld [vmem:[#allocation22 + $0x40] sm:$0xf]
    %v2935 = vld [vmem:[#allocation22 + $0x44] sm:$0xf]
    %v2936 = vld [vmem:[#allocation22 + $0x48] sm:$0xf]
    %v2937 = vld [vmem:[#allocation22 + $0x4c] sm:$0xf]
    %v2938 = vld [vmem:[#allocation22 + $0x50] sm:$0xf]
    %v2939 = vld [vmem:[#allocation22 + $0x54] sm:$0xf]
    %v2940 = vld [vmem:[#allocation22 + $0x58] sm:$0xf]
    %v2941 = vld [vmem:[#allocation22 + $0x5c] sm:$0xf]
    %v2942 = vld [vmem:[#allocation22 + $0x60] sm:$0xf]
    %v2943 = vld [vmem:[#allocation22 + $0x64] sm:$0xf]
    %v2944 = vld [vmem:[#allocation22 + $0x68] sm:$0xf]
    %v2945 = vld [vmem:[#allocation22 + $0x6c] sm:$0xf]
    %v2946 = vld [vmem:[#allocation22 + $0x70] sm:$0xf]
    %v2947 = vld [vmem:[#allocation22 + $0x74] sm:$0xf]
    %v2948 = vld [vmem:[#allocation22 + $0x78] sm:$0xf]
    %v2949 = vld [vmem:[#allocation22 + $0x7c] sm:$0xf]
    %v2950 = vld [vmem:[#allocation23] sm:$0xf]
    %v2951 = vld [vmem:[#allocation23 + $0x4] sm:$0xf]
    %v2952 = vld [vmem:[#allocation23 + $0x8] sm:$0xf]
    %v2953 = vld [vmem:[#allocation23 + $0xc] sm:$0xf]
    %v2954 = vld [vmem:[#allocation23 + $0x10] sm:$0xf]
    %v2955 = vld [vmem:[#allocation23 + $0x14] sm:$0xf]
    %v2956 = vld [vmem:[#allocation23 + $0x18] sm:$0xf]
    %v2957 = vld [vmem:[#allocation23 + $0x1c] sm:$0xf]
    %v2958 = vld [vmem:[#allocation23 + $0x20] sm:$0xf]
    %v2959 = vld [vmem:[#allocation23 + $0x24] sm:$0xf]
    %v2960 = vld [vmem:[#allocation23 + $0x28] sm:$0xf]
    %v2961 = vld [vmem:[#allocation23 + $0x2c] sm:$0xf]
    %v2962 = vld [vmem:[#allocation23 + $0x30] sm:$0xf]
    %v2963 = vld [vmem:[#allocation23 + $0x34] sm:$0xf]
    %v2964 = vld [vmem:[#allocation23 + $0x38] sm:$0xf]
    %v2965 = vld [vmem:[#allocation23 + $0x3c] sm:$0xf]
    %v2966 = vld [vmem:[#allocation23 + $0x40] sm:$0xf]
    %v2967 = vld [vmem:[#allocation23 + $0x44] sm:$0xf]
    %v2968 = vld [vmem:[#allocation23 + $0x48] sm:$0xf]
    %v2969 = vld [vmem:[#allocation23 + $0x4c] sm:$0xf]
    %v2970 = vld [vmem:[#allocation23 + $0x50] sm:$0xf]
    %v2971 = vld [vmem:[#allocation23 + $0x54] sm:$0xf]
    %v2972 = vld [vmem:[#allocation23 + $0x58] sm:$0xf]
    %v2973 = vld [vmem:[#allocation23 + $0x5c] sm:$0xf]
    %v2974 = vld [vmem:[#allocation23 + $0x60] sm:$0xf]
    %v2975 = vld [vmem:[#allocation23 + $0x64] sm:$0xf]
    %v2976 = vld [vmem:[#allocation23 + $0x68] sm:$0xf]
    %v2977 = vld [vmem:[#allocation23 + $0x6c] sm:$0xf]
    %v2978 = vld [vmem:[#allocation23 + $0x70] sm:$0xf]
    %v2979 = vld [vmem:[#allocation23 + $0x74] sm:$0xf]
    %v2980 = vld [vmem:[#allocation23 + $0x78] sm:$0xf]
    %v2981 = vld [vmem:[#allocation23 + $0x7c] sm:$0xf]
    %v3014 = vunpack.c.l.b16 %v2950
    %v3015 = vunpack.c.l.b16 %v2951
    %v3016 = vunpack.c.l.b16 %v2952
    %v3017 = vunpack.c.l.b16 %v2953
    %v3018 = vunpack.c.l.b16 %v2954
    %v3019 = vunpack.c.l.b16 %v2955
    %v3020 = vunpack.c.l.b16 %v2956
    %v3021 = vunpack.c.l.b16 %v2957
    %v3022 = vunpack.c.l.b16 %v2958
    %v3023 = vunpack.c.l.b16 %v2959
    %v3024 = vunpack.c.l.b16 %v2960
    %v3025 = vunpack.c.l.b16 %v2961
    %v3026 = vunpack.c.l.b16 %v2962
    %v3027 = vunpack.c.l.b16 %v2963
    %v3028 = vunpack.c.l.b16 %v2964
    %v3029 = vunpack.c.l.b16 %v2965
    %v3030 = vunpack.c.l.b16 %v2966
    %v3031 = vunpack.c.l.b16 %v2967
    %v3032 = vunpack.c.l.b16 %v2968
    %v3033 = vunpack.c.l.b16 %v2969
    %v3034 = vunpack.c.l.b16 %v2970
    %v3035 = vunpack.c.l.b16 %v2971
    %v3036 = vunpack.c.l.b16 %v2972
    %v3037 = vunpack.c.l.b16 %v2973
    %v3038 = vunpack.c.l.b16 %v2974
    %v3039 = vunpack.c.l.b16 %v2975
    %v3040 = vunpack.c.l.b16 %v2976
    %v3041 = vunpack.c.l.b16 %v2977
    %v3042 = vunpack.c.l.b16 %v2978
    %v3043 = vunpack.c.l.b16 %v2979
    %v3044 = vunpack.c.l.b16 %v2980
    %v3045 = vunpack.c.l.b16 %v2981
    %v3046 = vpack.c.b16 %v3015, %v3014
    %v3047 = vpack.c.b16 %v3017, %v3016
    %v3048 = vpack.c.b16 %v3019, %v3018
    %v3049 = vpack.c.b16 %v3021, %v3020
    %v3050 = vpack.c.b16 %v3023, %v3022
    %v3051 = vpack.c.b16 %v3025, %v3024
    %v3052 = vpack.c.b16 %v3027, %v3026
    %v3053 = vpack.c.b16 %v3029, %v3028
    %v3054 = vpack.c.b16 %v3031, %v3030
    %v3055 = vpack.c.b16 %v3033, %v3032
    %v3056 = vpack.c.b16 %v3035, %v3034
    %v3057 = vpack.c.b16 %v3037, %v3036
    %v3058 = vpack.c.b16 %v3039, %v3038
    %v3059 = vpack.c.b16 %v3041, %v3040
    %v3060 = vpack.c.b16 %v3043, %v3042
    %v3061 = vpack.c.b16 %v3045, %v3044
    %3078 = vmatprep.subr.bf16.mxu0 0
    %3079 = vmatpush1.bf16.msra.mxu0 %v3053
    %3080 = vmatprep.subr.bf16.mxu0 0
    %3081 = vmatpush1.bf16.msra.mxu0 %v3052
    %3082 = vmatprep.subr.bf16.mxu0 0
    %3083 = vmatpush1.bf16.msra.mxu0 %v3051
    %3084 = vmatprep.subr.bf16.mxu0 0
    %3085 = vmatpush1.bf16.msra.mxu0 %v3050
    %3086 = vmatprep.subr.bf16.mxu0 0
    %3087 = vmatpush1.bf16.msra.mxu0 %v3049
    %3088 = vmatprep.subr.bf16.mxu0 0
    %3089 = vmatpush1.bf16.msra.mxu0 %v3048
    %3090 = vmatprep.subr.bf16.mxu0 0
    %3091 = vmatpush1.bf16.msra.mxu0 %v3047
    %3092 = vmatprep.subr.bf16.mxu0 0
    %3093 = vmatpush1.bf16.msra.mxu0 %v3046
    %3094 = vmatprep.subr.bf16.mxu0 0
    %3095 = vmatpush2.bf16.msra.mxu0 %v3061
    %3096 = vmatprep.subr.bf16.mxu0 0
    %3097 = vmatpush2.bf16.msra.mxu0 %v3060
    %3098 = vmatprep.subr.bf16.mxu0 0
    %3099 = vmatpush2.bf16.msra.mxu0 %v3059
    %3100 = vmatprep.subr.bf16.mxu0 0
    %3101 = vmatpush2.bf16.msra.mxu0 %v3058
    %3102 = vmatprep.subr.bf16.mxu0 0
    %3103 = vmatpush2.bf16.msra.mxu0 %v3057
    %3104 = vmatprep.subr.bf16.mxu0 0
    %3105 = vmatpush2.bf16.msra.mxu0 %v3056
    %3106 = vmatprep.subr.bf16.mxu0 0
    %3107 = vmatpush2.bf16.msra.mxu0 %v3055
    %3108 = vmatprep.subr.bf16.mxu0 0
    %3109 = vmatpush2.bf16.msra.mxu0 %v3054
    %3110 = vmatprep.mubr.bf16.mxu0 %v2419
    %3111 = vmatmul.mubr.bf16.gmra.mxu0 %v2418
    %v3112 = vpop.f32.mrf.mxu0
    %v3113 = vadd.f32 0.0, %v3112
    %v3114 = vpop.f32.mrf.mxu0
    %v3115 = vpop.f32.mrf.mxu0
    %v3116 = vpop.f32.mrf.mxu0
    %3117 = vdwg.mxu0
    %v3150 = vunpack.c.l.b16 %v2918
    %v3151 = vunpack.c.l.b16 %v2919
    %v3152 = vunpack.c.l.b16 %v2920
    %v3153 = vunpack.c.l.b16 %v2921
    %v3154 = vunpack.c.l.b16 %v2922
    %v3155 = vunpack.c.l.b16 %v2923
    %v3156 = vunpack.c.l.b16 %v2924
    %v3157 = vunpack.c.l.b16 %v2925
    %v3158 = vunpack.c.l.b16 %v2926
    %v3159 = vunpack.c.l.b16 %v2927
    %v3160 = vunpack.c.l.b16 %v2928
    %v3161 = vunpack.c.l.b16 %v2929
    %v3162 = vunpack.c.l.b16 %v2930
    %v3163 = vunpack.c.l.b16 %v2931
    %v3164 = vunpack.c.l.b16 %v2932
    %v3165 = vunpack.c.l.b16 %v2933
    %v3166 = vunpack.c.l.b16 %v2934
    %v3167 = vunpack.c.l.b16 %v2935
    %v3168 = vunpack.c.l.b16 %v2936
    %v3169 = vunpack.c.l.b16 %v2937
    %v3170 = vunpack.c.l.b16 %v2938
    %v3171 = vunpack.c.l.b16 %v2939
    %v3172 = vunpack.c.l.b16 %v2940
    %v3173 = vunpack.c.l.b16 %v2941
    %v3174 = vunpack.c.l.b16 %v2942
    %v3175 = vunpack.c.l.b16 %v2943
    %v3176 = vunpack.c.l.b16 %v2944
    %v3177 = vunpack.c.l.b16 %v2945
    %v3178 = vunpack.c.l.b16 %v2946
    %v3179 = vunpack.c.l.b16 %v2947
    %v3180 = vunpack.c.l.b16 %v2948
    %v3181 = vunpack.c.l.b16 %v2949
    %v3182 = vpack.c.b16 %v3151, %v3150
    %v3183 = vpack.c.b16 %v3153, %v3152
    %v3184 = vpack.c.b16 %v3155, %v3154
    %v3185 = vpack.c.b16 %v3157, %v3156
    %v3186 = vpack.c.b16 %v3159, %v3158
    %v3187 = vpack.c.b16 %v3161, %v3160
    %v3188 = vpack.c.b16 %v3163, %v3162
    %v3189 = vpack.c.b16 %v3165, %v3164
    %v3190 = vpack.c.b16 %v3167, %v3166
    %v3191 = vpack.c.b16 %v3169, %v3168
    %v3192 = vpack.c.b16 %v3171, %v3170
    %v3193 = vpack.c.b16 %v3173, %v3172
    %v3194 = vpack.c.b16 %v3175, %v3174
    %v3195 = vpack.c.b16 %v3177, %v3176
    %v3196 = vpack.c.b16 %v3179, %v3178
    %v3197 = vpack.c.b16 %v3181, %v3180
    %3214 = vmatprep.subr.bf16.mxu0 0
    %3215 = vmatpush1.bf16.msra.mxu0 %v3189
    %3216 = vmatprep.subr.bf16.mxu0 0
    %3217 = vmatpush1.bf16.msra.mxu0 %v3188
    %3218 = vmatprep.subr.bf16.mxu0 0
    %3219 = vmatpush1.bf16.msra.mxu0 %v3187
    %3220 = vmatprep.subr.bf16.mxu0 0
    %3221 = vmatpush1.bf16.msra.mxu0 %v3186
    %3222 = vmatprep.subr.bf16.mxu0 0
    %3223 = vmatpush1.bf16.msra.mxu0 %v3185
    %3224 = vmatprep.subr.bf16.mxu0 0
    %3225 = vmatpush1.bf16.msra.mxu0 %v3184
    %3226 = vmatprep.subr.bf16.mxu0 0
    %3227 = vmatpush1.bf16.msra.mxu0 %v3183
    %3228 = vmatprep.subr.bf16.mxu0 0
    %3229 = vmatpush1.bf16.msra.mxu0 %v3182
    %3230 = vmatprep.subr.bf16.mxu0 0
    %3231 = vmatpush2.bf16.msra.mxu0 %v3197
    %3232 = vmatprep.subr.bf16.mxu0 0
    %3233 = vmatpush2.bf16.msra.mxu0 %v3196
    %3234 = vmatprep.subr.bf16.mxu0 0
    %3235 = vmatpush2.bf16.msra.mxu0 %v3195
    %3236 = vmatprep.subr.bf16.mxu0 0
    %3237 = vmatpush2.bf16.msra.mxu0 %v3194
    %3238 = vmatprep.subr.bf16.mxu0 0
    %3239 = vmatpush2.bf16.msra.mxu0 %v3193
    %3240 = vmatprep.subr.bf16.mxu0 0
    %3241 = vmatpush2.bf16.msra.mxu0 %v3192
    %3242 = vmatprep.subr.bf16.mxu0 0
    %3243 = vmatpush2.bf16.msra.mxu0 %v3191
    %3244 = vmatprep.subr.bf16.mxu0 0
    %3245 = vmatpush2.bf16.msra.mxu0 %v3190
    %3246 = vmatprep.mubr.bf16.mxu0 %v2170
    %3247 = vmatmul.mubr.bf16.gmra.mxu0 %v2169
    %v3248 = vpop.f32.mrf.mxu0
    %v3249 = vadd.f32 %v3113, %v3248
    %v3250 = vpop.f32.mrf.mxu0
    %v3251 = vpop.f32.mrf.mxu0
    %v3252 = vpop.f32.mrf.mxu0
    %3253 = vdwg.mxu0
    %v3254 = vld [vmem:[#allocation25] sm:$0xf]
    %v3255 = vld [vmem:[#allocation25 + $0x4] sm:$0xf]
    %v3256 = vld [vmem:[#allocation25 + $0x8] sm:$0xf]
    %v3257 = vld [vmem:[#allocation25 + $0xc] sm:$0xf]
    %v3258 = vld [vmem:[#allocation25 + $0x10] sm:$0xf]
    %v3259 = vld [vmem:[#allocation25 + $0x14] sm:$0xf]
    %v3260 = vld [vmem:[#allocation25 + $0x18] sm:$0xf]
    %v3261 = vld [vmem:[#allocation25 + $0x1c] sm:$0xf]
    %v3262 = vld [vmem:[#allocation25 + $0x20] sm:$0xf]
    %v3263 = vld [vmem:[#allocation25 + $0x24] sm:$0xf]
    %v3264 = vld [vmem:[#allocation25 + $0x28] sm:$0xf]
    %v3265 = vld [vmem:[#allocation25 + $0x2c] sm:$0xf]
    %v3266 = vld [vmem:[#allocation25 + $0x30] sm:$0xf]
    %v3267 = vld [vmem:[#allocation25 + $0x34] sm:$0xf]
    %v3268 = vld [vmem:[#allocation25 + $0x38] sm:$0xf]
    %v3269 = vld [vmem:[#allocation25 + $0x3c] sm:$0xf]
    %v3270 = vld [vmem:[#allocation25 + $0x40] sm:$0xf]
    %v3271 = vld [vmem:[#allocation25 + $0x44] sm:$0xf]
    %v3272 = vld [vmem:[#allocation25 + $0x48] sm:$0xf]
    %v3273 = vld [vmem:[#allocation25 + $0x4c] sm:$0xf]
    %v3274 = vld [vmem:[#allocation25 + $0x50] sm:$0xf]
    %v3275 = vld [vmem:[#allocation25 + $0x54] sm:$0xf]
    %v3276 = vld [vmem:[#allocation25 + $0x58] sm:$0xf]
    %v3277 = vld [vmem:[#allocation25 + $0x5c] sm:$0xf]
    %v3278 = vld [vmem:[#allocation25 + $0x60] sm:$0xf]
    %v3279 = vld [vmem:[#allocation25 + $0x64] sm:$0xf]
    %v3280 = vld [vmem:[#allocation25 + $0x68] sm:$0xf]
    %v3281 = vld [vmem:[#allocation25 + $0x6c] sm:$0xf]
    %v3282 = vld [vmem:[#allocation25 + $0x70] sm:$0xf]
    %v3283 = vld [vmem:[#allocation25 + $0x74] sm:$0xf]
    %v3284 = vld [vmem:[#allocation25 + $0x78] sm:$0xf]
    %v3285 = vld [vmem:[#allocation25 + $0x7c] sm:$0xf]
    %v3318 = vunpack.c.l.b16 %v3254
    %v3319 = vunpack.c.l.b16 %v3255
    %v3320 = vunpack.c.l.b16 %v3256
    %v3321 = vunpack.c.l.b16 %v3257
    %v3322 = vunpack.c.l.b16 %v3258
    %v3323 = vunpack.c.l.b16 %v3259
    %v3324 = vunpack.c.l.b16 %v3260
    %v3325 = vunpack.c.l.b16 %v3261
    %v3326 = vunpack.c.l.b16 %v3262
    %v3327 = vunpack.c.l.b16 %v3263
    %v3328 = vunpack.c.l.b16 %v3264
    %v3329 = vunpack.c.l.b16 %v3265
    %v3330 = vunpack.c.l.b16 %v3266
    %v3331 = vunpack.c.l.b16 %v3267
    %v3332 = vunpack.c.l.b16 %v3268
    %v3333 = vunpack.c.l.b16 %v3269
    %v3334 = vunpack.c.l.b16 %v3270
    %v3335 = vunpack.c.l.b16 %v3271
    %v3336 = vunpack.c.l.b16 %v3272
    %v3337 = vunpack.c.l.b16 %v3273
    %v3338 = vunpack.c.l.b16 %v3274
    %v3339 = vunpack.c.l.b16 %v3275
    %v3340 = vunpack.c.l.b16 %v3276
    %v3341 = vunpack.c.l.b16 %v3277
    %v3342 = vunpack.c.l.b16 %v3278
    %v3343 = vunpack.c.l.b16 %v3279
    %v3344 = vunpack.c.l.b16 %v3280
    %v3345 = vunpack.c.l.b16 %v3281
    %v3346 = vunpack.c.l.b16 %v3282
    %v3347 = vunpack.c.l.b16 %v3283
    %v3348 = vunpack.c.l.b16 %v3284
    %v3349 = vunpack.c.l.b16 %v3285
    %v3350 = vpack.c.b16 %v3319, %v3318
    %v3351 = vpack.c.b16 %v3321, %v3320
    %v3352 = vpack.c.b16 %v3323, %v3322
    %v3353 = vpack.c.b16 %v3325, %v3324
    %v3354 = vpack.c.b16 %v3327, %v3326
    %v3355 = vpack.c.b16 %v3329, %v3328
    %v3356 = vpack.c.b16 %v3331, %v3330
    %v3357 = vpack.c.b16 %v3333, %v3332
    %v3358 = vpack.c.b16 %v3335, %v3334
    %v3359 = vpack.c.b16 %v3337, %v3336
    %v3360 = vpack.c.b16 %v3339, %v3338
    %v3361 = vpack.c.b16 %v3341, %v3340
    %v3362 = vpack.c.b16 %v3343, %v3342
    %v3363 = vpack.c.b16 %v3345, %v3344
    %v3364 = vpack.c.b16 %v3347, %v3346
    %v3365 = vpack.c.b16 %v3349, %v3348
    %3382 = vmatprep.subr.bf16.mxu0 0
    %3383 = vmatpush1.bf16.msra.mxu0 %v3357
    %3384 = vmatprep.subr.bf16.mxu0 0
    %3385 = vmatpush1.bf16.msra.mxu0 %v3356
    %3386 = vmatprep.subr.bf16.mxu0 0
    %3387 = vmatpush1.bf16.msra.mxu0 %v3355
    %3388 = vmatprep.subr.bf16.mxu0 0
    %3389 = vmatpush1.bf16.msra.mxu0 %v3354
    %3390 = vmatprep.subr.bf16.mxu0 0
    %3391 = vmatpush1.bf16.msra.mxu0 %v3353
    %3392 = vmatprep.subr.bf16.mxu0 0
    %3393 = vmatpush1.bf16.msra.mxu0 %v3352
    %3394 = vmatprep.subr.bf16.mxu0 0
    %3395 = vmatpush1.bf16.msra.mxu0 %v3351
    %3396 = vmatprep.subr.bf16.mxu0 0
    %3397 = vmatpush1.bf16.msra.mxu0 %v3350
    %3398 = vmatprep.subr.bf16.mxu0 0
    %3399 = vmatpush2.bf16.msra.mxu0 %v3365
    %3400 = vmatprep.subr.bf16.mxu0 0
    %3401 = vmatpush2.bf16.msra.mxu0 %v3364
    %3402 = vmatprep.subr.bf16.mxu0 0
    %3403 = vmatpush2.bf16.msra.mxu0 %v3363
    %3404 = vmatprep.subr.bf16.mxu0 0
    %3405 = vmatpush2.bf16.msra.mxu0 %v3362
    %3406 = vmatprep.subr.bf16.mxu0 0
    %3407 = vmatpush2.bf16.msra.mxu0 %v3361
    %3408 = vmatprep.subr.bf16.mxu0 0
    %3409 = vmatpush2.bf16.msra.mxu0 %v3360
    %3410 = vmatprep.subr.bf16.mxu0 0
    %3411 = vmatpush2.bf16.msra.mxu0 %v3359
    %3412 = vmatprep.subr.bf16.mxu0 0
    %3413 = vmatpush2.bf16.msra.mxu0 %v3358
    %3414 = vmatprep.mubr.bf16.mxu0 %v2668
    %3415 = vmatmul.mubr.bf16.gmra.mxu0 %v2667
    %v3416 = vpop.f32.mrf.mxu0
    %v3417 = vadd.f32 0.0, %v3416
    %v3418 = vpop.f32.mrf.mxu0
    %v3419 = vpop.f32.mrf.mxu0
    %v3420 = vpop.f32.mrf.mxu0
    %3421 = vdwg.mxu0
    %v3422 = vadd.f32 %v3249, %v3417
    %v3423 = vld [vmem:[#allocation26] sm:$0xf]
    %v3424 = vld [vmem:[#allocation26 + $0x4] sm:$0xf]
    %v3425 = vld [vmem:[#allocation26 + $0x8] sm:$0xf]
    %v3426 = vld [vmem:[#allocation26 + $0xc] sm:$0xf]
    %v3427 = vld [vmem:[#allocation26 + $0x10] sm:$0xf]
    %v3428 = vld [vmem:[#allocation26 + $0x14] sm:$0xf]
    %v3429 = vld [vmem:[#allocation26 + $0x18] sm:$0xf]
    %v3430 = vld [vmem:[#allocation26 + $0x1c] sm:$0xf]
    %v3431 = vld [vmem:[#allocation26 + $0x20] sm:$0xf]
    %v3432 = vld [vmem:[#allocation26 + $0x24] sm:$0xf]
    %v3433 = vld [vmem:[#allocation26 + $0x28] sm:$0xf]
    %v3434 = vld [vmem:[#allocation26 + $0x2c] sm:$0xf]
    %v3435 = vld [vmem:[#allocation26 + $0x30] sm:$0xf]
    %v3436 = vld [vmem:[#allocation26 + $0x34] sm:$0xf]
    %v3437 = vld [vmem:[#allocation26 + $0x38] sm:$0xf]
    %v3438 = vld [vmem:[#allocation26 + $0x3c] sm:$0xf]
    %v3439 = vld [vmem:[#allocation26 + $0x40] sm:$0xf]
    %v3440 = vld [vmem:[#allocation26 + $0x44] sm:$0xf]
    %v3441 = vld [vmem:[#allocation26 + $0x48] sm:$0xf]
    %v3442 = vld [vmem:[#allocation26 + $0x4c] sm:$0xf]
    %v3443 = vld [vmem:[#allocation26 + $0x50] sm:$0xf]
    %v3444 = vld [vmem:[#allocation26 + $0x54] sm:$0xf]
    %v3445 = vld [vmem:[#allocation26 + $0x58] sm:$0xf]
    %v3446 = vld [vmem:[#allocation26 + $0x5c] sm:$0xf]
    %v3447 = vld [vmem:[#allocation26 + $0x60] sm:$0xf]
    %v3448 = vld [vmem:[#allocation26 + $0x64] sm:$0xf]
    %v3449 = vld [vmem:[#allocation26 + $0x68] sm:$0xf]
    %v3450 = vld [vmem:[#allocation26 + $0x6c] sm:$0xf]
    %v3451 = vld [vmem:[#allocation26 + $0x70] sm:$0xf]
    %v3452 = vld [vmem:[#allocation26 + $0x74] sm:$0xf]
    %v3453 = vld [vmem:[#allocation26 + $0x78] sm:$0xf]
    %v3454 = vld [vmem:[#allocation26 + $0x7c] sm:$0xf]
    %v3487 = vunpack.c.l.b16 %v3423
    %v3488 = vunpack.c.l.b16 %v3424
    %v3489 = vunpack.c.l.b16 %v3425
    %v3490 = vunpack.c.l.b16 %v3426
    %v3491 = vunpack.c.l.b16 %v3427
    %v3492 = vunpack.c.l.b16 %v3428
    %v3493 = vunpack.c.l.b16 %v3429
    %v3494 = vunpack.c.l.b16 %v3430
    %v3495 = vunpack.c.l.b16 %v3431
    %v3496 = vunpack.c.l.b16 %v3432
    %v3497 = vunpack.c.l.b16 %v3433
    %v3498 = vunpack.c.l.b16 %v3434
    %v3499 = vunpack.c.l.b16 %v3435
    %v3500 = vunpack.c.l.b16 %v3436
    %v3501 = vunpack.c.l.b16 %v3437
    %v3502 = vunpack.c.l.b16 %v3438
    %v3503 = vunpack.c.l.b16 %v3439
    %v3504 = vunpack.c.l.b16 %v3440
    %v3505 = vunpack.c.l.b16 %v3441
    %v3506 = vunpack.c.l.b16 %v3442
    %v3507 = vunpack.c.l.b16 %v3443
    %v3508 = vunpack.c.l.b16 %v3444
    %v3509 = vunpack.c.l.b16 %v3445
    %v3510 = vunpack.c.l.b16 %v3446
    %v3511 = vunpack.c.l.b16 %v3447
    %v3512 = vunpack.c.l.b16 %v3448
    %v3513 = vunpack.c.l.b16 %v3449
    %v3514 = vunpack.c.l.b16 %v3450
    %v3515 = vunpack.c.l.b16 %v3451
    %v3516 = vunpack.c.l.b16 %v3452
    %v3517 = vunpack.c.l.b16 %v3453
    %v3518 = vunpack.c.l.b16 %v3454
    %v3519 = vpack.c.b16 %v3488, %v3487
    %v3520 = vpack.c.b16 %v3490, %v3489
    %v3521 = vpack.c.b16 %v3492, %v3491
    %v3522 = vpack.c.b16 %v3494, %v3493
    %v3523 = vpack.c.b16 %v3496, %v3495
    %v3524 = vpack.c.b16 %v3498, %v3497
    %v3525 = vpack.c.b16 %v3500, %v3499
    %v3526 = vpack.c.b16 %v3502, %v3501
    %v3527 = vpack.c.b16 %v3504, %v3503
    %v3528 = vpack.c.b16 %v3506, %v3505
    %v3529 = vpack.c.b16 %v3508, %v3507
    %v3530 = vpack.c.b16 %v3510, %v3509
    %v3531 = vpack.c.b16 %v3512, %v3511
    %v3532 = vpack.c.b16 %v3514, %v3513
    %v3533 = vpack.c.b16 %v3516, %v3515
    %v3534 = vpack.c.b16 %v3518, %v3517
    %3551 = vmatprep.subr.bf16.mxu0 0
    %3552 = vmatpush1.bf16.msra.mxu0 %v3526
    %3553 = vmatprep.subr.bf16.mxu0 0
    %3554 = vmatpush1.bf16.msra.mxu0 %v3525
    %3555 = vmatprep.subr.bf16.mxu0 0
    %3556 = vmatpush1.bf16.msra.mxu0 %v3524
    %3557 = vmatprep.subr.bf16.mxu0 0
    %3558 = vmatpush1.bf16.msra.mxu0 %v3523
    %3559 = vmatprep.subr.bf16.mxu0 0
    %3560 = vmatpush1.bf16.msra.mxu0 %v3522
    %3561 = vmatprep.subr.bf16.mxu0 0
    %3562 = vmatpush1.bf16.msra.mxu0 %v3521
    %3563 = vmatprep.subr.bf16.mxu0 0
    %3564 = vmatpush1.bf16.msra.mxu0 %v3520
    %3565 = vmatprep.subr.bf16.mxu0 0
    %3566 = vmatpush1.bf16.msra.mxu0 %v3519
    %3567 = vmatprep.subr.bf16.mxu0 0
    %3568 = vmatpush2.bf16.msra.mxu0 %v3534
    %3569 = vmatprep.subr.bf16.mxu0 0
    %3570 = vmatpush2.bf16.msra.mxu0 %v3533
    %3571 = vmatprep.subr.bf16.mxu0 0
    %3572 = vmatpush2.bf16.msra.mxu0 %v3532
    %3573 = vmatprep.subr.bf16.mxu0 0
    %3574 = vmatpush2.bf16.msra.mxu0 %v3531
    %3575 = vmatprep.subr.bf16.mxu0 0
    %3576 = vmatpush2.bf16.msra.mxu0 %v3530
    %3577 = vmatprep.subr.bf16.mxu0 0
    %3578 = vmatpush2.bf16.msra.mxu0 %v3529
    %3579 = vmatprep.subr.bf16.mxu0 0
    %3580 = vmatpush2.bf16.msra.mxu0 %v3528
    %3581 = vmatprep.subr.bf16.mxu0 0
    %3582 = vmatpush2.bf16.msra.mxu0 %v3527
    %3583 = vmatprep.mubr.bf16.mxu0 %v2917
    %3584 = vmatmul.mubr.bf16.gmra.mxu0 %v2916
    %v3585 = vpop.f32.mrf.mxu0
    %v3586 = vadd.f32 0.0, %v3585
    %v3587 = vpop.f32.mrf.mxu0
    %v3588 = vpop.f32.mrf.mxu0
    %v3589 = vpop.f32.mrf.mxu0
    %3590 = vdwg.mxu0
    %v3591 = vadd.f32 %v3422, %v3586
    %v3592 = vld [vmem:[%s23] sm:$0x1]
    %v3594 = vlaneseq
    %v3595 = vshrl.u32 %v3594, 7
    %v3596 = vsub.s32 0, %v3595
    %v3597 = vrot.slane %v3592, %v3596
    %v3599 = vadd.f32 %v3591, %v3597
    %3600 = vst [vmem:[#allocation28] sm:$0xff] %v3599
    // Predicated region
    $region162: #{tpu_custom_call.1} parent=1 // pred_check
      _
    $region163: #{tpu_custom_call.1} parent=1 // pred_check_branch
      %3602 = sbr.rel (0) target = $region165
    $region164: #{tpu_custom_call.1} parent=1 // pred_region
      %s3604 = ssub.s32 128, 128
      %3605 = vsyncadd [#allocation4], %s3604
      %s3607 = sshll.u32 [#allocation28], 4
      %s3608 = int_to_ptr.vmem [resolvable:$true] %s3607
      %3610 = dma.vmem_to_hbm [thread:$0]  %s3608, 128, %s24, [#allocation4]
    $region165: #{tpu_custom_call.1} parent=1 // pred_fallthru
      _
    // Predicated region
    $region166: #{tpu_custom_call.1} parent=1 // pred_check
      _
    $region167: #{tpu_custom_call.1} parent=1 // pred_check_branch
      %3612 = sbr.rel (0) target = $region169
    $region168: #{tpu_custom_call.1} parent=1 // pred_region
      %3613 = dma.done [#allocation4], 128
    $region169: #{tpu_custom_call.1} parent=1 // pred_fallthru
      _
    %3614 = vsyncpa [#allocation3], 1
    %3615 = vsyncpa [#allocation6], 1
    %3616 = vsyncpa [#allocation9], 1
    %3617 = vsyncpa [#allocation12], 1
    %3618 = vsyncpa [#allocation15], 1
    %3619 = vsyncpa [#allocation18], 1
    %3620 = vsyncpa [#allocation21], 1
    %3621 = vsyncpa [#allocation24], 1
    %3622 = vsyncpa [#allocation27], 1
    %3623 = vsyncpa [#allocation4], 1

</llo_original>
